<compile_context>
chip_gen: v7x
topology: tpu7x:2x2x1
jax: 0.10.0
libtpu: 0.0.40
codegen_flags: <defaults>
</compile_context>

<pallas_src>
import jax
import jax.numpy as jnp
from jax.experimental import pallas as pl
from jax.experimental.pallas import tpu as pltpu  # noqa: F401  (TPU backend)

D_MODEL = 32
NUM_HEADS = 4
D_HEAD = D_MODEL // NUM_HEADS
D_FF = 64
LN_EPS = 1e-5


# ----------------------------- fused Pallas kernel -----------------------------

def _decoder_kernel(
    x_ref, xT_ref, encT_ref, mself_ref, mcross_ref,
    # self-attention (MHA1)
    wq1h_ref, bq1h_ref, wkv1T_ref, bkv1c_ref, wo1h_ref, bo1_ref, g1_ref, be1_ref,
    # cross-attention (MHA2)
    wq2h_ref, bq2h_ref, wkv2T_ref, bkv2c_ref, wo2h_ref, bo2_ref, g2_ref, be2_ref,
    # FFN
    w1_ref, b1_ref, w2_ref, b2_ref, g3_ref, be3_ref,
    o_ref,
):
    D, H, Dh = D_MODEL, NUM_HEADS, D_HEAD
    f32, bf16 = jnp.float32, jnp.bfloat16

    x = x_ref[...]                       # (M, D) f32, M = B*St

    def layer_norm(y, g, b):
        mu = jnp.mean(y, axis=-1, keepdims=True)
        var = jnp.mean((y - mu) ** 2, axis=-1, keepdims=True)
        return (y - mu) * jax.lax.rsqrt(var + LN_EPS) * g + b

    def softmax(s):
        s = s - jnp.max(s, axis=-1, keepdims=True)
        e = jnp.exp(s)
        return e * pl.reciprocal(jnp.sum(e, axis=-1, keepdims=True), approx=True)

    def mha(q_src_b, kvT, mask, wqh_ref, bqh_ref, woh_ref):
        # q_src_b: (M, D) bf16.  kvT: (2D, N) f32, K rows then V rows in
        # feature-major form => per-head slices are sublane-aligned row slices.
        # mask: (M, N) additive (block-diagonal over batch).
        # 1) all per-head Q projections + score matmuls, issued back-to-back.
        scores = []
        for h in range(H):
            qh = jnp.dot(q_src_b, wqh_ref[h], preferred_element_type=f32) + bqh_ref[h]
            khT = kvT[h * Dh:(h + 1) * Dh, :]
            scores.append(
                jnp.dot(qh.astype(bf16), khT.astype(bf16),
                        preferred_element_type=f32) + mask)
        # 2) softmax for all heads (VPU/EUP, f32).
        probs = [softmax(s) for s in scores]
        # 3) context matmuls + per-head accumulated output projection (no concat).
        acc = None
        for h in range(H):
            vhT = kvT[D + h * Dh:D + (h + 1) * Dh, :]
            ctx = jax.lax.dot_general(                      # probs_h @ vhT.T
                probs[h].astype(bf16), vhT.astype(bf16),
                (((1,), (1,)), ((), ())), preferred_element_type=f32)
            part = jnp.dot(ctx.astype(bf16), woh_ref[h], preferred_element_type=f32)
            acc = part if acc is None else acc + part
        return acc                                          # (M, D) f32, pre-bias

    # ---- masked self-attention + residual LayerNorm ----
    kv1T = jnp.dot(wkv1T_ref[...], xT_ref[...],
                   preferred_element_type=f32) + bkv1c_ref[...]
    a1 = mha(x.astype(bf16), kv1T, mself_ref[...],
             wq1h_ref, bq1h_ref, wo1h_ref) + bo1_ref[...]
    z1 = layer_norm(a1 + x, g1_ref[...], be1_ref[...])

    # ---- cross-attention over encoder output + residual LayerNorm ----
    kv2T = jnp.dot(wkv2T_ref[...], encT_ref[...],
                   preferred_element_type=f32) + bkv2c_ref[...]
    a2 = mha(z1.astype(bf16), kv2T, mcross_ref[...],
             wq2h_ref, bq2h_ref, wo2h_ref) + bo2_ref[...]
    z2 = layer_norm(a2 + z1, g2_ref[...], be2_ref[...])

    # ---- position-wise FFN + residual LayerNorm ----
    hdn = jnp.maximum(
        jnp.dot(z2.astype(bf16), w1_ref[...], preferred_element_type=f32)
        + b1_ref[...], 0.0)
    ff = jnp.dot(hdn.astype(bf16), w2_ref[...], preferred_element_type=f32) + b2_ref[...]
    o_ref[...] = layer_norm(ff + z2, g3_ref[...], be3_ref[...])


# ----------------------------- wrapper -----------------------------

def decoder_forward(x, enc_out, causal_mask, padding_mask, params):
    """Fused decoder block.

    x:            (B, St, D)
    enc_out:      (B, Ss, D)
    causal_mask:  (St, St) additive mask (0 keep / -1e9 masked)
    padding_mask: (B, Ss)  additive mask over source key positions
    """
    B, St, D = x.shape
    Ss = enc_out.shape[1]
    H, Dh = NUM_HEADS, D_HEAD
    scale = 1.0 / (Dh ** 0.5)
    p = params
    f32, bf16 = jnp.float32, jnp.bfloat16

    M, Nk = B * St, B * Ss

    # Fold batch into the M dimension; pass a transposed bf16 copy for the
    # feature-major K/V projections.
    x2 = x.reshape(M, D).astype(f32)
    xT = jnp.transpose(x2).astype(bf16)                       # (D, M)
    encT = jnp.transpose(enc_out.reshape(Nk, D)).astype(bf16)  # (D, Nk)

    # Block-diagonal additive masks (built on the host): cross-batch score
    # blocks are fully masked so the folded (B*S) attention equals per-batch
    # attention exactly.
    neg = jnp.float32(-1e9)
    same_b = jnp.eye(B, dtype=bool)
    mself = jnp.where(same_b[:, None, :, None],
                      causal_mask.astype(f32)[None, :, None, :],
                      neg).reshape(M, M)
    mcross = jnp.where(same_b[:, None, :, None],
                       padding_mask.astype(f32)[None, None, :, :], neg)
    mcross = jnp.broadcast_to(mcross, (B, St, B, Ss)).reshape(M, Nk)

    # --- weight prep (host side, free) ---
    def q_heads(w, b):
        # fold 1/sqrt(Dh) into Q; split per head: (H, D, Dh) / (H, 1, Dh)
        wh = (w * scale).reshape(D, H, Dh).transpose(1, 0, 2).astype(bf16)
        bh = (b * scale).reshape(H, 1, Dh).astype(f32)
        return wh, bh

    def kvT_fused(wk, bk, wv, bv):
        # transposed fused K|V projection: (2D, D) weight, (2D, 1) bias
        w = jnp.concatenate([wk.T, wv.T], axis=0).astype(bf16)
        b = jnp.concatenate([bk, bv]).reshape(2 * D, 1).astype(f32)
        return w, b

    def o_heads(w):
        # output projection split per head on rows: (H, Dh, D)
        return w.reshape(H, Dh, D).astype(bf16)

    row = lambda v: v.reshape(1, -1).astype(f32)

    wq1h, bq1h = q_heads(p['wq1'], p['bq1'])
    wkv1T, bkv1c = kvT_fused(p['wk1'], p['bk1'], p['wv1'], p['bv1'])
    wq2h, bq2h = q_heads(p['wq2'], p['bq2'])
    wkv2T, bkv2c = kvT_fused(p['wk2'], p['bk2'], p['wv2'], p['bv2'])

    args = (
        x2, xT, encT, mself, mcross,
        # MHA1
        wq1h, bq1h, wkv1T, bkv1c, o_heads(p['wo1']), row(p['bo1']),
        row(p['ln1_g']), row(p['ln1_b']),
        # MHA2
        wq2h, bq2h, wkv2T, bkv2c, o_heads(p['wo2']), row(p['bo2']),
        row(p['ln2_g']), row(p['ln2_b']),
        # FFN
        p['ffn_w1'].astype(bf16), row(p['ffn_b1']),
        p['ffn_w2'].astype(bf16), row(p['ffn_b2']),
        row(p['ln3_g']), row(p['ln3_b']),
    )

    # Single kernel invocation: no grid, everything whole-array resident in
    # VMEM (working set << 1 MiB on all TPU generations).  For larger B one
    # would re-introduce a batch grid axis marked "parallel" (v7x megacore).
    out_flat = pl.pallas_call(
        _decoder_kernel,
        out_shape=jax.ShapeDtypeStruct((M, D), jnp.float32),
    )(*args)
    return out_flat.reshape(B, St, D)


# ----------------------------- params & reference -----------------------------

def init_params(key):
    def dense(k, fan_in, fan_out):
        kw, kb = jax.random.split(k)
        w = jax.random.normal(kw, (fan_in, fan_out), jnp.float32) * 0.02
        b = jax.random.normal(kb, (fan_out,), jnp.float32) * 0.02
        return w, b

    keys = jax.random.split(key, 13)
    D, Dff = D_MODEL, D_FF

    wq1, bq1 = dense(keys[0], D, D)
    wk1, bk1 = dense(keys[1], D, D)
    wv1, bv1 = dense(keys[2], D, D)
    wo1, bo1 = dense(keys[3], D, D)
    wq2, bq2 = dense(keys[4], D, D)
    wk2, bk2 = dense(keys[5], D, D)
    wv2, bv2 = dense(keys[6], D, D)
    wo2, bo2 = dense(keys[7], D, D)
    w1, b1 = dense(keys[8], D, Dff)
    w2, b2 = dense(keys[9], Dff, D)

    def ln_params(k):
        kg, kb = jax.random.split(k)
        g = 1.0 + 0.1 * jax.random.normal(kg, (D,), jnp.float32)
        b = 0.1 * jax.random.normal(kb, (D,), jnp.float32)
        return g, b

    g1, be1 = ln_params(keys[10])
    g2, be2 = ln_params(keys[11])
    g3, be3 = ln_params(keys[12])

    return dict(
        wq1=wq1, bq1=bq1, wk1=wk1, bk1=bk1, wv1=wv1, bv1=bv1,
        wo1=wo1, bo1=bo1, ln1_g=g1, ln1_b=be1,
        wq2=wq2, bq2=bq2, wk2=wk2, bk2=bk2, wv2=wv2, bv2=bv2,
        wo2=wo2, bo2=bo2, ln2_g=g2, ln2_b=be2,
        ffn_w1=w1, ffn_b1=b1, ffn_w2=w2, ffn_b2=b2,
        ln3_g=g3, ln3_b=be3,
    )


def _reference(x, enc_out, causal2d, pad2d, p):
    """Pure-JAX reference (same math as the PyTorch module in eval mode)."""
    def ln(y, g, b):
        mu = y.mean(-1, keepdims=True)
        var = ((y - mu) ** 2).mean(-1, keepdims=True)
        return (y - mu) / jnp.sqrt(var + LN_EPS) * g + b

    def mha(q_in, kv_in, mask4, wq, bq, wk, bk, wv, bv, wo, bo):
        B, Sq, D = q_in.shape
        Sk = kv_in.shape[1]
        H, Dh = NUM_HEADS, D_HEAD
        q = (q_in @ wq + bq).reshape(B, Sq, H, Dh).transpose(0, 2, 1, 3)
        k = (kv_in @ wk + bk).reshape(B, Sk, H, Dh).transpose(0, 2, 1, 3)
        v = (kv_in @ wv + bv).reshape(B, Sk, H, Dh).transpose(0, 2, 1, 3)
        s = jnp.einsum('bhqd,bhkd->bhqk', q, k) / (Dh ** 0.5) + mask4
        a = jax.nn.softmax(s, axis=-1)
        ctx = jnp.einsum('bhqk,bhkd->bhqd', a, v).transpose(0, 2, 1, 3).reshape(B, Sq, D)
        return ctx @ wo + bo

    z1 = mha(x, x, causal2d[None, None], p['wq1'], p['bq1'], p['wk1'], p['bk1'],
             p['wv1'], p['bv1'], p['wo1'], p['bo1'])
    z1 = ln(z1 + x, p['ln1_g'], p['ln1_b'])
    z2 = mha(z1, enc_out, pad2d[:, None, None, :], p['wq2'], p['bq2'],
             p['wk2'], p['bk2'], p['wv2'], p['bv2'], p['wo2'], p['bo2'])
    z2 = ln(z2 + z1, p['ln2_g'], p['ln2_b'])
    h = jax.nn.relu(z2 @ p['ffn_w1'] + p['ffn_b1'])
    ff = h @ p['ffn_w2'] + p['ffn_b2']
    return ln(ff + z2, p['ln3_g'], p['ln3_b'])


# ----------------------------- main -----------------------------

if __name__ == "__main__":
    B, S_TGT, S_SRC = 2, 8, 8
    key = jax.random.PRNGKey(0)
    kx, kenc, kp = jax.random.split(key, 3)

    x = jax.random.normal(kx, (B, S_TGT, D_MODEL), jnp.float32)
    enc_out = jax.random.normal(kenc, (B, S_SRC, D_MODEL), jnp.float32)
    params = init_params(kp)

    # causal mask, additive form: 0 = keep, -1e9 = masked  (St, St)
    causal = jnp.where(jnp.tril(jnp.ones((S_TGT, S_TGT), bool)), 0.0, -1e9)
    causal = causal.astype(jnp.float32)

    # padding mask over source key positions: pretend last 2 source positions of
    # batch item 1 are padding  (B, Ss) additive form
    valid = jnp.ones((B, S_SRC), jnp.float32).at[1, -2:].set(0.0)
    padding = jnp.where(valid > 0, 0.0, -1e9).astype(jnp.float32)

    out = decoder_forward(x, enc_out, causal, padding, params)
    jax.block_until_ready(out)
    assert out.shape == (B, S_TGT, D_MODEL)
    assert bool(jnp.all(jnp.isfinite(out)))

    ref = _reference(x, enc_out, causal, padding, params)
    assert jnp.allclose(out, ref, atol=5e-2, rtol=5e-2), \
        float(jnp.max(jnp.abs(out - ref)))

    print("KERNEL_OK")
</pallas_src>

<mosaic_0001>
module attributes {stable_mosaic.version = 11 : i64} {
  func.func @_decoder_kernel(%arg0: memref<16x32xf32, #tpu.memory_space<vmem>>, %arg1: memref<32x16xbf16, #tpu.memory_space<vmem>>, %arg2: memref<32x16xbf16, #tpu.memory_space<vmem>>, %arg3: memref<16x16xf32, #tpu.memory_space<vmem>>, %arg4: memref<16x16xf32, #tpu.memory_space<vmem>>, %arg5: memref<4x32x8xbf16, #tpu.memory_space<vmem>>, %arg6: memref<4x1x8xf32, #tpu.memory_space<vmem>>, %arg7: memref<64x32xbf16, #tpu.memory_space<vmem>>, %arg8: memref<64x1xf32, #tpu.memory_space<vmem>>, %arg9: memref<4x8x32xbf16, #tpu.memory_space<vmem>>, %arg10: memref<1x32xf32, #tpu.memory_space<vmem>>, %arg11: memref<1x32xf32, #tpu.memory_space<vmem>>, %arg12: memref<1x32xf32, #tpu.memory_space<vmem>>, %arg13: memref<4x32x8xbf16, #tpu.memory_space<vmem>>, %arg14: memref<4x1x8xf32, #tpu.memory_space<vmem>>, %arg15: memref<64x32xbf16, #tpu.memory_space<vmem>>, %arg16: memref<64x1xf32, #tpu.memory_space<vmem>>, %arg17: memref<4x8x32xbf16, #tpu.memory_space<vmem>>, %arg18: memref<1x32xf32, #tpu.memory_space<vmem>>, %arg19: memref<1x32xf32, #tpu.memory_space<vmem>>, %arg20: memref<1x32xf32, #tpu.memory_space<vmem>>, %arg21: memref<32x64xbf16, #tpu.memory_space<vmem>>, %arg22: memref<1x64xf32, #tpu.memory_space<vmem>>, %arg23: memref<64x32xbf16, #tpu.memory_space<vmem>>, %arg24: memref<1x32xf32, #tpu.memory_space<vmem>>, %arg25: memref<1x32xf32, #tpu.memory_space<vmem>>, %arg26: memref<1x32xf32, #tpu.memory_space<vmem>>, %arg27: memref<16x32xf32, #tpu.memory_space<vmem>>) attributes {dimension_semantics = [], scalar_prefetch = 0 : i64, scratch_operands = 0 : i64, tpu.core_type = #tpu.core_type<tc>} {
    %c0 = arith.constant 0 : index
    %c0_0 = arith.constant 0 : index
    %0 = vector.load %arg0[%c0, %c0_0] : memref<16x32xf32, #tpu.memory_space<vmem>>, vector<16x32xf32>
    %c0_1 = arith.constant 0 : index
    %c0_2 = arith.constant 0 : index
    %1 = vector.load %arg7[%c0_1, %c0_2] : memref<64x32xbf16, #tpu.memory_space<vmem>>, vector<64x32xbf16>
    %c0_3 = arith.constant 0 : index
    %c0_4 = arith.constant 0 : index
    %2 = vector.load %arg1[%c0_3, %c0_4] : memref<32x16xbf16, #tpu.memory_space<vmem>>, vector<32x16xbf16>
    %cst = arith.constant dense<0.000000e+00> : vector<64x16xf32>
    %3 = tpu.matmul %1, %2, %cst {dimension_numbers = #tpu.dot_dimension_numbers<[1], [0], [0], [1], [0, 0, 1, 1], [], []>} : vector<64x32xbf16>, vector<32x16xbf16>, vector<64x16xf32> -> vector<64x16xf32>
    %c0_5 = arith.constant 0 : index
    %c0_6 = arith.constant 0 : index
    %4 = vector.load %arg8[%c0_5, %c0_6] : memref<64x1xf32, #tpu.memory_space<vmem>>, vector<64x1xf32>
    %5 = vector.broadcast %4 : vector<64x1xf32> to vector<64x16xf32>
    %6 = arith.addf %3, %5 : vector<64x16xf32>
    %7 = arith.truncf %0 : vector<16x32xf32> to vector<16x32xbf16>
    %c0_7 = arith.constant 0 : index
    %c0_8 = arith.constant 0 : index
    %8 = vector.load %arg3[%c0_7, %c0_8] : memref<16x16xf32, #tpu.memory_space<vmem>>, vector<16x16xf32>
    %c0_9 = arith.constant 0 : index
    %c0_10 = arith.constant 0 : index
    %c0_11 = arith.constant 0 : index
    %9 = vector.load %arg5[%c0_9, %c0_10, %c0_11] : memref<4x32x8xbf16, #tpu.memory_space<vmem>>, vector<1x32x8xbf16>
    %10 = vector.shape_cast %9 : vector<1x32x8xbf16> to vector<32x8xbf16>
    %cst_12 = arith.constant dense<0.000000e+00> : vector<16x8xf32>
    %11 = tpu.matmul %7, %10, %cst_12 {dimension_numbers = #tpu.dot_dimension_numbers<[1], [0], [0], [1], [0, 0, 1, 1], [], []>} : vector<16x32xbf16>, vector<32x8xbf16>, vector<16x8xf32> -> vector<16x8xf32>
    %c0_13 = arith.constant 0 : index
    %c0_14 = arith.constant 0 : index
    %c0_15 = arith.constant 0 : index
    %12 = vector.load %arg6[%c0_13, %c0_14, %c0_15] : memref<4x1x8xf32, #tpu.memory_space<vmem>>, vector<1x1x8xf32>
    %13 = vector.shape_cast %12 : vector<1x1x8xf32> to vector<1x8xf32>
    %14 = vector.broadcast %13 : vector<1x8xf32> to vector<16x8xf32>
    %15 = arith.addf %11, %14 : vector<16x8xf32>
    %16 = vector.extract_strided_slice %6 {offsets = [0, 0], sizes = [8, 16], strides = [1, 1]} : vector<64x16xf32> to vector<8x16xf32>
    %17 = arith.truncf %15 : vector<16x8xf32> to vector<16x8xbf16>
    %18 = arith.truncf %16 : vector<8x16xf32> to vector<8x16xbf16>
    %cst_16 = arith.constant dense<0.000000e+00> : vector<16x16xf32>
    %19 = tpu.matmul %17, %18, %cst_16 {dimension_numbers = #tpu.dot_dimension_numbers<[1], [0], [0], [1], [0, 0, 1, 1], [], []>} : vector<16x8xbf16>, vector<8x16xbf16>, vector<16x16xf32> -> vector<16x16xf32>
    %20 = arith.addf %19, %8 : vector<16x16xf32>
    %c1 = arith.constant 1 : index
    %c0_17 = arith.constant 0 : index
    %c0_18 = arith.constant 0 : index
    %21 = vector.load %arg5[%c1, %c0_17, %c0_18] : memref<4x32x8xbf16, #tpu.memory_space<vmem>>, vector<1x32x8xbf16>
    %22 = vector.shape_cast %21 : vector<1x32x8xbf16> to vector<32x8xbf16>
    %cst_19 = arith.constant dense<0.000000e+00> : vector<16x8xf32>
    %23 = tpu.matmul %7, %22, %cst_19 {dimension_numbers = #tpu.dot_dimension_numbers<[1], [0], [0], [1], [0, 0, 1, 1], [], []>} : vector<16x32xbf16>, vector<32x8xbf16>, vector<16x8xf32> -> vector<16x8xf32>
    %c1_20 = arith.constant 1 : index
    %c0_21 = arith.constant 0 : index
    %c0_22 = arith.constant 0 : index
    %24 = vector.load %arg6[%c1_20, %c0_21, %c0_22] : memref<4x1x8xf32, #tpu.memory_space<vmem>>, vector<1x1x8xf32>
    %25 = vector.shape_cast %24 : vector<1x1x8xf32> to vector<1x8xf32>
    %26 = vector.broadcast %25 : vector<1x8xf32> to vector<16x8xf32>
    %27 = arith.addf %23, %26 : vector<16x8xf32>
    %28 = vector.extract_strided_slice %6 {offsets = [8, 0], sizes = [8, 16], strides = [1, 1]} : vector<64x16xf32> to vector<8x16xf32>
    %29 = arith.truncf %27 : vector<16x8xf32> to vector<16x8xbf16>
    %30 = arith.truncf %28 : vector<8x16xf32> to vector<8x16xbf16>
    %cst_23 = arith.constant dense<0.000000e+00> : vector<16x16xf32>
    %31 = tpu.matmul %29, %30, %cst_23 {dimension_numbers = #tpu.dot_dimension_numbers<[1], [0], [0], [1], [0, 0, 1, 1], [], []>} : vector<16x8xbf16>, vector<8x16xbf16>, vector<16x16xf32> -> vector<16x16xf32>
    %32 = arith.addf %31, %8 : vector<16x16xf32>
    %c2 = arith.constant 2 : index
    %c0_24 = arith.constant 0 : index
    %c0_25 = arith.constant 0 : index
    %33 = vector.load %arg5[%c2, %c0_24, %c0_25] : memref<4x32x8xbf16, #tpu.memory_space<vmem>>, vector<1x32x8xbf16>
    %34 = vector.shape_cast %33 : vector<1x32x8xbf16> to vector<32x8xbf16>
    %cst_26 = arith.constant dense<0.000000e+00> : vector<16x8xf32>
    %35 = tpu.matmul %7, %34, %cst_26 {dimension_numbers = #tpu.dot_dimension_numbers<[1], [0], [0], [1], [0, 0, 1, 1], [], []>} : vector<16x32xbf16>, vector<32x8xbf16>, vector<16x8xf32> -> vector<16x8xf32>
    %c2_27 = arith.constant 2 : index
    %c0_28 = arith.constant 0 : index
    %c0_29 = arith.constant 0 : index
    %36 = vector.load %arg6[%c2_27, %c0_28, %c0_29] : memref<4x1x8xf32, #tpu.memory_space<vmem>>, vector<1x1x8xf32>
    %37 = vector.shape_cast %36 : vector<1x1x8xf32> to vector<1x8xf32>
    %38 = vector.broadcast %37 : vector<1x8xf32> to vector<16x8xf32>
    %39 = arith.addf %35, %38 : vector<16x8xf32>
    %40 = vector.extract_strided_slice %6 {offsets = [16, 0], sizes = [8, 16], strides = [1, 1]} : vector<64x16xf32> to vector<8x16xf32>
    %41 = arith.truncf %39 : vector<16x8xf32> to vector<16x8xbf16>
    %42 = arith.truncf %40 : vector<8x16xf32> to vector<8x16xbf16>
    %cst_30 = arith.constant dense<0.000000e+00> : vector<16x16xf32>
    %43 = tpu.matmul %41, %42, %cst_30 {dimension_numbers = #tpu.dot_dimension_numbers<[1], [0], [0], [1], [0, 0, 1, 1], [], []>} : vector<16x8xbf16>, vector<8x16xbf16>, vector<16x16xf32> -> vector<16x16xf32>
    %44 = arith.addf %43, %8 : vector<16x16xf32>
    %c3 = arith.constant 3 : index
    %c0_31 = arith.constant 0 : index
    %c0_32 = arith.constant 0 : index
    %45 = vector.load %arg5[%c3, %c0_31, %c0_32] : memref<4x32x8xbf16, #tpu.memory_space<vmem>>, vector<1x32x8xbf16>
    %46 = vector.shape_cast %45 : vector<1x32x8xbf16> to vector<32x8xbf16>
    %cst_33 = arith.constant dense<0.000000e+00> : vector<16x8xf32>
    %47 = tpu.matmul %7, %46, %cst_33 {dimension_numbers = #tpu.dot_dimension_numbers<[1], [0], [0], [1], [0, 0, 1, 1], [], []>} : vector<16x32xbf16>, vector<32x8xbf16>, vector<16x8xf32> -> vector<16x8xf32>
    %c3_34 = arith.constant 3 : index
    %c0_35 = arith.constant 0 : index
    %c0_36 = arith.constant 0 : index
    %48 = vector.load %arg6[%c3_34, %c0_35, %c0_36] : memref<4x1x8xf32, #tpu.memory_space<vmem>>, vector<1x1x8xf32>
    %49 = vector.shape_cast %48 : vector<1x1x8xf32> to vector<1x8xf32>
    %50 = vector.broadcast %49 : vector<1x8xf32> to vector<16x8xf32>
    %51 = arith.addf %47, %50 : vector<16x8xf32>
    %52 = vector.extract_strided_slice %6 {offsets = [24, 0], sizes = [8, 16], strides = [1, 1]} : vector<64x16xf32> to vector<8x16xf32>
    %53 = arith.truncf %51 : vector<16x8xf32> to vector<16x8xbf16>
    %54 = arith.truncf %52 : vector<8x16xf32> to vector<8x16xbf16>
    %cst_37 = arith.constant dense<0.000000e+00> : vector<16x16xf32>
    %55 = tpu.matmul %53, %54, %cst_37 {dimension_numbers = #tpu.dot_dimension_numbers<[1], [0], [0], [1], [0, 0, 1, 1], [], []>} : vector<16x8xbf16>, vector<8x16xbf16>, vector<16x16xf32> -> vector<16x16xf32>
    %56 = arith.addf %55, %8 : vector<16x16xf32>
    %cst_38 = arith.constant dense<0xFF800000> : vector<16xf32>
    %57 = vector.multi_reduction <maximumf>, %20, %cst_38 [1] : vector<16x16xf32> to vector<16xf32>
    %58 = vector.shape_cast %57 : vector<16xf32> to vector<16x1xf32>
    %59 = vector.broadcast %58 : vector<16x1xf32> to vector<16x16xf32>
    %60 = arith.subf %20, %59 : vector<16x16xf32>
    %61 = math.exp %60 : vector<16x16xf32>
    %cst_39 = arith.constant dense<0.000000e+00> : vector<16xf32>
    %62 = vector.multi_reduction <add>, %61, %cst_39 [1] : vector<16x16xf32> to vector<16xf32>
    %63 = vector.shape_cast %62 : vector<16xf32> to vector<16x1xf32>
    %64 = tpu.reciprocal %63 {approx = true} : vector<16x1xf32> -> vector<16x1xf32>
    %65 = vector.broadcast %64 : vector<16x1xf32> to vector<16x16xf32>
    %66 = arith.mulf %61, %65 : vector<16x16xf32>
    %cst_40 = arith.constant dense<0xFF800000> : vector<16xf32>
    %67 = vector.multi_reduction <maximumf>, %32, %cst_40 [1] : vector<16x16xf32> to vector<16xf32>
    %68 = vector.shape_cast %67 : vector<16xf32> to vector<16x1xf32>
    %69 = vector.broadcast %68 : vector<16x1xf32> to vector<16x16xf32>
    %70 = arith.subf %32, %69 : vector<16x16xf32>
    %71 = math.exp %70 : vector<16x16xf32>
    %cst_41 = arith.constant dense<0.000000e+00> : vector<16xf32>
    %72 = vector.multi_reduction <add>, %71, %cst_41 [1] : vector<16x16xf32> to vector<16xf32>
    %73 = vector.shape_cast %72 : vector<16xf32> to vector<16x1xf32>
    %74 = tpu.reciprocal %73 {approx = true} : vector<16x1xf32> -> vector<16x1xf32>
    %75 = vector.broadcast %74 : vector<16x1xf32> to vector<16x16xf32>
    %76 = arith.mulf %71, %75 : vector<16x16xf32>
    %cst_42 = arith.constant dense<0xFF800000> : vector<16xf32>
    %77 = vector.multi_reduction <maximumf>, %44, %cst_42 [1] : vector<16x16xf32> to vector<16xf32>
    %78 = vector.shape_cast %77 : vector<16xf32> to vector<16x1xf32>
    %79 = vector.broadcast %78 : vector<16x1xf32> to vector<16x16xf32>
    %80 = arith.subf %44, %79 : vector<16x16xf32>
    %81 = math.exp %80 : vector<16x16xf32>
    %cst_43 = arith.constant dense<0.000000e+00> : vector<16xf32>
    %82 = vector.multi_reduction <add>, %81, %cst_43 [1] : vector<16x16xf32> to vector<16xf32>
    %83 = vector.shape_cast %82 : vector<16xf32> to vector<16x1xf32>
    %84 = tpu.reciprocal %83 {approx = true} : vector<16x1xf32> -> vector<16x1xf32>
    %85 = vector.broadcast %84 : vector<16x1xf32> to vector<16x16xf32>
    %86 = arith.mulf %81, %85 : vector<16x16xf32>
    %cst_44 = arith.constant dense<0xFF800000> : vector<16xf32>
    %87 = vector.multi_reduction <maximumf>, %56, %cst_44 [1] : vector<16x16xf32> to vector<16xf32>
    %88 = vector.shape_cast %87 : vector<16xf32> to vector<16x1xf32>
    %89 = vector.broadcast %88 : vector<16x1xf32> to vector<16x16xf32>
    %90 = arith.subf %56, %89 : vector<16x16xf32>
    %91 = math.exp %90 : vector<16x16xf32>
    %cst_45 = arith.constant dense<0.000000e+00> : vector<16xf32>
    %92 = vector.multi_reduction <add>, %91, %cst_45 [1] : vector<16x16xf32> to vector<16xf32>
    %93 = vector.shape_cast %92 : vector<16xf32> to vector<16x1xf32>
    %94 = tpu.reciprocal %93 {approx = true} : vector<16x1xf32> -> vector<16x1xf32>
    %95 = vector.broadcast %94 : vector<16x1xf32> to vector<16x16xf32>
    %96 = arith.mulf %91, %95 : vector<16x16xf32>
    %97 = vector.extract_strided_slice %6 {offsets = [32, 0], sizes = [8, 16], strides = [1, 1]} : vector<64x16xf32> to vector<8x16xf32>
    %98 = arith.truncf %66 : vector<16x16xf32> to vector<16x16xbf16>
    %99 = arith.truncf %97 : vector<8x16xf32> to vector<8x16xbf16>
    %cst_46 = arith.constant dense<0.000000e+00> : vector<16x8xf32>
    %100 = tpu.matmul %98, %99, %cst_46 {dimension_numbers = #tpu.dot_dimension_numbers<[1], [1], [0], [0], [0, 0, 1, 0], [], []>} : vector<16x16xbf16>, vector<8x16xbf16>, vector<16x8xf32> -> vector<16x8xf32>
    %101 = arith.truncf %100 : vector<16x8xf32> to vector<16x8xbf16>
    %c0_47 = arith.constant 0 : index
    %c0_48 = arith.constant 0 : index
    %c0_49 = arith.constant 0 : index
    %102 = vector.load %arg9[%c0_47, %c0_48, %c0_49] : memref<4x8x32xbf16, #tpu.memory_space<vmem>>, vector<1x8x32xbf16>
    %103 = vector.shape_cast %102 : vector<1x8x32xbf16> to vector<8x32xbf16>
    %cst_50 = arith.constant dense<0.000000e+00> : vector<16x32xf32>
    %104 = tpu.matmul %101, %103, %cst_50 {dimension_numbers = #tpu.dot_dimension_numbers<[1], [0], [0], [1], [0, 0, 1, 1], [], []>} : vector<16x8xbf16>, vector<8x32xbf16>, vector<16x32xf32> -> vector<16x32xf32>
    %105 = vector.extract_strided_slice %6 {offsets = [40, 0], sizes = [8, 16], strides = [1, 1]} : vector<64x16xf32> to vector<8x16xf32>
    %106 = arith.truncf %76 : vector<16x16xf32> to vector<16x16xbf16>
    %107 = arith.truncf %105 : vector<8x16xf32> to vector<8x16xbf16>
    %cst_51 = arith.constant dense<0.000000e+00> : vector<16x8xf32>
    %108 = tpu.matmul %106, %107, %cst_51 {dimension_numbers = #tpu.dot_dimension_numbers<[1], [1], [0], [0], [0, 0, 1, 0], [], []>} : vector<16x16xbf16>, vector<8x16xbf16>, vector<16x8xf32> -> vector<16x8xf32>
    %109 = arith.truncf %108 : vector<16x8xf32> to vector<16x8xbf16>
    %c1_52 = arith.constant 1 : index
    %c0_53 = arith.constant 0 : index
    %c0_54 = arith.constant 0 : index
    %110 = vector.load %arg9[%c1_52, %c0_53, %c0_54] : memref<4x8x32xbf16, #tpu.memory_space<vmem>>, vector<1x8x32xbf16>
    %111 = vector.shape_cast %110 : vector<1x8x32xbf16> to vector<8x32xbf16>
    %cst_55 = arith.constant dense<0.000000e+00> : vector<16x32xf32>
    %112 = tpu.matmul %109, %111, %cst_55 {dimension_numbers = #tpu.dot_dimension_numbers<[1], [0], [0], [1], [0, 0, 1, 1], [], []>} : vector<16x8xbf16>, vector<8x32xbf16>, vector<16x32xf32> -> vector<16x32xf32>
    %113 = arith.addf %104, %112 : vector<16x32xf32>
    %114 = vector.extract_strided_slice %6 {offsets = [48, 0], sizes = [8, 16], strides = [1, 1]} : vector<64x16xf32> to vector<8x16xf32>
    %115 = arith.truncf %86 : vector<16x16xf32> to vector<16x16xbf16>
    %116 = arith.truncf %114 : vector<8x16xf32> to vector<8x16xbf16>
    %cst_56 = arith.constant dense<0.000000e+00> : vector<16x8xf32>
    %117 = tpu.matmul %115, %116, %cst_56 {dimension_numbers = #tpu.dot_dimension_numbers<[1], [1], [0], [0], [0, 0, 1, 0], [], []>} : vector<16x16xbf16>, vector<8x16xbf16>, vector<16x8xf32> -> vector<16x8xf32>
    %118 = arith.truncf %117 : vector<16x8xf32> to vector<16x8xbf16>
    %c2_57 = arith.constant 2 : index
    %c0_58 = arith.constant 0 : index
    %c0_59 = arith.constant 0 : index
    %119 = vector.load %arg9[%c2_57, %c0_58, %c0_59] : memref<4x8x32xbf16, #tpu.memory_space<vmem>>, vector<1x8x32xbf16>
    %120 = vector.shape_cast %119 : vector<1x8x32xbf16> to vector<8x32xbf16>
    %cst_60 = arith.constant dense<0.000000e+00> : vector<16x32xf32>
    %121 = tpu.matmul %118, %120, %cst_60 {dimension_numbers = #tpu.dot_dimension_numbers<[1], [0], [0], [1], [0, 0, 1, 1], [], []>} : vector<16x8xbf16>, vector<8x32xbf16>, vector<16x32xf32> -> vector<16x32xf32>
    %122 = arith.addf %113, %121 : vector<16x32xf32>
    %123 = vector.extract_strided_slice %6 {offsets = [56, 0], sizes = [8, 16], strides = [1, 1]} : vector<64x16xf32> to vector<8x16xf32>
    %124 = arith.truncf %96 : vector<16x16xf32> to vector<16x16xbf16>
    %125 = arith.truncf %123 : vector<8x16xf32> to vector<8x16xbf16>
    %cst_61 = arith.constant dense<0.000000e+00> : vector<16x8xf32>
    %126 = tpu.matmul %124, %125, %cst_61 {dimension_numbers = #tpu.dot_dimension_numbers<[1], [1], [0], [0], [0, 0, 1, 0], [], []>} : vector<16x16xbf16>, vector<8x16xbf16>, vector<16x8xf32> -> vector<16x8xf32>
    %127 = arith.truncf %126 : vector<16x8xf32> to vector<16x8xbf16>
    %c3_62 = arith.constant 3 : index
    %c0_63 = arith.constant 0 : index
    %c0_64 = arith.constant 0 : index
    %128 = vector.load %arg9[%c3_62, %c0_63, %c0_64] : memref<4x8x32xbf16, #tpu.memory_space<vmem>>, vector<1x8x32xbf16>
    %129 = vector.shape_cast %128 : vector<1x8x32xbf16> to vector<8x32xbf16>
    %cst_65 = arith.constant dense<0.000000e+00> : vector<16x32xf32>
    %130 = tpu.matmul %127, %129, %cst_65 {dimension_numbers = #tpu.dot_dimension_numbers<[1], [0], [0], [1], [0, 0, 1, 1], [], []>} : vector<16x8xbf16>, vector<8x32xbf16>, vector<16x32xf32> -> vector<16x32xf32>
    %131 = arith.addf %122, %130 : vector<16x32xf32>
    %c0_66 = arith.constant 0 : index
    %c0_67 = arith.constant 0 : index
    %132 = vector.load %arg10[%c0_66, %c0_67] : memref<1x32xf32, #tpu.memory_space<vmem>>, vector<1x32xf32>
    %133 = vector.broadcast %132 : vector<1x32xf32> to vector<16x32xf32>
    %134 = arith.addf %131, %133 : vector<16x32xf32>
    %135 = arith.addf %134, %0 : vector<16x32xf32>
    %c0_68 = arith.constant 0 : index
    %c0_69 = arith.constant 0 : index
    %136 = vector.load %arg11[%c0_68, %c0_69] : memref<1x32xf32, #tpu.memory_space<vmem>>, vector<1x32xf32>
    %c0_70 = arith.constant 0 : index
    %c0_71 = arith.constant 0 : index
    %137 = vector.load %arg12[%c0_70, %c0_71] : memref<1x32xf32, #tpu.memory_space<vmem>>, vector<1x32xf32>
    %cst_72 = arith.constant dense<0.000000e+00> : vector<16xf32>
    %138 = vector.multi_reduction <add>, %135, %cst_72 [1] : vector<16x32xf32> to vector<16xf32>
    %139 = vector.shape_cast %138 : vector<16xf32> to vector<16x1xf32>
    %cst_73 = arith.constant 3.200000e+01 : f32
    %140 = vector.broadcast %cst_73 : f32 to vector<16x1xf32>
    %141 = arith.divf %139, %140 : vector<16x1xf32>
    %142 = vector.broadcast %141 : vector<16x1xf32> to vector<16x32xf32>
    %143 = arith.subf %135, %142 : vector<16x32xf32>
    %144 = arith.mulf %143, %143 : vector<16x32xf32>
    %cst_74 = arith.constant dense<0.000000e+00> : vector<16xf32>
    %145 = vector.multi_reduction <add>, %144, %cst_74 [1] : vector<16x32xf32> to vector<16xf32>
    %146 = vector.shape_cast %145 : vector<16xf32> to vector<16x1xf32>
    %cst_75 = arith.constant 3.200000e+01 : f32
    %147 = vector.broadcast %cst_75 : f32 to vector<16x1xf32>
    %148 = arith.divf %146, %147 : vector<16x1xf32>
    %149 = vector.broadcast %141 : vector<16x1xf32> to vector<16x32xf32>
    %150 = arith.subf %135, %149 : vector<16x32xf32>
    %cst_76 = arith.constant 9.99999974E-6 : f32
    %151 = vector.broadcast %cst_76 : f32 to vector<16x1xf32>
    %152 = arith.addf %148, %151 : vector<16x1xf32>
    %153 = math.rsqrt %152 : vector<16x1xf32>
    %154 = vector.broadcast %153 : vector<16x1xf32> to vector<16x32xf32>
    %155 = arith.mulf %150, %154 : vector<16x32xf32>
    %156 = vector.broadcast %136 : vector<1x32xf32> to vector<16x32xf32>
    %157 = arith.mulf %155, %156 : vector<16x32xf32>
    %158 = vector.broadcast %137 : vector<1x32xf32> to vector<16x32xf32>
    %159 = arith.addf %157, %158 : vector<16x32xf32>
    %c0_77 = arith.constant 0 : index
    %c0_78 = arith.constant 0 : index
    %160 = vector.load %arg15[%c0_77, %c0_78] : memref<64x32xbf16, #tpu.memory_space<vmem>>, vector<64x32xbf16>
    %c0_79 = arith.constant 0 : index
    %c0_80 = arith.constant 0 : index
    %161 = vector.load %arg2[%c0_79, %c0_80] : memref<32x16xbf16, #tpu.memory_space<vmem>>, vector<32x16xbf16>
    %cst_81 = arith.constant dense<0.000000e+00> : vector<64x16xf32>
    %162 = tpu.matmul %160, %161, %cst_81 {dimension_numbers = #tpu.dot_dimension_numbers<[1], [0], [0], [1], [0, 0, 1, 1], [], []>} : vector<64x32xbf16>, vector<32x16xbf16>, vector<64x16xf32> -> vector<64x16xf32>
    %c0_82 = arith.constant 0 : index
    %c0_83 = arith.constant 0 : index
    %163 = vector.load %arg16[%c0_82, %c0_83] : memref<64x1xf32, #tpu.memory_space<vmem>>, vector<64x1xf32>
    %164 = vector.broadcast %163 : vector<64x1xf32> to vector<64x16xf32>
    %165 = arith.addf %162, %164 : vector<64x16xf32>
    %166 = arith.truncf %159 : vector<16x32xf32> to vector<16x32xbf16>
    %c0_84 = arith.constant 0 : index
    %c0_85 = arith.constant 0 : index
    %167 = vector.load %arg4[%c0_84, %c0_85] : memref<16x16xf32, #tpu.memory_space<vmem>>, vector<16x16xf32>
    %c0_86 = arith.constant 0 : index
    %c0_87 = arith.constant 0 : index
    %c0_88 = arith.constant 0 : index
    %168 = vector.load %arg13[%c0_86, %c0_87, %c0_88] : memref<4x32x8xbf16, #tpu.memory_space<vmem>>, vector<1x32x8xbf16>
    %169 = vector.shape_cast %168 : vector<1x32x8xbf16> to vector<32x8xbf16>
    %cst_89 = arith.constant dense<0.000000e+00> : vector<16x8xf32>
    %170 = tpu.matmul %166, %169, %cst_89 {dimension_numbers = #tpu.dot_dimension_numbers<[1], [0], [0], [1], [0, 0, 1, 1], [], []>} : vector<16x32xbf16>, vector<32x8xbf16>, vector<16x8xf32> -> vector<16x8xf32>
    %c0_90 = arith.constant 0 : index
    %c0_91 = arith.constant 0 : index
    %c0_92 = arith.constant 0 : index
    %171 = vector.load %arg14[%c0_90, %c0_91, %c0_92] : memref<4x1x8xf32, #tpu.memory_space<vmem>>, vector<1x1x8xf32>
    %172 = vector.shape_cast %171 : vector<1x1x8xf32> to vector<1x8xf32>
    %173 = vector.broadcast %172 : vector<1x8xf32> to vector<16x8xf32>
    %174 = arith.addf %170, %173 : vector<16x8xf32>
    %175 = vector.extract_strided_slice %165 {offsets = [0, 0], sizes = [8, 16], strides = [1, 1]} : vector<64x16xf32> to vector<8x16xf32>
    %176 = arith.truncf %174 : vector<16x8xf32> to vector<16x8xbf16>
    %177 = arith.truncf %175 : vector<8x16xf32> to vector<8x16xbf16>
    %cst_93 = arith.constant dense<0.000000e+00> : vector<16x16xf32>
    %178 = tpu.matmul %176, %177, %cst_93 {dimension_numbers = #tpu.dot_dimension_numbers<[1], [0], [0], [1], [0, 0, 1, 1], [], []>} : vector<16x8xbf16>, vector<8x16xbf16>, vector<16x16xf32> -> vector<16x16xf32>
    %179 = arith.addf %178, %167 : vector<16x16xf32>
    %c1_94 = arith.constant 1 : index
    %c0_95 = arith.constant 0 : index
    %c0_96 = arith.constant 0 : index
    %180 = vector.load %arg13[%c1_94, %c0_95, %c0_96] : memref<4x32x8xbf16, #tpu.memory_space<vmem>>, vector<1x32x8xbf16>
    %181 = vector.shape_cast %180 : vector<1x32x8xbf16> to vector<32x8xbf16>
    %cst_97 = arith.constant dense<0.000000e+00> : vector<16x8xf32>
    %182 = tpu.matmul %166, %181, %cst_97 {dimension_numbers = #tpu.dot_dimension_numbers<[1], [0], [0], [1], [0, 0, 1, 1], [], []>} : vector<16x32xbf16>, vector<32x8xbf16>, vector<16x8xf32> -> vector<16x8xf32>
    %c1_98 = arith.constant 1 : index
    %c0_99 = arith.constant 0 : index
    %c0_100 = arith.constant 0 : index
    %183 = vector.load %arg14[%c1_98, %c0_99, %c0_100] : memref<4x1x8xf32, #tpu.memory_space<vmem>>, vector<1x1x8xf32>
    %184 = vector.shape_cast %183 : vector<1x1x8xf32> to vector<1x8xf32>
    %185 = vector.broadcast %184 : vector<1x8xf32> to vector<16x8xf32>
    %186 = arith.addf %182, %185 : vector<16x8xf32>
    %187 = vector.extract_strided_slice %165 {offsets = [8, 0], sizes = [8, 16], strides = [1, 1]} : vector<64x16xf32> to vector<8x16xf32>
    %188 = arith.truncf %186 : vector<16x8xf32> to vector<16x8xbf16>
    %189 = arith.truncf %187 : vector<8x16xf32> to vector<8x16xbf16>
    %cst_101 = arith.constant dense<0.000000e+00> : vector<16x16xf32>
    %190 = tpu.matmul %188, %189, %cst_101 {dimension_numbers = #tpu.dot_dimension_numbers<[1], [0], [0], [1], [0, 0, 1, 1], [], []>} : vector<16x8xbf16>, vector<8x16xbf16>, vector<16x16xf32> -> vector<16x16xf32>
    %191 = arith.addf %190, %167 : vector<16x16xf32>
    %c2_102 = arith.constant 2 : index
    %c0_103 = arith.constant 0 : index
    %c0_104 = arith.constant 0 : index
    %192 = vector.load %arg13[%c2_102, %c0_103, %c0_104] : memref<4x32x8xbf16, #tpu.memory_space<vmem>>, vector<1x32x8xbf16>
    %193 = vector.shape_cast %192 : vector<1x32x8xbf16> to vector<32x8xbf16>
    %cst_105 = arith.constant dense<0.000000e+00> : vector<16x8xf32>
    %194 = tpu.matmul %166, %193, %cst_105 {dimension_numbers = #tpu.dot_dimension_numbers<[1], [0], [0], [1], [0, 0, 1, 1], [], []>} : vector<16x32xbf16>, vector<32x8xbf16>, vector<16x8xf32> -> vector<16x8xf32>
    %c2_106 = arith.constant 2 : index
    %c0_107 = arith.constant 0 : index
    %c0_108 = arith.constant 0 : index
    %195 = vector.load %arg14[%c2_106, %c0_107, %c0_108] : memref<4x1x8xf32, #tpu.memory_space<vmem>>, vector<1x1x8xf32>
    %196 = vector.shape_cast %195 : vector<1x1x8xf32> to vector<1x8xf32>
    %197 = vector.broadcast %196 : vector<1x8xf32> to vector<16x8xf32>
    %198 = arith.addf %194, %197 : vector<16x8xf32>
    %199 = vector.extract_strided_slice %165 {offsets = [16, 0], sizes = [8, 16], strides = [1, 1]} : vector<64x16xf32> to vector<8x16xf32>
    %200 = arith.truncf %198 : vector<16x8xf32> to vector<16x8xbf16>
    %201 = arith.truncf %199 : vector<8x16xf32> to vector<8x16xbf16>
    %cst_109 = arith.constant dense<0.000000e+00> : vector<16x16xf32>
    %202 = tpu.matmul %200, %201, %cst_109 {dimension_numbers = #tpu.dot_dimension_numbers<[1], [0], [0], [1], [0, 0, 1, 1], [], []>} : vector<16x8xbf16>, vector<8x16xbf16>, vector<16x16xf32> -> vector<16x16xf32>
    %203 = arith.addf %202, %167 : vector<16x16xf32>
    %c3_110 = arith.constant 3 : index
    %c0_111 = arith.constant 0 : index
    %c0_112 = arith.constant 0 : index
    %204 = vector.load %arg13[%c3_110, %c0_111, %c0_112] : memref<4x32x8xbf16, #tpu.memory_space<vmem>>, vector<1x32x8xbf16>
    %205 = vector.shape_cast %204 : vector<1x32x8xbf16> to vector<32x8xbf16>
    %cst_113 = arith.constant dense<0.000000e+00> : vector<16x8xf32>
    %206 = tpu.matmul %166, %205, %cst_113 {dimension_numbers = #tpu.dot_dimension_numbers<[1], [0], [0], [1], [0, 0, 1, 1], [], []>} : vector<16x32xbf16>, vector<32x8xbf16>, vector<16x8xf32> -> vector<16x8xf32>
    %c3_114 = arith.constant 3 : index
    %c0_115 = arith.constant 0 : index
    %c0_116 = arith.constant 0 : index
    %207 = vector.load %arg14[%c3_114, %c0_115, %c0_116] : memref<4x1x8xf32, #tpu.memory_space<vmem>>, vector<1x1x8xf32>
    %208 = vector.shape_cast %207 : vector<1x1x8xf32> to vector<1x8xf32>
    %209 = vector.broadcast %208 : vector<1x8xf32> to vector<16x8xf32>
    %210 = arith.addf %206, %209 : vector<16x8xf32>
    %211 = vector.extract_strided_slice %165 {offsets = [24, 0], sizes = [8, 16], strides = [1, 1]} : vector<64x16xf32> to vector<8x16xf32>
    %212 = arith.truncf %210 : vector<16x8xf32> to vector<16x8xbf16>
    %213 = arith.truncf %211 : vector<8x16xf32> to vector<8x16xbf16>
    %cst_117 = arith.constant dense<0.000000e+00> : vector<16x16xf32>
    %214 = tpu.matmul %212, %213, %cst_117 {dimension_numbers = #tpu.dot_dimension_numbers<[1], [0], [0], [1], [0, 0, 1, 1], [], []>} : vector<16x8xbf16>, vector<8x16xbf16>, vector<16x16xf32> -> vector<16x16xf32>
    %215 = arith.addf %214, %167 : vector<16x16xf32>
    %cst_118 = arith.constant dense<0xFF800000> : vector<16xf32>
    %216 = vector.multi_reduction <maximumf>, %179, %cst_118 [1] : vector<16x16xf32> to vector<16xf32>
    %217 = vector.shape_cast %216 : vector<16xf32> to vector<16x1xf32>
    %218 = vector.broadcast %217 : vector<16x1xf32> to vector<16x16xf32>
    %219 = arith.subf %179, %218 : vector<16x16xf32>
    %220 = math.exp %219 : vector<16x16xf32>
    %cst_119 = arith.constant dense<0.000000e+00> : vector<16xf32>
    %221 = vector.multi_reduction <add>, %220, %cst_119 [1] : vector<16x16xf32> to vector<16xf32>
    %222 = vector.shape_cast %221 : vector<16xf32> to vector<16x1xf32>
    %223 = tpu.reciprocal %222 {approx = true} : vector<16x1xf32> -> vector<16x1xf32>
    %224 = vector.broadcast %223 : vector<16x1xf32> to vector<16x16xf32>
    %225 = arith.mulf %220, %224 : vector<16x16xf32>
    %cst_120 = arith.constant dense<0xFF800000> : vector<16xf32>
    %226 = vector.multi_reduction <maximumf>, %191, %cst_120 [1] : vector<16x16xf32> to vector<16xf32>
    %227 = vector.shape_cast %226 : vector<16xf32> to vector<16x1xf32>
    %228 = vector.broadcast %227 : vector<16x1xf32> to vector<16x16xf32>
    %229 = arith.subf %191, %228 : vector<16x16xf32>
    %230 = math.exp %229 : vector<16x16xf32>
    %cst_121 = arith.constant dense<0.000000e+00> : vector<16xf32>
    %231 = vector.multi_reduction <add>, %230, %cst_121 [1] : vector<16x16xf32> to vector<16xf32>
    %232 = vector.shape_cast %231 : vector<16xf32> to vector<16x1xf32>
    %233 = tpu.reciprocal %232 {approx = true} : vector<16x1xf32> -> vector<16x1xf32>
    %234 = vector.broadcast %233 : vector<16x1xf32> to vector<16x16xf32>
    %235 = arith.mulf %230, %234 : vector<16x16xf32>
    %cst_122 = arith.constant dense<0xFF800000> : vector<16xf32>
    %236 = vector.multi_reduction <maximumf>, %203, %cst_122 [1] : vector<16x16xf32> to vector<16xf32>
    %237 = vector.shape_cast %236 : vector<16xf32> to vector<16x1xf32>
    %238 = vector.broadcast %237 : vector<16x1xf32> to vector<16x16xf32>
    %239 = arith.subf %203, %238 : vector<16x16xf32>
    %240 = math.exp %239 : vector<16x16xf32>
    %cst_123 = arith.constant dense<0.000000e+00> : vector<16xf32>
    %241 = vector.multi_reduction <add>, %240, %cst_123 [1] : vector<16x16xf32> to vector<16xf32>
    %242 = vector.shape_cast %241 : vector<16xf32> to vector<16x1xf32>
    %243 = tpu.reciprocal %242 {approx = true} : vector<16x1xf32> -> vector<16x1xf32>
    %244 = vector.broadcast %243 : vector<16x1xf32> to vector<16x16xf32>
    %245 = arith.mulf %240, %244 : vector<16x16xf32>
    %cst_124 = arith.constant dense<0xFF800000> : vector<16xf32>
    %246 = vector.multi_reduction <maximumf>, %215, %cst_124 [1] : vector<16x16xf32> to vector<16xf32>
    %247 = vector.shape_cast %246 : vector<16xf32> to vector<16x1xf32>
    %248 = vector.broadcast %247 : vector<16x1xf32> to vector<16x16xf32>
    %249 = arith.subf %215, %248 : vector<16x16xf32>
    %250 = math.exp %249 : vector<16x16xf32>
    %cst_125 = arith.constant dense<0.000000e+00> : vector<16xf32>
    %251 = vector.multi_reduction <add>, %250, %cst_125 [1] : vector<16x16xf32> to vector<16xf32>
    %252 = vector.shape_cast %251 : vector<16xf32> to vector<16x1xf32>
    %253 = tpu.reciprocal %252 {approx = true} : vector<16x1xf32> -> vector<16x1xf32>
    %254 = vector.broadcast %253 : vector<16x1xf32> to vector<16x16xf32>
    %255 = arith.mulf %250, %254 : vector<16x16xf32>
    %256 = vector.extract_strided_slice %165 {offsets = [32, 0], sizes = [8, 16], strides = [1, 1]} : vector<64x16xf32> to vector<8x16xf32>
    %257 = arith.truncf %225 : vector<16x16xf32> to vector<16x16xbf16>
    %258 = arith.truncf %256 : vector<8x16xf32> to vector<8x16xbf16>
    %cst_126 = arith.constant dense<0.000000e+00> : vector<16x8xf32>
    %259 = tpu.matmul %257, %258, %cst_126 {dimension_numbers = #tpu.dot_dimension_numbers<[1], [1], [0], [0], [0, 0, 1, 0], [], []>} : vector<16x16xbf16>, vector<8x16xbf16>, vector<16x8xf32> -> vector<16x8xf32>
    %260 = arith.truncf %259 : vector<16x8xf32> to vector<16x8xbf16>
    %c0_127 = arith.constant 0 : index
    %c0_128 = arith.constant 0 : index
    %c0_129 = arith.constant 0 : index
    %261 = vector.load %arg17[%c0_127, %c0_128, %c0_129] : memref<4x8x32xbf16, #tpu.memory_space<vmem>>, vector<1x8x32xbf16>
    %262 = vector.shape_cast %261 : vector<1x8x32xbf16> to vector<8x32xbf16>
    %cst_130 = arith.constant dense<0.000000e+00> : vector<16x32xf32>
    %263 = tpu.matmul %260, %262, %cst_130 {dimension_numbers = #tpu.dot_dimension_numbers<[1], [0], [0], [1], [0, 0, 1, 1], [], []>} : vector<16x8xbf16>, vector<8x32xbf16>, vector<16x32xf32> -> vector<16x32xf32>
    %264 = vector.extract_strided_slice %165 {offsets = [40, 0], sizes = [8, 16], strides = [1, 1]} : vector<64x16xf32> to vector<8x16xf32>
    %265 = arith.truncf %235 : vector<16x16xf32> to vector<16x16xbf16>
    %266 = arith.truncf %264 : vector<8x16xf32> to vector<8x16xbf16>
    %cst_131 = arith.constant dense<0.000000e+00> : vector<16x8xf32>
    %267 = tpu.matmul %265, %266, %cst_131 {dimension_numbers = #tpu.dot_dimension_numbers<[1], [1], [0], [0], [0, 0, 1, 0], [], []>} : vector<16x16xbf16>, vector<8x16xbf16>, vector<16x8xf32> -> vector<16x8xf32>
    %268 = arith.truncf %267 : vector<16x8xf32> to vector<16x8xbf16>
    %c1_132 = arith.constant 1 : index
    %c0_133 = arith.constant 0 : index
    %c0_134 = arith.constant 0 : index
    %269 = vector.load %arg17[%c1_132, %c0_133, %c0_134] : memref<4x8x32xbf16, #tpu.memory_space<vmem>>, vector<1x8x32xbf16>
    %270 = vector.shape_cast %269 : vector<1x8x32xbf16> to vector<8x32xbf16>
    %cst_135 = arith.constant dense<0.000000e+00> : vector<16x32xf32>
    %271 = tpu.matmul %268, %270, %cst_135 {dimension_numbers = #tpu.dot_dimension_numbers<[1], [0], [0], [1], [0, 0, 1, 1], [], []>} : vector<16x8xbf16>, vector<8x32xbf16>, vector<16x32xf32> -> vector<16x32xf32>
    %272 = arith.addf %263, %271 : vector<16x32xf32>
    %273 = vector.extract_strided_slice %165 {offsets = [48, 0], sizes = [8, 16], strides = [1, 1]} : vector<64x16xf32> to vector<8x16xf32>
    %274 = arith.truncf %245 : vector<16x16xf32> to vector<16x16xbf16>
    %275 = arith.truncf %273 : vector<8x16xf32> to vector<8x16xbf16>
    %cst_136 = arith.constant dense<0.000000e+00> : vector<16x8xf32>
    %276 = tpu.matmul %274, %275, %cst_136 {dimension_numbers = #tpu.dot_dimension_numbers<[1], [1], [0], [0], [0, 0, 1, 0], [], []>} : vector<16x16xbf16>, vector<8x16xbf16>, vector<16x8xf32> -> vector<16x8xf32>
    %277 = arith.truncf %276 : vector<16x8xf32> to vector<16x8xbf16>
    %c2_137 = arith.constant 2 : index
    %c0_138 = arith.constant 0 : index
    %c0_139 = arith.constant 0 : index
    %278 = vector.load %arg17[%c2_137, %c0_138, %c0_139] : memref<4x8x32xbf16, #tpu.memory_space<vmem>>, vector<1x8x32xbf16>
    %279 = vector.shape_cast %278 : vector<1x8x32xbf16> to vector<8x32xbf16>
    %cst_140 = arith.constant dense<0.000000e+00> : vector<16x32xf32>
    %280 = tpu.matmul %277, %279, %cst_140 {dimension_numbers = #tpu.dot_dimension_numbers<[1], [0], [0], [1], [0, 0, 1, 1], [], []>} : vector<16x8xbf16>, vector<8x32xbf16>, vector<16x32xf32> -> vector<16x32xf32>
    %281 = arith.addf %272, %280 : vector<16x32xf32>
    %282 = vector.extract_strided_slice %165 {offsets = [56, 0], sizes = [8, 16], strides = [1, 1]} : vector<64x16xf32> to vector<8x16xf32>
    %283 = arith.truncf %255 : vector<16x16xf32> to vector<16x16xbf16>
    %284 = arith.truncf %282 : vector<8x16xf32> to vector<8x16xbf16>
    %cst_141 = arith.constant dense<0.000000e+00> : vector<16x8xf32>
    %285 = tpu.matmul %283, %284, %cst_141 {dimension_numbers = #tpu.dot_dimension_numbers<[1], [1], [0], [0], [0, 0, 1, 0], [], []>} : vector<16x16xbf16>, vector<8x16xbf16>, vector<16x8xf32> -> vector<16x8xf32>
    %286 = arith.truncf %285 : vector<16x8xf32> to vector<16x8xbf16>
    %c3_142 = arith.constant 3 : index
    %c0_143 = arith.constant 0 : index
    %c0_144 = arith.constant 0 : index
    %287 = vector.load %arg17[%c3_142, %c0_143, %c0_144] : memref<4x8x32xbf16, #tpu.memory_space<vmem>>, vector<1x8x32xbf16>
    %288 = vector.shape_cast %287 : vector<1x8x32xbf16> to vector<8x32xbf16>
    %cst_145 = arith.constant dense<0.000000e+00> : vector<16x32xf32>
    %289 = tpu.matmul %286, %288, %cst_145 {dimension_numbers = #tpu.dot_dimension_numbers<[1], [0], [0], [1], [0, 0, 1, 1], [], []>} : vector<16x8xbf16>, vector<8x32xbf16>, vector<16x32xf32> -> vector<16x32xf32>
    %290 = arith.addf %281, %289 : vector<16x32xf32>
    %c0_146 = arith.constant 0 : index
    %c0_147 = arith.constant 0 : index
    %291 = vector.load %arg18[%c0_146, %c0_147] : memref<1x32xf32, #tpu.memory_space<vmem>>, vector<1x32xf32>
    %292 = vector.broadcast %291 : vector<1x32xf32> to vector<16x32xf32>
    %293 = arith.addf %290, %292 : vector<16x32xf32>
    %294 = arith.addf %293, %159 : vector<16x32xf32>
    %c0_148 = arith.constant 0 : index
    %c0_149 = arith.constant 0 : index
    %295 = vector.load %arg19[%c0_148, %c0_149] : memref<1x32xf32, #tpu.memory_space<vmem>>, vector<1x32xf32>
    %c0_150 = arith.constant 0 : index
    %c0_151 = arith.constant 0 : index
    %296 = vector.load %arg20[%c0_150, %c0_151] : memref<1x32xf32, #tpu.memory_space<vmem>>, vector<1x32xf32>
    %cst_152 = arith.constant dense<0.000000e+00> : vector<16xf32>
    %297 = vector.multi_reduction <add>, %294, %cst_152 [1] : vector<16x32xf32> to vector<16xf32>
    %298 = vector.shape_cast %297 : vector<16xf32> to vector<16x1xf32>
    %cst_153 = arith.constant 3.200000e+01 : f32
    %299 = vector.broadcast %cst_153 : f32 to vector<16x1xf32>
    %300 = arith.divf %298, %299 : vector<16x1xf32>
    %301 = vector.broadcast %300 : vector<16x1xf32> to vector<16x32xf32>
    %302 = arith.subf %294, %301 : vector<16x32xf32>
    %303 = arith.mulf %302, %302 : vector<16x32xf32>
    %cst_154 = arith.constant dense<0.000000e+00> : vector<16xf32>
    %304 = vector.multi_reduction <add>, %303, %cst_154 [1] : vector<16x32xf32> to vector<16xf32>
    %305 = vector.shape_cast %304 : vector<16xf32> to vector<16x1xf32>
    %cst_155 = arith.constant 3.200000e+01 : f32
    %306 = vector.broadcast %cst_155 : f32 to vector<16x1xf32>
    %307 = arith.divf %305, %306 : vector<16x1xf32>
    %308 = vector.broadcast %300 : vector<16x1xf32> to vector<16x32xf32>
    %309 = arith.subf %294, %308 : vector<16x32xf32>
    %cst_156 = arith.constant 9.99999974E-6 : f32
    %310 = vector.broadcast %cst_156 : f32 to vector<16x1xf32>
    %311 = arith.addf %307, %310 : vector<16x1xf32>
    %312 = math.rsqrt %311 : vector<16x1xf32>
    %313 = vector.broadcast %312 : vector<16x1xf32> to vector<16x32xf32>
    %314 = arith.mulf %309, %313 : vector<16x32xf32>
    %315 = vector.broadcast %295 : vector<1x32xf32> to vector<16x32xf32>
    %316 = arith.mulf %314, %315 : vector<16x32xf32>
    %317 = vector.broadcast %296 : vector<1x32xf32> to vector<16x32xf32>
    %318 = arith.addf %316, %317 : vector<16x32xf32>
    %319 = arith.truncf %318 : vector<16x32xf32> to vector<16x32xbf16>
    %c0_157 = arith.constant 0 : index
    %c0_158 = arith.constant 0 : index
    %320 = vector.load %arg21[%c0_157, %c0_158] : memref<32x64xbf16, #tpu.memory_space<vmem>>, vector<32x64xbf16>
    %cst_159 = arith.constant dense<0.000000e+00> : vector<16x64xf32>
    %321 = tpu.matmul %319, %320, %cst_159 {dimension_numbers = #tpu.dot_dimension_numbers<[1], [0], [0], [1], [0, 0, 1, 1], [], []>} : vector<16x32xbf16>, vector<32x64xbf16>, vector<16x64xf32> -> vector<16x64xf32>
    %c0_160 = arith.constant 0 : index
    %c0_161 = arith.constant 0 : index
    %322 = vector.load %arg22[%c0_160, %c0_161] : memref<1x64xf32, #tpu.memory_space<vmem>>, vector<1x64xf32>
    %323 = vector.broadcast %322 : vector<1x64xf32> to vector<16x64xf32>
    %324 = arith.addf %321, %323 : vector<16x64xf32>
    %cst_162 = arith.constant 0.000000e+00 : f32
    %325 = vector.broadcast %cst_162 : f32 to vector<16x64xf32>
    %326 = arith.maximumf %324, %325 : vector<16x64xf32>
    %327 = arith.truncf %326 : vector<16x64xf32> to vector<16x64xbf16>
    %c0_163 = arith.constant 0 : index
    %c0_164 = arith.constant 0 : index
    %328 = vector.load %arg23[%c0_163, %c0_164] : memref<64x32xbf16, #tpu.memory_space<vmem>>, vector<64x32xbf16>
    %cst_165 = arith.constant dense<0.000000e+00> : vector<16x32xf32>
    %329 = tpu.matmul %327, %328, %cst_165 {dimension_numbers = #tpu.dot_dimension_numbers<[1], [0], [0], [1], [0, 0, 1, 1], [], []>} : vector<16x64xbf16>, vector<64x32xbf16>, vector<16x32xf32> -> vector<16x32xf32>
    %c0_166 = arith.constant 0 : index
    %c0_167 = arith.constant 0 : index
    %330 = vector.load %arg24[%c0_166, %c0_167] : memref<1x32xf32, #tpu.memory_space<vmem>>, vector<1x32xf32>
    %331 = vector.broadcast %330 : vector<1x32xf32> to vector<16x32xf32>
    %332 = arith.addf %329, %331 : vector<16x32xf32>
    %333 = arith.addf %332, %318 : vector<16x32xf32>
    %c0_168 = arith.constant 0 : index
    %c0_169 = arith.constant 0 : index
    %334 = vector.load %arg25[%c0_168, %c0_169] : memref<1x32xf32, #tpu.memory_space<vmem>>, vector<1x32xf32>
    %c0_170 = arith.constant 0 : index
    %c0_171 = arith.constant 0 : index
    %335 = vector.load %arg26[%c0_170, %c0_171] : memref<1x32xf32, #tpu.memory_space<vmem>>, vector<1x32xf32>
    %cst_172 = arith.constant dense<0.000000e+00> : vector<16xf32>
    %336 = vector.multi_reduction <add>, %333, %cst_172 [1] : vector<16x32xf32> to vector<16xf32>
    %337 = vector.shape_cast %336 : vector<16xf32> to vector<16x1xf32>
    %cst_173 = arith.constant 3.200000e+01 : f32
    %338 = vector.broadcast %cst_173 : f32 to vector<16x1xf32>
    %339 = arith.divf %337, %338 : vector<16x1xf32>
    %340 = vector.broadcast %339 : vector<16x1xf32> to vector<16x32xf32>
    %341 = arith.subf %333, %340 : vector<16x32xf32>
    %342 = arith.mulf %341, %341 : vector<16x32xf32>
    %cst_174 = arith.constant dense<0.000000e+00> : vector<16xf32>
    %343 = vector.multi_reduction <add>, %342, %cst_174 [1] : vector<16x32xf32> to vector<16xf32>
    %344 = vector.shape_cast %343 : vector<16xf32> to vector<16x1xf32>
    %cst_175 = arith.constant 3.200000e+01 : f32
    %345 = vector.broadcast %cst_175 : f32 to vector<16x1xf32>
    %346 = arith.divf %344, %345 : vector<16x1xf32>
    %347 = vector.broadcast %339 : vector<16x1xf32> to vector<16x32xf32>
    %348 = arith.subf %333, %347 : vector<16x32xf32>
    %cst_176 = arith.constant 9.99999974E-6 : f32
    %349 = vector.broadcast %cst_176 : f32 to vector<16x1xf32>
    %350 = arith.addf %346, %349 : vector<16x1xf32>
    %351 = math.rsqrt %350 : vector<16x1xf32>
    %352 = vector.broadcast %351 : vector<16x1xf32> to vector<16x32xf32>
    %353 = arith.mulf %348, %352 : vector<16x32xf32>
    %354 = vector.broadcast %334 : vector<1x32xf32> to vector<16x32xf32>
    %355 = arith.mulf %353, %354 : vector<16x32xf32>
    %356 = vector.broadcast %335 : vector<1x32xf32> to vector<16x32xf32>
    %357 = arith.addf %355, %356 : vector<16x32xf32>
    %c0_177 = arith.constant 0 : index
    %c0_178 = arith.constant 0 : index
    %358 = vector.load %arg27[%c0_177, %c0_178] : memref<16x32xf32, #tpu.memory_space<vmem>>, vector<16x32xf32>
    tpu.vector_store %arg27[%c0_177, %c0_178], %357 {strides = array<i32>} : memref<16x32xf32, #tpu.memory_space<vmem>>, vector<16x32xf32>,
    return
  }
}

</mosaic_0001>

<llo_original>
// kernel: tpu_custom_call.1
$region0: #{tpu_custom_call.1}
  #allocation0 [shape = 'u32[]', space=smem, size = 0x4, offset = 0x4, fixed_abs, tag = 'smem constant byte address 0x4 - core index']
  #allocation1 [shape = 'u32[144,128]{1,0:T(1,128)}', space=vmem, size = 0x12000, scoped, tag = 'internal scratch']
  %s0 = inlined_call_operand.vmem [shape: f32[16,32], index: 0, kind: input, shape index: {}]
  %s1 = inlined_call_operand.vmem [shape: bf16[32,16], index: 1, kind: input, shape index: {}]
  %s2 = inlined_call_operand.vmem [shape: bf16[32,16], index: 2, kind: input, shape index: {}]
  %s3 = inlined_call_operand.vmem [shape: f32[16,16], index: 3, kind: input, shape index: {}]
  %s4 = inlined_call_operand.vmem [shape: f32[16,16], index: 4, kind: input, shape index: {}]
  %s5 = inlined_call_operand.vmem [shape: bf16[4,32,8], index: 5, kind: input, shape index: {}]
  %s6 = inlined_call_operand.vmem [shape: f32[4,1,8], index: 6, kind: input, shape index: {}]
  %s7 = inlined_call_operand.vmem [shape: bf16[64,32], index: 7, kind: input, shape index: {}]
  %s8 = inlined_call_operand.vmem [shape: f32[64,1], index: 8, kind: input, shape index: {}]
  %s9 = inlined_call_operand.vmem [shape: bf16[4,8,32], index: 9, kind: input, shape index: {}]
  %s10 = inlined_call_operand.vmem [shape: f32[1,32], index: 10, kind: input, shape index: {}]
  %s11 = inlined_call_operand.vmem [shape: f32[1,32], index: 11, kind: input, shape index: {}]
  %s12 = inlined_call_operand.vmem [shape: f32[1,32], index: 12, kind: input, shape index: {}]
  %s13 = inlined_call_operand.vmem [shape: bf16[4,32,8], index: 13, kind: input, shape index: {}]
  %s14 = inlined_call_operand.vmem [shape: f32[4,1,8], index: 14, kind: input, shape index: {}]
  %s15 = inlined_call_operand.vmem [shape: bf16[64,32], index: 15, kind: input, shape index: {}]
  %s16 = inlined_call_operand.vmem [shape: f32[64,1], index: 16, kind: input, shape index: {}]
  %s17 = inlined_call_operand.vmem [shape: bf16[4,8,32], index: 17, kind: input, shape index: {}]
  %s18 = inlined_call_operand.vmem [shape: f32[1,32], index: 18, kind: input, shape index: {}]
  %s19 = inlined_call_operand.vmem [shape: f32[1,32], index: 19, kind: input, shape index: {}]
  %s20 = inlined_call_operand.vmem [shape: f32[1,32], index: 20, kind: input, shape index: {}]
  %s21 = inlined_call_operand.vmem [shape: bf16[32,64], index: 21, kind: input, shape index: {}]
  %s22 = inlined_call_operand.vmem [shape: f32[1,64], index: 22, kind: input, shape index: {}]
  %s23 = inlined_call_operand.vmem [shape: bf16[64,32], index: 23, kind: input, shape index: {}]
  %s24 = inlined_call_operand.vmem [shape: f32[1,32], index: 24, kind: input, shape index: {}]
  %s25 = inlined_call_operand.vmem [shape: f32[1,32], index: 25, kind: input, shape index: {}]
  %s26 = inlined_call_operand.vmem [shape: f32[1,32], index: 26, kind: input, shape index: {}]
  %s27 = inlined_call_operand.hbm [shape: f32[16,32], index: 27, kind: output, shape index: {}]
  %s28 = sld [smem:[#allocation0]]
  $region118: #{tpu_custom_call.1} parent=0
    _
  %s30 = ssub.s32 1, %s28
  %s31 = scalar_select 0, %s30, %s28
  $region1: #{tpu_custom_call.1} parent=0
    #allocation2 [shape = 'u8[8192]{0}', space=vmem, size = 0x2000, scoped, tag = 'output window, operand 0, single buffered']
    #allocation3 [shape = 's32[1]{0}', space=sflag, size = 0x4, scoped, tag = 'scoped memory for tpu_custom_call.1']
    %32 = vsyncpa [#allocation3], 0
    // Predicated region
    $region2: #{tpu_custom_call.1} parent=1 // pred_check
      _
    $region3: #{tpu_custom_call.1} parent=1 // pred_check_branch
      %34 = sbr.rel (0) target = $region5
    $region4: #{tpu_custom_call.1} parent=1 // pred_region
      _
    $region5: #{tpu_custom_call.1} parent=1 // pred_fallthru
      _
    // Predicated region
    $region6: #{tpu_custom_call.1} parent=1 // pred_check
      _
    $region7: #{tpu_custom_call.1} parent=1 // pred_check_branch
      %36 = sbr.rel (0) target = $region9
    $region8: #{tpu_custom_call.1} parent=1 // pred_region
      _
    $region9: #{tpu_custom_call.1} parent=1 // pred_fallthru
      _
    // Predicated region
    $region10: #{tpu_custom_call.1} parent=1 // pred_check
      _
    $region11: #{tpu_custom_call.1} parent=1 // pred_check_branch
      %38 = sbr.rel (0) target = $region13
    $region12: #{tpu_custom_call.1} parent=1 // pred_region
      _
    $region13: #{tpu_custom_call.1} parent=1 // pred_fallthru
      _
    // Predicated region
    $region14: #{tpu_custom_call.1} parent=1 // pred_check
      _
    $region15: #{tpu_custom_call.1} parent=1 // pred_check_branch
      %40 = sbr.rel (0) target = $region17
    $region16: #{tpu_custom_call.1} parent=1 // pred_region
      _
    $region17: #{tpu_custom_call.1} parent=1 // pred_fallthru
      _
    // Predicated region
    $region18: #{tpu_custom_call.1} parent=1 // pred_check
      _
    $region19: #{tpu_custom_call.1} parent=1 // pred_check_branch
      %42 = sbr.rel (0) target = $region21
    $region20: #{tpu_custom_call.1} parent=1 // pred_region
      _
    $region21: #{tpu_custom_call.1} parent=1 // pred_fallthru
      _
    // Predicated region
    $region22: #{tpu_custom_call.1} parent=1 // pred_check
      _
    $region23: #{tpu_custom_call.1} parent=1 // pred_check_branch
      %44 = sbr.rel (0) target = $region25
    $region24: #{tpu_custom_call.1} parent=1 // pred_region
      _
    $region25: #{tpu_custom_call.1} parent=1 // pred_fallthru
      _
    // Predicated region
    $region26: #{tpu_custom_call.1} parent=1 // pred_check
      _
    $region27: #{tpu_custom_call.1} parent=1 // pred_check_branch
      %46 = sbr.rel (0) target = $region29
    $region28: #{tpu_custom_call.1} parent=1 // pred_region
      _
    $region29: #{tpu_custom_call.1} parent=1 // pred_fallthru
      _
    // Predicated region
    $region30: #{tpu_custom_call.1} parent=1 // pred_check
      _
    $region31: #{tpu_custom_call.1} parent=1 // pred_check_branch
      %48 = sbr.rel (0) target = $region33
    $region32: #{tpu_custom_call.1} parent=1 // pred_region
      _
    $region33: #{tpu_custom_call.1} parent=1 // pred_fallthru
      _
    // Predicated region
    $region34: #{tpu_custom_call.1} parent=1 // pred_check
      _
    $region35: #{tpu_custom_call.1} parent=1 // pred_check_branch
      %50 = sbr.rel (0) target = $region37
    $region36: #{tpu_custom_call.1} parent=1 // pred_region
      _
    $region37: #{tpu_custom_call.1} parent=1 // pred_fallthru
      _
    // Predicated region
    $region38: #{tpu_custom_call.1} parent=1 // pred_check
      _
    $region39: #{tpu_custom_call.1} parent=1 // pred_check_branch
      %52 = sbr.rel (0) target = $region41
    $region40: #{tpu_custom_call.1} parent=1 // pred_region
      _
    $region41: #{tpu_custom_call.1} parent=1 // pred_fallthru
      _
    // Predicated region
    $region42: #{tpu_custom_call.1} parent=1 // pred_check
      _
    $region43: #{tpu_custom_call.1} parent=1 // pred_check_branch
      %54 = sbr.rel (0) target = $region45
    $region44: #{tpu_custom_call.1} parent=1 // pred_region
      _
    $region45: #{tpu_custom_call.1} parent=1 // pred_fallthru
      _
    // Predicated region
    $region46: #{tpu_custom_call.1} parent=1 // pred_check
      _
    $region47: #{tpu_custom_call.1} parent=1 // pred_check_branch
      %56 = sbr.rel (0) target = $region49
    $region48: #{tpu_custom_call.1} parent=1 // pred_region
      _
    $region49: #{tpu_custom_call.1} parent=1 // pred_fallthru
      _
    // Predicated region
    $region50: #{tpu_custom_call.1} parent=1 // pred_check
      _
    $region51: #{tpu_custom_call.1} parent=1 // pred_check_branch
      %58 = sbr.rel (0) target = $region53
    $region52: #{tpu_custom_call.1} parent=1 // pred_region
      _
    $region53: #{tpu_custom_call.1} parent=1 // pred_fallthru
      _
    // Predicated region
    $region54: #{tpu_custom_call.1} parent=1 // pred_check
      _
    $region55: #{tpu_custom_call.1} parent=1 // pred_check_branch
      %60 = sbr.rel (0) target = $region57
    $region56: #{tpu_custom_call.1} parent=1 // pred_region
      _
    $region57: #{tpu_custom_call.1} parent=1 // pred_fallthru
      _
    // Predicated region
    $region58: #{tpu_custom_call.1} parent=1 // pred_check
      _
    $region59: #{tpu_custom_call.1} parent=1 // pred_check_branch
      %62 = sbr.rel (0) target = $region61
    $region60: #{tpu_custom_call.1} parent=1 // pred_region
      _
    $region61: #{tpu_custom_call.1} parent=1 // pred_fallthru
      _
    // Predicated region
    $region62: #{tpu_custom_call.1} parent=1 // pred_check
      _
    $region63: #{tpu_custom_call.1} parent=1 // pred_check_branch
      %64 = sbr.rel (0) target = $region65
    $region64: #{tpu_custom_call.1} parent=1 // pred_region
      _
    $region65: #{tpu_custom_call.1} parent=1 // pred_fallthru
      _
    // Predicated region
    $region66: #{tpu_custom_call.1} parent=1 // pred_check
      _
    $region67: #{tpu_custom_call.1} parent=1 // pred_check_branch
      %66 = sbr.rel (0) target = $region69
    $region68: #{tpu_custom_call.1} parent=1 // pred_region
      _
    $region69: #{tpu_custom_call.1} parent=1 // pred_fallthru
      _
    // Predicated region
    $region70: #{tpu_custom_call.1} parent=1 // pred_check
      _
    $region71: #{tpu_custom_call.1} parent=1 // pred_check_branch
      %68 = sbr.rel (0) target = $region73
    $region72: #{tpu_custom_call.1} parent=1 // pred_region
      _
    $region73: #{tpu_custom_call.1} parent=1 // pred_fallthru
      _
    // Predicated region
    $region74: #{tpu_custom_call.1} parent=1 // pred_check
      _
    $region75: #{tpu_custom_call.1} parent=1 // pred_check_branch
      %70 = sbr.rel (0) target = $region77
    $region76: #{tpu_custom_call.1} parent=1 // pred_region
      _
    $region77: #{tpu_custom_call.1} parent=1 // pred_fallthru
      _
    // Predicated region
    $region78: #{tpu_custom_call.1} parent=1 // pred_check
      _
    $region79: #{tpu_custom_call.1} parent=1 // pred_check_branch
      %72 = sbr.rel (0) target = $region81
    $region80: #{tpu_custom_call.1} parent=1 // pred_region
      _
    $region81: #{tpu_custom_call.1} parent=1 // pred_fallthru
      _
    // Predicated region
    $region82: #{tpu_custom_call.1} parent=1 // pred_check
      _
    $region83: #{tpu_custom_call.1} parent=1 // pred_check_branch
      %74 = sbr.rel (0) target = $region85
    $region84: #{tpu_custom_call.1} parent=1 // pred_region
      _
    $region85: #{tpu_custom_call.1} parent=1 // pred_fallthru
      _
    // Predicated region
    $region86: #{tpu_custom_call.1} parent=1 // pred_check
      _
    $region87: #{tpu_custom_call.1} parent=1 // pred_check_branch
      %76 = sbr.rel (0) target = $region89
    $region88: #{tpu_custom_call.1} parent=1 // pred_region
      _
    $region89: #{tpu_custom_call.1} parent=1 // pred_fallthru
      _
    // Predicated region
    $region90: #{tpu_custom_call.1} parent=1 // pred_check
      _
    $region91: #{tpu_custom_call.1} parent=1 // pred_check_branch
      %78 = sbr.rel (0) target = $region93
    $region92: #{tpu_custom_call.1} parent=1 // pred_region
      _
    $region93: #{tpu_custom_call.1} parent=1 // pred_fallthru
      _
    // Predicated region
    $region94: #{tpu_custom_call.1} parent=1 // pred_check
      _
    $region95: #{tpu_custom_call.1} parent=1 // pred_check_branch
      %80 = sbr.rel (0) target = $region97
    $region96: #{tpu_custom_call.1} parent=1 // pred_region
      _
    $region97: #{tpu_custom_call.1} parent=1 // pred_fallthru
      _
    // Predicated region
    $region98: #{tpu_custom_call.1} parent=1 // pred_check
      _
    $region99: #{tpu_custom_call.1} parent=1 // pred_check_branch
      %82 = sbr.rel (0) target = $region101
    $region100: #{tpu_custom_call.1} parent=1 // pred_region
      _
    $region101: #{tpu_custom_call.1} parent=1 // pred_fallthru
      _
    // Predicated region
    $region102: #{tpu_custom_call.1} parent=1 // pred_check
      _
    $region103: #{tpu_custom_call.1} parent=1 // pred_check_branch
      %84 = sbr.rel (0) target = $region105
    $region104: #{tpu_custom_call.1} parent=1 // pred_region
      _
    $region105: #{tpu_custom_call.1} parent=1 // pred_fallthru
      _
    // Predicated region
    $region106: #{tpu_custom_call.1} parent=1 // pred_check
      _
    $region107: #{tpu_custom_call.1} parent=1 // pred_check_branch
      %86 = sbr.rel (0) target = $region109
    $region108: #{tpu_custom_call.1} parent=1 // pred_region
      _
    $region109: #{tpu_custom_call.1} parent=1 // pred_fallthru
      _
    %v88 = vld [vmem:[%s0] sm:$0xff]
    %v89 = vld [vmem:[%s0 + $0x8] sm:$0xff]
    %v90 = vld [vmem:[%s7] sm:$0xf]
    %v91 = vld [vmem:[%s7 + $0x4] sm:$0xf]
    %v92 = vld [vmem:[%s7 + $0x8] sm:$0xf]
    %v93 = vld [vmem:[%s7 + $0xc] sm:$0xf]
    %v94 = vld [vmem:[%s7 + $0x10] sm:$0xf]
    %v95 = vld [vmem:[%s7 + $0x14] sm:$0xf]
    %v96 = vld [vmem:[%s7 + $0x18] sm:$0xf]
    %v97 = vld [vmem:[%s7 + $0x1c] sm:$0xf]
    %v98 = vld [vmem:[%s1] sm:$0xf]
    %v99 = vld [vmem:[%s1 + $0x4] sm:$0xf]
    %v100 = vld [vmem:[%s1 + $0x8] sm:$0xf]
    %v101 = vld [vmem:[%s1 + $0xc] sm:$0xf]
    %v102 = vld [vmem:[%s8] sm:$0xff]
    %v103 = vld [vmem:[%s8 + $0x8] sm:$0xff]
    %v104 = vld [vmem:[%s8 + $0x10] sm:$0xff]
    %v105 = vld [vmem:[%s8 + $0x18] sm:$0xff]
    %v106 = vld [vmem:[%s8 + $0x20] sm:$0xff]
    %v107 = vld [vmem:[%s8 + $0x28] sm:$0xff]
    %v108 = vld [vmem:[%s8 + $0x30] sm:$0xff]
    %v109 = vld [vmem:[%s8 + $0x38] sm:$0xff]
    %111 = vset.pattern.permute.xlu0 0
    %112 = vperm.xlu0 %111, %v102
    %v113 = vpop.permute.xlu0 %112
    %116 = vset.pattern.permute.xlu0 0
    %117 = vperm.xlu0 %116, %v103
    %v118 = vpop.permute.xlu0 %117
    %121 = vset.pattern.permute.xlu0 0
    %122 = vperm.xlu0 %121, %v104
    %v123 = vpop.permute.xlu0 %122
    %126 = vset.pattern.permute.xlu0 0
    %127 = vperm.xlu0 %126, %v105
    %v128 = vpop.permute.xlu0 %127
    %131 = vset.pattern.permute.xlu0 0
    %132 = vperm.xlu0 %131, %v106
    %v133 = vpop.permute.xlu0 %132
    %136 = vset.pattern.permute.xlu0 0
    %137 = vperm.xlu0 %136, %v107
    %v138 = vpop.permute.xlu0 %137
    %141 = vset.pattern.permute.xlu0 0
    %142 = vperm.xlu0 %141, %v108
    %v143 = vpop.permute.xlu0 %142
    %146 = vset.pattern.permute.xlu0 0
    %147 = vperm.xlu0 %146, %v109
    %v148 = vpop.permute.xlu0 %147
    %v158 = vunpack.c.l.b16 %v90
    %v159 = vunpack.c.l.b16 %v91
    %v160 = vunpack.c.l.b16 %v92
    %v161 = vunpack.c.l.b16 %v93
    %v162 = vunpack.c.l.b16 %v94
    %v163 = vunpack.c.l.b16 %v95
    %v164 = vunpack.c.l.b16 %v96
    %v165 = vunpack.c.l.b16 %v97
    %v166 = vpack.c.b16 %v159, %v158
    %v167 = vpack.c.b16 %v161, %v160
    %v168 = vpack.c.b16 %v163, %v162
    %v169 = vpack.c.b16 %v165, %v164
    %v174 = vunpack.c.l.b16 %v98
    %v175 = vunpack.c.l.b16 %v99
    %v176 = vunpack.c.l.b16 %v100
    %v177 = vunpack.c.l.b16 %v101
    %v178 = vpack.c.b16 %v175, %v174
    %v179 = vpack.c.b16 %v177, %v176
    %vm182 = vcmask 261120
    %v184 = vsel %vm182, %v166, 0
    %v187 = vsel %vm182, %v167, 0
    %v190 = vsel %vm182, %v168, 0
    %v193 = vsel %vm182, %v169, 0
    %195 = vmatprep.subr.bf16.mxu0 0
    %196 = vmatpush1.bf16.msra.mxu0 %v178
    %197 = vmatprep.subr.bf16.mxu0 0
    %198 = vmatpush1.bf16.msra.mxu0 %v179
    %199 = vmatprep.subr.bf16.mxu0 0
    %200 = vmatpush1.bf16.msra.mxu0 0
    %201 = vmatprep.subr.bf16.mxu0 0
    %202 = vmatpush1.bf16.msra.mxu0 0
    %203 = vmatprep.subr.bf16.mxu0 0
    %204 = vmatpush1.bf16.msra.mxu0 0
    %205 = vmatprep.subr.bf16.mxu0 0
    %206 = vmatpush1.bf16.msra.mxu0 0
    %207 = vmatprep.subr.bf16.mxu0 0
    %208 = vmatpush1.bf16.msra.mxu0 0
    %209 = vmatprep.subr.bf16.mxu0 0
    %210 = vmatpush1.bf16.msra.mxu0 0
    %211 = vmatprep.subr.bf16.mxu0 0
    %212 = vmatpush1.bf16.msra.mxu0 0
    %213 = vmatprep.subr.bf16.mxu0 0
    %214 = vmatpush1.bf16.msra.mxu0 0
    %215 = vmatprep.subr.bf16.mxu0 0
    %216 = vmatpush1.bf16.msra.mxu0 0
    %217 = vmatprep.subr.bf16.mxu0 0
    %218 = vmatpush1.bf16.msra.mxu0 0
    %219 = vmatprep.subr.bf16.mxu0 0
    %220 = vmatpush1.bf16.msra.mxu0 0
    %221 = vmatprep.subr.bf16.mxu0 0
    %222 = vmatpush1.bf16.msra.mxu0 0
    %223 = vmatprep.subr.bf16.mxu0 0
    %224 = vmatpush1.bf16.msra.mxu0 0
    %225 = vmatprep.subr.bf16.mxu0 0
    %226 = vmatpush1.bf16.msra.mxu0 0
    %227 = vmatprep.mubr.bf16.mxu0 0
    %228 = vmatmul.mubr.bf16.gmra.mrb[0].mxu0 %v184
    %v229 = vpop.f32.mrb[0].mxu0
    %v230 = vadd.f32 %v113, %v229
    %v231 = vpop.f32.mrb[0].mxu0
    %v232 = vpop.f32.mrb[0].mxu0
    %v233 = vadd.f32 %v118, %v232
    %v234 = vpop.f32.mrb[0].mxu0
    %235 = vmatprep.mubr.bf16.mxu0 0
    %236 = vmatmul.mubr.bf16.gmra.mrb[0].mxu0 %v187
    %v237 = vpop.f32.mrb[0].mxu0
    %v238 = vadd.f32 %v123, %v237
    %v239 = vpop.f32.mrb[0].mxu0
    %v240 = vpop.f32.mrb[0].mxu0
    %v241 = vadd.f32 %v128, %v240
    %v242 = vpop.f32.mrb[0].mxu0
    %243 = vmatprep.mubr.bf16.mxu0 0
    %244 = vmatmul.mubr.bf16.gmra.mrb[0].mxu0 %v190
    %v245 = vpop.f32.mrb[0].mxu0
    %v246 = vadd.f32 %v133, %v245
    %v247 = vpop.f32.mrb[0].mxu0
    %v248 = vpop.f32.mrb[0].mxu0
    %v249 = vadd.f32 %v138, %v248
    %v250 = vpop.f32.mrb[0].mxu0
    %251 = vmatprep.mubr.bf16.mxu0 0
    %252 = vmatmul.mubr.bf16.gmra.mrb[0].mxu0 %v193
    %v253 = vpop.f32.mrb[0].mxu0
    %v254 = vadd.f32 %v143, %v253
    %v255 = vpop.f32.mrb[0].mxu0
    %v256 = vpop.f32.mrb[0].mxu0
    %v257 = vadd.f32 %v148, %v256
    %v258 = vpop.f32.mrb[0].mxu0
    %259 = vdwg.mxu0
    %v260 = vpack.c.bf16 %v89, %v88
    %v261 = vld [vmem:[%s3] sm:$0xff]
    %v262 = vld [vmem:[%s3 + $0x8] sm:$0xff]
    %v263 = vld [vmem:[%s5] sm:$0xf]
    %v264 = vld [vmem:[%s5 + $0x4] sm:$0xf]
    %v265 = vld [vmem:[%s5 + $0x8] sm:$0xf]
    %v266 = vld [vmem:[%s5 + $0xc] sm:$0xf]
    %v267 = vld [vmem:[%s6] sm:$0x1]
    %v269 = vlaneseq
    %v270 = vshrl.u32 %v269, 7
    %v271 = vsub.s32 0, %v270
    %v272 = vrot.slane %v267, %v271
    %v278 = vunpack.c.l.b16 %v263
    %v279 = vunpack.c.l.b16 %v264
    %v280 = vunpack.c.l.b16 %v265
    %v281 = vunpack.c.l.b16 %v266
    %v282 = vpack.c.b16 %v279, %v278
    %v283 = vpack.c.b16 %v281, %v280
    %v287 = vsel %vm182, %v260, 0
    %289 = vmatprep.subr.bf16.mxu0 0
    %290 = vmatpush1.bf16.msra.mxu0 %v282
    %291 = vmatprep.subr.bf16.mxu0 0
    %292 = vmatpush1.bf16.msra.mxu0 %v283
    %293 = vmatprep.subr.bf16.mxu0 0
    %294 = vmatpush1.bf16.msra.mxu0 0
    %295 = vmatprep.subr.bf16.mxu0 0
    %296 = vmatpush1.bf16.msra.mxu0 0
    %297 = vmatprep.subr.bf16.mxu0 0
    %298 = vmatpush1.bf16.msra.mxu0 0
    %299 = vmatprep.subr.bf16.mxu0 0
    %300 = vmatpush1.bf16.msra.mxu0 0
    %301 = vmatprep.subr.bf16.mxu0 0
    %302 = vmatpush1.bf16.msra.mxu0 0
    %303 = vmatprep.subr.bf16.mxu0 0
    %304 = vmatpush1.bf16.msra.mxu0 0
    %305 = vmatprep.subr.bf16.mxu0 0
    %306 = vmatpush1.bf16.msra.mxu0 0
    %307 = vmatprep.subr.bf16.mxu0 0
    %308 = vmatpush1.bf16.msra.mxu0 0
    %309 = vmatprep.subr.bf16.mxu0 0
    %310 = vmatpush1.bf16.msra.mxu0 0
    %311 = vmatprep.subr.bf16.mxu0 0
    %312 = vmatpush1.bf16.msra.mxu0 0
    %313 = vmatprep.subr.bf16.mxu0 0
    %314 = vmatpush1.bf16.msra.mxu0 0
    %315 = vmatprep.subr.bf16.mxu0 0
    %316 = vmatpush1.bf16.msra.mxu0 0
    %317 = vmatprep.subr.bf16.mxu0 0
    %318 = vmatpush1.bf16.msra.mxu0 0
    %319 = vmatprep.subr.bf16.mxu0 0
    %320 = vmatpush1.bf16.msra.mxu0 0
    %321 = vmatprep.mubr.bf16.mxu0 0
    %322 = vmatmul.mubr.bf16.gmra.mrb[0].mxu0 %v287
    %v323 = vpop.f32.mrb[0].mxu0
    %v324 = vadd.f32 %v272, %v323
    %v325 = vpop.f32.mrb[0].mxu0
    %v326 = vpop.f32.mrb[0].mxu0
    %v327 = vadd.f32 %v272, %v326
    %v328 = vpop.f32.mrb[0].mxu0
    %329 = vdwg.mxu0
    %v330 = vpack.c.bf16 %v327, %v324
    %v331 = vpack.c.bf16 %v230, %v230
    %vm332 = vcmask 64512
    %v334 = vsel %vm332, %v330, 0
    %vm336 = vcmask 1043456
    %v338 = vsel %vm336, %v331, 0
    %340 = vmatprep.subr.bf16.mxu0 0
    %341 = vmatpush1.bf16.msra.mxu0 %v338
    %342 = vmatprep.subr.bf16.mxu0 0
    %343 = vmatpush1.bf16.msra.mxu0 0
    %344 = vmatprep.subr.bf16.mxu0 0
    %345 = vmatpush1.bf16.msra.mxu0 0
    %346 = vmatprep.subr.bf16.mxu0 0
    %347 = vmatpush1.bf16.msra.mxu0 0
    %348 = vmatprep.subr.bf16.mxu0 0
    %349 = vmatpush1.bf16.msra.mxu0 0
    %350 = vmatprep.subr.bf16.mxu0 0
    %351 = vmatpush1.bf16.msra.mxu0 0
    %352 = vmatprep.subr.bf16.mxu0 0
    %353 = vmatpush1.bf16.msra.mxu0 0
    %354 = vmatprep.subr.bf16.mxu0 0
    %355 = vmatpush1.bf16.msra.mxu0 0
    %356 = vmatprep.subr.bf16.mxu0 0
    %357 = vmatpush1.bf16.msra.mxu0 0
    %358 = vmatprep.subr.bf16.mxu0 0
    %359 = vmatpush1.bf16.msra.mxu0 0
    %360 = vmatprep.subr.bf16.mxu0 0
    %361 = vmatpush1.bf16.msra.mxu0 0
    %362 = vmatprep.subr.bf16.mxu0 0
    %363 = vmatpush1.bf16.msra.mxu0 0
    %364 = vmatprep.subr.bf16.mxu0 0
    %365 = vmatpush1.bf16.msra.mxu0 0
    %366 = vmatprep.subr.bf16.mxu0 0
    %367 = vmatpush1.bf16.msra.mxu0 0
    %368 = vmatprep.subr.bf16.mxu0 0
    %369 = vmatpush1.bf16.msra.mxu0 0
    %370 = vmatprep.subr.bf16.mxu0 0
    %371 = vmatpush1.bf16.msra.mxu0 0
    %372 = vmatprep.mubr.bf16.mxu0 0
    %373 = vmatmul.mubr.bf16.gmra.mrb[0].mxu0 %v334
    %v374 = vpop.f32.mrb[0].mxu0
    %v375 = vadd.f32 %v261, %v374
    %v376 = vpop.f32.mrb[0].mxu0
    %v377 = vpop.f32.mrb[0].mxu0
    %v378 = vadd.f32 %v262, %v377
    %v379 = vpop.f32.mrb[0].mxu0
    %380 = vdwg.mxu0
    %s381 = scalar_lea.vmem %s5, 16
    %v382 = vld [vmem:[%s381] sm:$0xf]
    %v383 = vld [vmem:[%s381 + $0x4] sm:$0xf]
    %v384 = vld [vmem:[%s381 + $0x8] sm:$0xf]
    %v385 = vld [vmem:[%s381 + $0xc] sm:$0xf]
    %s386 = scalar_lea.vmem %s6, 1
    %v387 = vld [vmem:[%s386] sm:$0x1]
    %v389 = vlaneseq
    %v390 = vshrl.u32 %v389, 7
    %v391 = vsub.s32 0, %v390
    %v392 = vrot.slane %v387, %v391
    %v398 = vunpack.c.l.b16 %v382
    %v399 = vunpack.c.l.b16 %v383
    %v400 = vunpack.c.l.b16 %v384
    %v401 = vunpack.c.l.b16 %v385
    %v402 = vpack.c.b16 %v399, %v398
    %v403 = vpack.c.b16 %v401, %v400
    %406 = vmatprep.subr.bf16.mxu0 0
    %407 = vmatpush1.bf16.msra.mxu0 %v402
    %408 = vmatprep.subr.bf16.mxu0 0
    %409 = vmatpush1.bf16.msra.mxu0 %v403
    %410 = vmatprep.subr.bf16.mxu0 0
    %411 = vmatpush1.bf16.msra.mxu0 0
    %412 = vmatprep.subr.bf16.mxu0 0
    %413 = vmatpush1.bf16.msra.mxu0 0
    %414 = vmatprep.subr.bf16.mxu0 0
    %415 = vmatpush1.bf16.msra.mxu0 0
    %416 = vmatprep.subr.bf16.mxu0 0
    %417 = vmatpush1.bf16.msra.mxu0 0
    %418 = vmatprep.subr.bf16.mxu0 0
    %419 = vmatpush1.bf16.msra.mxu0 0
    %420 = vmatprep.subr.bf16.mxu0 0
    %421 = vmatpush1.bf16.msra.mxu0 0
    %422 = vmatprep.subr.bf16.mxu0 0
    %423 = vmatpush1.bf16.msra.mxu0 0
    %424 = vmatprep.subr.bf16.mxu0 0
    %425 = vmatpush1.bf16.msra.mxu0 0
    %426 = vmatprep.subr.bf16.mxu0 0
    %427 = vmatpush1.bf16.msra.mxu0 0
    %428 = vmatprep.subr.bf16.mxu0 0
    %429 = vmatpush1.bf16.msra.mxu0 0
    %430 = vmatprep.subr.bf16.mxu0 0
    %431 = vmatpush1.bf16.msra.mxu0 0
    %432 = vmatprep.subr.bf16.mxu0 0
    %433 = vmatpush1.bf16.msra.mxu0 0
    %434 = vmatprep.subr.bf16.mxu0 0
    %435 = vmatpush1.bf16.msra.mxu0 0
    %436 = vmatprep.subr.bf16.mxu0 0
    %437 = vmatpush1.bf16.msra.mxu0 0
    %438 = vmatprep.mubr.bf16.mxu0 0
    %439 = vmatmul.mubr.bf16.gmra.mrb[0].mxu0 %v287
    %v440 = vpop.f32.mrb[0].mxu0
    %v441 = vadd.f32 %v392, %v440
    %v442 = vpop.f32.mrb[0].mxu0
    %v443 = vpop.f32.mrb[0].mxu0
    %v444 = vadd.f32 %v392, %v443
    %v445 = vpop.f32.mrb[0].mxu0
    %446 = vdwg.mxu0
    %v447 = vpack.c.bf16 %v444, %v441
    %v448 = vpack.c.bf16 %v233, %v233
    %v450 = vsel %vm332, %v447, 0
    %v453 = vsel %vm336, %v448, 0
    %455 = vmatprep.subr.bf16.mxu0 0
    %456 = vmatpush1.bf16.msra.mxu0 %v453
    %457 = vmatprep.subr.bf16.mxu0 0
    %458 = vmatpush1.bf16.msra.mxu0 0
    %459 = vmatprep.subr.bf16.mxu0 0
    %460 = vmatpush1.bf16.msra.mxu0 0
    %461 = vmatprep.subr.bf16.mxu0 0
    %462 = vmatpush1.bf16.msra.mxu0 0
    %463 = vmatprep.subr.bf16.mxu0 0
    %464 = vmatpush1.bf16.msra.mxu0 0
    %465 = vmatprep.subr.bf16.mxu0 0
    %466 = vmatpush1.bf16.msra.mxu0 0
    %467 = vmatprep.subr.bf16.mxu0 0
    %468 = vmatpush1.bf16.msra.mxu0 0
    %469 = vmatprep.subr.bf16.mxu0 0
    %470 = vmatpush1.bf16.msra.mxu0 0
    %471 = vmatprep.subr.bf16.mxu0 0
    %472 = vmatpush1.bf16.msra.mxu0 0
    %473 = vmatprep.subr.bf16.mxu0 0
    %474 = vmatpush1.bf16.msra.mxu0 0
    %475 = vmatprep.subr.bf16.mxu0 0
    %476 = vmatpush1.bf16.msra.mxu0 0
    %477 = vmatprep.subr.bf16.mxu0 0
    %478 = vmatpush1.bf16.msra.mxu0 0
    %479 = vmatprep.subr.bf16.mxu0 0
    %480 = vmatpush1.bf16.msra.mxu0 0
    %481 = vmatprep.subr.bf16.mxu0 0
    %482 = vmatpush1.bf16.msra.mxu0 0
    %483 = vmatprep.subr.bf16.mxu0 0
    %484 = vmatpush1.bf16.msra.mxu0 0
    %485 = vmatprep.subr.bf16.mxu0 0
    %486 = vmatpush1.bf16.msra.mxu0 0
    %487 = vmatprep.mubr.bf16.mxu0 0
    %488 = vmatmul.mubr.bf16.gmra.mrb[0].mxu0 %v450
    %v489 = vpop.f32.mrb[0].mxu0
    %v490 = vadd.f32 %v261, %v489
    %v491 = vpop.f32.mrb[0].mxu0
    %v492 = vpop.f32.mrb[0].mxu0
    %v493 = vadd.f32 %v262, %v492
    %v494 = vpop.f32.mrb[0].mxu0
    %495 = vdwg.mxu0
    %s496 = scalar_lea.vmem %s5, 32
    %v497 = vld [vmem:[%s496] sm:$0xf]
    %v498 = vld [vmem:[%s496 + $0x4] sm:$0xf]
    %v499 = vld [vmem:[%s496 + $0x8] sm:$0xf]
    %v500 = vld [vmem:[%s496 + $0xc] sm:$0xf]
    %s501 = scalar_lea.vmem %s6, 2
    %v502 = vld [vmem:[%s501] sm:$0x1]
    %v504 = vlaneseq
    %v505 = vshrl.u32 %v504, 7
    %v506 = vsub.s32 0, %v505
    %v507 = vrot.slane %v502, %v506
    %v513 = vunpack.c.l.b16 %v497
    %v514 = vunpack.c.l.b16 %v498
    %v515 = vunpack.c.l.b16 %v499
    %v516 = vunpack.c.l.b16 %v500
    %v517 = vpack.c.b16 %v514, %v513
    %v518 = vpack.c.b16 %v516, %v515
    %521 = vmatprep.subr.bf16.mxu0 0
    %522 = vmatpush1.bf16.msra.mxu0 %v517
    %523 = vmatprep.subr.bf16.mxu0 0
    %524 = vmatpush1.bf16.msra.mxu0 %v518
    %525 = vmatprep.subr.bf16.mxu0 0
    %526 = vmatpush1.bf16.msra.mxu0 0
    %527 = vmatprep.subr.bf16.mxu0 0
    %528 = vmatpush1.bf16.msra.mxu0 0
    %529 = vmatprep.subr.bf16.mxu0 0
    %530 = vmatpush1.bf16.msra.mxu0 0
    %531 = vmatprep.subr.bf16.mxu0 0
    %532 = vmatpush1.bf16.msra.mxu0 0
    %533 = vmatprep.subr.bf16.mxu0 0
    %534 = vmatpush1.bf16.msra.mxu0 0
    %535 = vmatprep.subr.bf16.mxu0 0
    %536 = vmatpush1.bf16.msra.mxu0 0
    %537 = vmatprep.subr.bf16.mxu0 0
    %538 = vmatpush1.bf16.msra.mxu0 0
    %539 = vmatprep.subr.bf16.mxu0 0
    %540 = vmatpush1.bf16.msra.mxu0 0
    %541 = vmatprep.subr.bf16.mxu0 0
    %542 = vmatpush1.bf16.msra.mxu0 0
    %543 = vmatprep.subr.bf16.mxu0 0
    %544 = vmatpush1.bf16.msra.mxu0 0
    %545 = vmatprep.subr.bf16.mxu0 0
    %546 = vmatpush1.bf16.msra.mxu0 0
    %547 = vmatprep.subr.bf16.mxu0 0
    %548 = vmatpush1.bf16.msra.mxu0 0
    %549 = vmatprep.subr.bf16.mxu0 0
    %550 = vmatpush1.bf16.msra.mxu0 0
    %551 = vmatprep.subr.bf16.mxu0 0
    %552 = vmatpush1.bf16.msra.mxu0 0
    %553 = vmatprep.mubr.bf16.mxu0 0
    %554 = vmatmul.mubr.bf16.gmra.mrb[0].mxu0 %v287
    %v555 = vpop.f32.mrb[0].mxu0
    %v556 = vadd.f32 %v507, %v555
    %v557 = vpop.f32.mrb[0].mxu0
    %v558 = vpop.f32.mrb[0].mxu0
    %v559 = vadd.f32 %v507, %v558
    %v560 = vpop.f32.mrb[0].mxu0
    %561 = vdwg.mxu0
    %v562 = vpack.c.bf16 %v559, %v556
    %v563 = vpack.c.bf16 %v238, %v238
    %v565 = vsel %vm332, %v562, 0
    %v568 = vsel %vm336, %v563, 0
    %570 = vmatprep.subr.bf16.mxu0 0
    %571 = vmatpush1.bf16.msra.mxu0 %v568
    %572 = vmatprep.subr.bf16.mxu0 0
    %573 = vmatpush1.bf16.msra.mxu0 0
    %574 = vmatprep.subr.bf16.mxu0 0
    %575 = vmatpush1.bf16.msra.mxu0 0
    %576 = vmatprep.subr.bf16.mxu0 0
    %577 = vmatpush1.bf16.msra.mxu0 0
    %578 = vmatprep.subr.bf16.mxu0 0
    %579 = vmatpush1.bf16.msra.mxu0 0
    %580 = vmatprep.subr.bf16.mxu0 0
    %581 = vmatpush1.bf16.msra.mxu0 0
    %582 = vmatprep.subr.bf16.mxu0 0
    %583 = vmatpush1.bf16.msra.mxu0 0
    %584 = vmatprep.subr.bf16.mxu0 0
    %585 = vmatpush1.bf16.msra.mxu0 0
    %586 = vmatprep.subr.bf16.mxu0 0
    %587 = vmatpush1.bf16.msra.mxu0 0
    %588 = vmatprep.subr.bf16.mxu0 0
    %589 = vmatpush1.bf16.msra.mxu0 0
    %590 = vmatprep.subr.bf16.mxu0 0
    %591 = vmatpush1.bf16.msra.mxu0 0
    %592 = vmatprep.subr.bf16.mxu0 0
    %593 = vmatpush1.bf16.msra.mxu0 0
    %594 = vmatprep.subr.bf16.mxu0 0
    %595 = vmatpush1.bf16.msra.mxu0 0
    %596 = vmatprep.subr.bf16.mxu0 0
    %597 = vmatpush1.bf16.msra.mxu0 0
    %598 = vmatprep.subr.bf16.mxu0 0
    %599 = vmatpush1.bf16.msra.mxu0 0
    %600 = vmatprep.subr.bf16.mxu0 0
    %601 = vmatpush1.bf16.msra.mxu0 0
    %602 = vmatprep.mubr.bf16.mxu0 0
    %603 = vmatmul.mubr.bf16.gmra.mrb[0].mxu0 %v565
    %v604 = vpop.f32.mrb[0].mxu0
    %v605 = vadd.f32 %v261, %v604
    %v606 = vpop.f32.mrb[0].mxu0
    %v607 = vpop.f32.mrb[0].mxu0
    %v608 = vadd.f32 %v262, %v607
    %v609 = vpop.f32.mrb[0].mxu0
    %610 = vdwg.mxu0
    %s611 = scalar_lea.vmem %s5, 48
    %v612 = vld [vmem:[%s611] sm:$0xf]
    %v613 = vld [vmem:[%s611 + $0x4] sm:$0xf]
    %v614 = vld [vmem:[%s611 + $0x8] sm:$0xf]
    %v615 = vld [vmem:[%s611 + $0xc] sm:$0xf]
    %s616 = scalar_lea.vmem %s6, 3
    %v617 = vld [vmem:[%s616] sm:$0x1]
    %v619 = vlaneseq
    %v620 = vshrl.u32 %v619, 7
    %v621 = vsub.s32 0, %v620
    %v622 = vrot.slane %v617, %v621
    %v628 = vunpack.c.l.b16 %v612
    %v629 = vunpack.c.l.b16 %v613
    %v630 = vunpack.c.l.b16 %v614
    %v631 = vunpack.c.l.b16 %v615
    %v632 = vpack.c.b16 %v629, %v628
    %v633 = vpack.c.b16 %v631, %v630
    %636 = vmatprep.subr.bf16.mxu0 0
    %637 = vmatpush1.bf16.msra.mxu0 %v632
    %638 = vmatprep.subr.bf16.mxu0 0
    %639 = vmatpush1.bf16.msra.mxu0 %v633
    %640 = vmatprep.subr.bf16.mxu0 0
    %641 = vmatpush1.bf16.msra.mxu0 0
    %642 = vmatprep.subr.bf16.mxu0 0
    %643 = vmatpush1.bf16.msra.mxu0 0
    %644 = vmatprep.subr.bf16.mxu0 0
    %645 = vmatpush1.bf16.msra.mxu0 0
    %646 = vmatprep.subr.bf16.mxu0 0
    %647 = vmatpush1.bf16.msra.mxu0 0
    %648 = vmatprep.subr.bf16.mxu0 0
    %649 = vmatpush1.bf16.msra.mxu0 0
    %650 = vmatprep.subr.bf16.mxu0 0
    %651 = vmatpush1.bf16.msra.mxu0 0
    %652 = vmatprep.subr.bf16.mxu0 0
    %653 = vmatpush1.bf16.msra.mxu0 0
    %654 = vmatprep.subr.bf16.mxu0 0
    %655 = vmatpush1.bf16.msra.mxu0 0
    %656 = vmatprep.subr.bf16.mxu0 0
    %657 = vmatpush1.bf16.msra.mxu0 0
    %658 = vmatprep.subr.bf16.mxu0 0
    %659 = vmatpush1.bf16.msra.mxu0 0
    %660 = vmatprep.subr.bf16.mxu0 0
    %661 = vmatpush1.bf16.msra.mxu0 0
    %662 = vmatprep.subr.bf16.mxu0 0
    %663 = vmatpush1.bf16.msra.mxu0 0
    %664 = vmatprep.subr.bf16.mxu0 0
    %665 = vmatpush1.bf16.msra.mxu0 0
    %666 = vmatprep.subr.bf16.mxu0 0
    %667 = vmatpush1.bf16.msra.mxu0 0
    %668 = vmatprep.mubr.bf16.mxu0 0
    %669 = vmatmul.mubr.bf16.gmra.mrb[0].mxu0 %v287
    %v670 = vpop.f32.mrb[0].mxu0
    %v671 = vadd.f32 %v622, %v670
    %v672 = vpop.f32.mrb[0].mxu0
    %v673 = vpop.f32.mrb[0].mxu0
    %v674 = vadd.f32 %v622, %v673
    %v675 = vpop.f32.mrb[0].mxu0
    %676 = vdwg.mxu0
    %v677 = vpack.c.bf16 %v674, %v671
    %v678 = vpack.c.bf16 %v241, %v241
    %v680 = vsel %vm332, %v677, 0
    %v683 = vsel %vm336, %v678, 0
    %685 = vmatprep.subr.bf16.mxu0 0
    %686 = vmatpush1.bf16.msra.mxu0 %v683
    %687 = vmatprep.subr.bf16.mxu0 0
    %688 = vmatpush1.bf16.msra.mxu0 0
    %689 = vmatprep.subr.bf16.mxu0 0
    %690 = vmatpush1.bf16.msra.mxu0 0
    %691 = vmatprep.subr.bf16.mxu0 0
    %692 = vmatpush1.bf16.msra.mxu0 0
    %693 = vmatprep.subr.bf16.mxu0 0
    %694 = vmatpush1.bf16.msra.mxu0 0
    %695 = vmatprep.subr.bf16.mxu0 0
    %696 = vmatpush1.bf16.msra.mxu0 0
    %697 = vmatprep.subr.bf16.mxu0 0
    %698 = vmatpush1.bf16.msra.mxu0 0
    %699 = vmatprep.subr.bf16.mxu0 0
    %700 = vmatpush1.bf16.msra.mxu0 0
    %701 = vmatprep.subr.bf16.mxu0 0
    %702 = vmatpush1.bf16.msra.mxu0 0
    %703 = vmatprep.subr.bf16.mxu0 0
    %704 = vmatpush1.bf16.msra.mxu0 0
    %705 = vmatprep.subr.bf16.mxu0 0
    %706 = vmatpush1.bf16.msra.mxu0 0
    %707 = vmatprep.subr.bf16.mxu0 0
    %708 = vmatpush1.bf16.msra.mxu0 0
    %709 = vmatprep.subr.bf16.mxu0 0
    %710 = vmatpush1.bf16.msra.mxu0 0
    %711 = vmatprep.subr.bf16.mxu0 0
    %712 = vmatpush1.bf16.msra.mxu0 0
    %713 = vmatprep.subr.bf16.mxu0 0
    %714 = vmatpush1.bf16.msra.mxu0 0
    %715 = vmatprep.subr.bf16.mxu0 0
    %716 = vmatpush1.bf16.msra.mxu0 0
    %717 = vmatprep.mubr.bf16.mxu0 0
    %718 = vmatmul.mubr.bf16.gmra.mrb[0].mxu0 %v680
    %v719 = vpop.f32.mrb[0].mxu0
    %v720 = vadd.f32 %v261, %v719
    %v721 = vpop.f32.mrb[0].mxu0
    %v722 = vpop.f32.mrb[0].mxu0
    %v723 = vadd.f32 %v262, %v722
    %v724 = vpop.f32.mrb[0].mxu0
    %725 = vdwg.mxu0
    %vm726 = vcmask 130048
    %v727 = vsel %vm726, %v375, -inf
    %728 = vmax.xlane.f32.xlu0 %v727
    %v729 = vpop.xlane.xlu0 %728
    %v730 = vsel %vm726, %v378, -inf
    %731 = vmax.xlane.f32.xlu0 %v730
    %v732 = vpop.xlane.xlu0 %731
    %v733 = vsub.f32 %v375, %v729
    %v734 = vsub.f32 %v378, %v732
    %v735 = vmul.f32 %v733, 1.442695
    %v736 = vpow.pop %v735
    %v737 = vmul.f32 %v734, 1.442695
    %v738 = vpow.pop %v737
    %v739 = vsel %vm726, %v736, 0.0
    %740 = vadd.xlane.f32.xlu0 %v739
    %v741 = vpop.xlane.xlu0 %740
    %v742 = vsel %vm726, %v738, 0.0
    %743 = vadd.xlane.f32.xlu0 %v742
    %v744 = vpop.xlane.xlu0 %743
    %v745 = vrcp.pop %v741
    %v746 = vrcp.pop %v744
    %v747 = vmul.f32 %v736, %v745
    %v748 = vmul.f32 %v738, %v746
    %v749 = vsel %vm726, %v490, -inf
    %750 = vmax.xlane.f32.xlu0 %v749
    %v751 = vpop.xlane.xlu0 %750
    %v752 = vsel %vm726, %v493, -inf
    %753 = vmax.xlane.f32.xlu0 %v752
    %v754 = vpop.xlane.xlu0 %753
    %v755 = vsub.f32 %v490, %v751
    %v756 = vsub.f32 %v493, %v754
    %v757 = vmul.f32 %v755, 1.442695
    %v758 = vpow.pop %v757
    %v759 = vmul.f32 %v756, 1.442695
    %v760 = vpow.pop %v759
    %v761 = vsel %vm726, %v758, 0.0
    %762 = vadd.xlane.f32.xlu0 %v761
    %v763 = vpop.xlane.xlu0 %762
    %v764 = vsel %vm726, %v760, 0.0
    %765 = vadd.xlane.f32.xlu0 %v764
    %v766 = vpop.xlane.xlu0 %765
    %v767 = vrcp.pop %v763
    %v768 = vrcp.pop %v766
    %v769 = vmul.f32 %v758, %v767
    %v770 = vmul.f32 %v760, %v768
    %v771 = vsel %vm726, %v605, -inf
    %772 = vmax.xlane.f32.xlu0 %v771
    %v773 = vpop.xlane.xlu0 %772
    %v774 = vsel %vm726, %v608, -inf
    %775 = vmax.xlane.f32.xlu0 %v774
    %v776 = vpop.xlane.xlu0 %775
    %v777 = vsub.f32 %v605, %v773
    %v778 = vsub.f32 %v608, %v776
    %v779 = vmul.f32 %v777, 1.442695
    %v780 = vpow.pop %v779
    %v781 = vmul.f32 %v778, 1.442695
    %v782 = vpow.pop %v781
    %v783 = vsel %vm726, %v780, 0.0
    %784 = vadd.xlane.f32.xlu0 %v783
    %v785 = vpop.xlane.xlu0 %784
    %v786 = vsel %vm726, %v782, 0.0
    %787 = vadd.xlane.f32.xlu0 %v786
    %v788 = vpop.xlane.xlu0 %787
    %v789 = vrcp.pop %v785
    %v790 = vrcp.pop %v788
    %v791 = vmul.f32 %v780, %v789
    %v792 = vmul.f32 %v782, %v790
    %v793 = vsel %vm726, %v720, -inf
    %794 = vmax.xlane.f32.xlu0 %v793
    %v795 = vpop.xlane.xlu0 %794
    %v796 = vsel %vm726, %v723, -inf
    %797 = vmax.xlane.f32.xlu0 %v796
    %v798 = vpop.xlane.xlu0 %797
    %v799 = vsub.f32 %v720, %v795
    %v800 = vsub.f32 %v723, %v798
    %v801 = vmul.f32 %v799, 1.442695
    %v802 = vpow.pop %v801
    %v803 = vmul.f32 %v800, 1.442695
    %v804 = vpow.pop %v803
    %v805 = vsel %vm726, %v802, 0.0
    %806 = vadd.xlane.f32.xlu0 %v805
    %v807 = vpop.xlane.xlu0 %806
    %v808 = vsel %vm726, %v804, 0.0
    %809 = vadd.xlane.f32.xlu0 %v808
    %v810 = vpop.xlane.xlu0 %809
    %v811 = vrcp.pop %v807
    %v812 = vrcp.pop %v810
    %v813 = vmul.f32 %v802, %v811
    %v814 = vmul.f32 %v804, %v812
    %v815 = vpack.c.bf16 %v748, %v747
    %v816 = vpack.c.bf16 %v246, %v246
    %v818 = vsel %vm726, %v815, 0
    %v821 = vsel %vm726, %v816, 0
    %823 = vmatprep.subr.bf16.mxu0 0
    %824 = vmatpush1.bf16.xpose.msra.mxu0 %v821
    %825 = vmatprep.subr.bf16.mxu0 0
    %826 = vmatpush1.bf16.xpose.msra.mxu0 0
    %827 = vmatprep.subr.bf16.mxu0 0
    %828 = vmatpush1.bf16.xpose.msra.mxu0 0
    %829 = vmatprep.subr.bf16.mxu0 0
    %830 = vmatpush1.bf16.xpose.msra.mxu0 0
    %831 = vmatprep.subr.bf16.mxu0 0
    %832 = vmatpush1.bf16.xpose.msra.mxu0 0
    %833 = vmatprep.subr.bf16.mxu0 0
    %834 = vmatpush1.bf16.xpose.msra.mxu0 0
    %835 = vmatprep.subr.bf16.mxu0 0
    %836 = vmatpush1.bf16.xpose.msra.mxu0 0
    %837 = vmatprep.subr.bf16.mxu0 0
    %838 = vmatpush1.bf16.xpose.msra.mxu0 0
    %839 = vmatprep.subr.bf16.mxu0 0
    %840 = vmatpush1.bf16.xpose.msra.mxu0 0
    %841 = vmatprep.subr.bf16.mxu0 0
    %842 = vmatpush1.bf16.xpose.msra.mxu0 0
    %843 = vmatprep.subr.bf16.mxu0 0
    %844 = vmatpush1.bf16.xpose.msra.mxu0 0
    %845 = vmatprep.subr.bf16.mxu0 0
    %846 = vmatpush1.bf16.xpose.msra.mxu0 0
    %847 = vmatprep.subr.bf16.mxu0 0
    %848 = vmatpush1.bf16.xpose.msra.mxu0 0
    %849 = vmatprep.subr.bf16.mxu0 0
    %850 = vmatpush1.bf16.xpose.msra.mxu0 0
    %851 = vmatprep.subr.bf16.mxu0 0
    %852 = vmatpush1.bf16.xpose.msra.mxu0 0
    %853 = vmatprep.subr.bf16.mxu0 0
    %854 = vmatpush1.bf16.xpose.msra.mxu0 0
    %855 = vmatprep.mubr.bf16.mxu0 0
    %856 = vmatmul.mubr.bf16.gmra.mrb[0].mxu0 %v818
    %v857 = vpop.f32.mrb[0].mxu0
    %v858 = vadd.f32 0.0, %v857
    %v859 = vpop.f32.mrb[0].mxu0
    %v860 = vpop.f32.mrb[0].mxu0
    %v861 = vadd.f32 0.0, %v860
    %v862 = vpop.f32.mrb[0].mxu0
    %863 = vdwg.mxu0
    %v864 = vpack.c.bf16 %v861, %v858
    %v865 = vld [vmem:[%s9] sm:$0xf]
    %v866 = vpack.c.bf16 %v770, %v769
    %v867 = vpack.c.bf16 %v249, %v249
    %v869 = vsel %vm726, %v866, 0
    %v872 = vsel %vm726, %v867, 0
    %874 = vmatprep.subr.bf16.mxu0 0
    %875 = vmatpush1.bf16.xpose.msra.mxu0 %v872
    %876 = vmatprep.subr.bf16.mxu0 0
    %877 = vmatpush1.bf16.xpose.msra.mxu0 0
    %878 = vmatprep.subr.bf16.mxu0 0
    %879 = vmatpush1.bf16.xpose.msra.mxu0 0
    %880 = vmatprep.subr.bf16.mxu0 0
    %881 = vmatpush1.bf16.xpose.msra.mxu0 0
    %882 = vmatprep.subr.bf16.mxu0 0
    %883 = vmatpush1.bf16.xpose.msra.mxu0 0
    %884 = vmatprep.subr.bf16.mxu0 0
    %885 = vmatpush1.bf16.xpose.msra.mxu0 0
    %886 = vmatprep.subr.bf16.mxu0 0
    %887 = vmatpush1.bf16.xpose.msra.mxu0 0
    %888 = vmatprep.subr.bf16.mxu0 0
    %889 = vmatpush1.bf16.xpose.msra.mxu0 0
    %890 = vmatprep.subr.bf16.mxu0 0
    %891 = vmatpush1.bf16.xpose.msra.mxu0 0
    %892 = vmatprep.subr.bf16.mxu0 0
    %893 = vmatpush1.bf16.xpose.msra.mxu0 0
    %894 = vmatprep.subr.bf16.mxu0 0
    %895 = vmatpush1.bf16.xpose.msra.mxu0 0
    %896 = vmatprep.subr.bf16.mxu0 0
    %897 = vmatpush1.bf16.xpose.msra.mxu0 0
    %898 = vmatprep.subr.bf16.mxu0 0
    %899 = vmatpush1.bf16.xpose.msra.mxu0 0
    %900 = vmatprep.subr.bf16.mxu0 0
    %901 = vmatpush1.bf16.xpose.msra.mxu0 0
    %902 = vmatprep.subr.bf16.mxu0 0
    %903 = vmatpush1.bf16.xpose.msra.mxu0 0
    %904 = vmatprep.subr.bf16.mxu0 0
    %905 = vmatpush1.bf16.xpose.msra.mxu0 0
    %906 = vmatprep.mubr.bf16.mxu0 0
    %907 = vmatmul.mubr.bf16.gmra.mrb[0].mxu0 %v869
    %v908 = vpop.f32.mrb[0].mxu0
    %v909 = vadd.f32 0.0, %v908
    %v910 = vpop.f32.mrb[0].mxu0
    %v911 = vpop.f32.mrb[0].mxu0
    %v912 = vadd.f32 0.0, %v911
    %v913 = vpop.f32.mrb[0].mxu0
    %914 = vdwg.mxu0
    %v915 = vpack.c.bf16 %v912, %v909
    %s916 = scalar_lea.vmem %s9, 4
    %v917 = vld [vmem:[%s916] sm:$0xf]
    %v919 = vsel %vm332, %v915, 0
    %v922 = vsel %vm336, %v917, 0
    %924 = vmatprep.subr.bf16.mxu0 0
    %925 = vmatpush1.bf16.msra.mxu0 %v922
    %926 = vmatprep.subr.bf16.mxu0 0
    %927 = vmatpush1.bf16.msra.mxu0 0
    %928 = vmatprep.subr.bf16.mxu0 0
    %929 = vmatpush1.bf16.msra.mxu0 0
    %930 = vmatprep.subr.bf16.mxu0 0
    %931 = vmatpush1.bf16.msra.mxu0 0
    %932 = vmatprep.subr.bf16.mxu0 0
    %933 = vmatpush1.bf16.msra.mxu0 0
    %934 = vmatprep.subr.bf16.mxu0 0
    %935 = vmatpush1.bf16.msra.mxu0 0
    %936 = vmatprep.subr.bf16.mxu0 0
    %937 = vmatpush1.bf16.msra.mxu0 0
    %938 = vmatprep.subr.bf16.mxu0 0
    %939 = vmatpush1.bf16.msra.mxu0 0
    %940 = vmatprep.subr.bf16.mxu0 0
    %941 = vmatpush1.bf16.msra.mxu0 0
    %942 = vmatprep.subr.bf16.mxu0 0
    %943 = vmatpush1.bf16.msra.mxu0 0
    %944 = vmatprep.subr.bf16.mxu0 0
    %945 = vmatpush1.bf16.msra.mxu0 0
    %946 = vmatprep.subr.bf16.mxu0 0
    %947 = vmatpush1.bf16.msra.mxu0 0
    %948 = vmatprep.subr.bf16.mxu0 0
    %949 = vmatpush1.bf16.msra.mxu0 0
    %950 = vmatprep.subr.bf16.mxu0 0
    %951 = vmatpush1.bf16.msra.mxu0 0
    %952 = vmatprep.subr.bf16.mxu0 0
    %953 = vmatpush1.bf16.msra.mxu0 0
    %954 = vmatprep.subr.bf16.mxu0 0
    %955 = vmatpush1.bf16.msra.mxu0 0
    %956 = vmatprep.mubr.bf16.mxu0 0
    %957 = vmatmul.mubr.bf16.gmra.mrb[0].mxu0 %v919
    %v958 = vpop.f32.mrb[0].mxu0
    %v959 = vadd.f32 0.0, %v958
    %v960 = vpop.f32.mrb[0].mxu0
    %v961 = vpop.f32.mrb[0].mxu0
    %v962 = vadd.f32 0.0, %v961
    %v963 = vpop.f32.mrb[0].mxu0
    %964 = vdwg.mxu0
    %v966 = vsel %vm332, %v864, 0
    %v969 = vsel %vm336, %v865, 0
    %971 = vmatprep.subr.bf16.mxu0 0
    %972 = vmatpush1.bf16.msra.mxu0 %v969
    %973 = vmatprep.subr.bf16.mxu0 0
    %974 = vmatpush1.bf16.msra.mxu0 0
    %975 = vmatprep.subr.bf16.mxu0 0
    %976 = vmatpush1.bf16.msra.mxu0 0
    %977 = vmatprep.subr.bf16.mxu0 0
    %978 = vmatpush1.bf16.msra.mxu0 0
    %979 = vmatprep.subr.bf16.mxu0 0
    %980 = vmatpush1.bf16.msra.mxu0 0
    %981 = vmatprep.subr.bf16.mxu0 0
    %982 = vmatpush1.bf16.msra.mxu0 0
    %983 = vmatprep.subr.bf16.mxu0 0
    %984 = vmatpush1.bf16.msra.mxu0 0
    %985 = vmatprep.subr.bf16.mxu0 0
    %986 = vmatpush1.bf16.msra.mxu0 0
    %987 = vmatprep.subr.bf16.mxu0 0
    %988 = vmatpush1.bf16.msra.mxu0 0
    %989 = vmatprep.subr.bf16.mxu0 0
    %990 = vmatpush1.bf16.msra.mxu0 0
    %991 = vmatprep.subr.bf16.mxu0 0
    %992 = vmatpush1.bf16.msra.mxu0 0
    %993 = vmatprep.subr.bf16.mxu0 0
    %994 = vmatpush1.bf16.msra.mxu0 0
    %995 = vmatprep.subr.bf16.mxu0 0
    %996 = vmatpush1.bf16.msra.mxu0 0
    %997 = vmatprep.subr.bf16.mxu0 0
    %998 = vmatpush1.bf16.msra.mxu0 0
    %999 = vmatprep.subr.bf16.mxu0 0
    %1000 = vmatpush1.bf16.msra.mxu0 0
    %1001 = vmatprep.subr.bf16.mxu0 0
    %1002 = vmatpush1.bf16.msra.mxu0 0
    %1003 = vmatprep.mubr.bf16.mxu0 0
    %1004 = vmatmul.mubr.bf16.gmra.mrb[0].mxu0 %v966
    %v1005 = vpop.f32.mrb[0].mxu0
    %v1006 = vadd.f32 %v959, %v1005
    %v1007 = vpop.f32.mrb[0].mxu0
    %v1008 = vpop.f32.mrb[0].mxu0
    %v1009 = vadd.f32 %v962, %v1008
    %v1010 = vpop.f32.mrb[0].mxu0
    %1011 = vdwg.mxu0
    %v1012 = vpack.c.bf16 %v792, %v791
    %v1013 = vpack.c.bf16 %v254, %v254
    %v1015 = vsel %vm726, %v1012, 0
    %v1018 = vsel %vm726, %v1013, 0
    %1020 = vmatprep.subr.bf16.mxu0 0
    %1021 = vmatpush1.bf16.xpose.msra.mxu0 %v1018
    %1022 = vmatprep.subr.bf16.mxu0 0
    %1023 = vmatpush1.bf16.xpose.msra.mxu0 0
    %1024 = vmatprep.subr.bf16.mxu0 0
    %1025 = vmatpush1.bf16.xpose.msra.mxu0 0
    %1026 = vmatprep.subr.bf16.mxu0 0
    %1027 = vmatpush1.bf16.xpose.msra.mxu0 0
    %1028 = vmatprep.subr.bf16.mxu0 0
    %1029 = vmatpush1.bf16.xpose.msra.mxu0 0
    %1030 = vmatprep.subr.bf16.mxu0 0
    %1031 = vmatpush1.bf16.xpose.msra.mxu0 0
    %1032 = vmatprep.subr.bf16.mxu0 0
    %1033 = vmatpush1.bf16.xpose.msra.mxu0 0
    %1034 = vmatprep.subr.bf16.mxu0 0
    %1035 = vmatpush1.bf16.xpose.msra.mxu0 0
    %1036 = vmatprep.subr.bf16.mxu0 0
    %1037 = vmatpush1.bf16.xpose.msra.mxu0 0
    %1038 = vmatprep.subr.bf16.mxu0 0
    %1039 = vmatpush1.bf16.xpose.msra.mxu0 0
    %1040 = vmatprep.subr.bf16.mxu0 0
    %1041 = vmatpush1.bf16.xpose.msra.mxu0 0
    %1042 = vmatprep.subr.bf16.mxu0 0
    %1043 = vmatpush1.bf16.xpose.msra.mxu0 0
    %1044 = vmatprep.subr.bf16.mxu0 0
    %1045 = vmatpush1.bf16.xpose.msra.mxu0 0
    %1046 = vmatprep.subr.bf16.mxu0 0
    %1047 = vmatpush1.bf16.xpose.msra.mxu0 0
    %1048 = vmatprep.subr.bf16.mxu0 0
    %1049 = vmatpush1.bf16.xpose.msra.mxu0 0
    %1050 = vmatprep.subr.bf16.mxu0 0
    %1051 = vmatpush1.bf16.xpose.msra.mxu0 0
    %1052 = vmatprep.mubr.bf16.mxu0 0
    %1053 = vmatmul.mubr.bf16.gmra.mrb[0].mxu0 %v1015
    %v1054 = vpop.f32.mrb[0].mxu0
    %v1055 = vadd.f32 0.0, %v1054
    %v1056 = vpop.f32.mrb[0].mxu0
    %v1057 = vpop.f32.mrb[0].mxu0
    %v1058 = vadd.f32 0.0, %v1057
    %v1059 = vpop.f32.mrb[0].mxu0
    %1060 = vdwg.mxu0
    %v1061 = vpack.c.bf16 %v1058, %v1055
    %s1062 = scalar_lea.vmem %s9, 8
    %v1063 = vld [vmem:[%s1062] sm:$0xf]
    %v1065 = vsel %vm332, %v1061, 0
    %v1068 = vsel %vm336, %v1063, 0
    %1070 = vmatprep.subr.bf16.mxu0 0
    %1071 = vmatpush1.bf16.msra.mxu0 %v1068
    %1072 = vmatprep.subr.bf16.mxu0 0
    %1073 = vmatpush1.bf16.msra.mxu0 0
    %1074 = vmatprep.subr.bf16.mxu0 0
    %1075 = vmatpush1.bf16.msra.mxu0 0
    %1076 = vmatprep.subr.bf16.mxu0 0
    %1077 = vmatpush1.bf16.msra.mxu0 0
    %1078 = vmatprep.subr.bf16.mxu0 0
    %1079 = vmatpush1.bf16.msra.mxu0 0
    %1080 = vmatprep.subr.bf16.mxu0 0
    %1081 = vmatpush1.bf16.msra.mxu0 0
    %1082 = vmatprep.subr.bf16.mxu0 0
    %1083 = vmatpush1.bf16.msra.mxu0 0
    %1084 = vmatprep.subr.bf16.mxu0 0
    %1085 = vmatpush1.bf16.msra.mxu0 0
    %1086 = vmatprep.subr.bf16.mxu0 0
    %1087 = vmatpush1.bf16.msra.mxu0 0
    %1088 = vmatprep.subr.bf16.mxu0 0
    %1089 = vmatpush1.bf16.msra.mxu0 0
    %1090 = vmatprep.subr.bf16.mxu0 0
    %1091 = vmatpush1.bf16.msra.mxu0 0
    %1092 = vmatprep.subr.bf16.mxu0 0
    %1093 = vmatpush1.bf16.msra.mxu0 0
    %1094 = vmatprep.subr.bf16.mxu0 0
    %1095 = vmatpush1.bf16.msra.mxu0 0
    %1096 = vmatprep.subr.bf16.mxu0 0
    %1097 = vmatpush1.bf16.msra.mxu0 0
    %1098 = vmatprep.subr.bf16.mxu0 0
    %1099 = vmatpush1.bf16.msra.mxu0 0
    %1100 = vmatprep.subr.bf16.mxu0 0
    %1101 = vmatpush1.bf16.msra.mxu0 0
    %1102 = vmatprep.mubr.bf16.mxu0 0
    %1103 = vmatmul.mubr.bf16.gmra.mrb[0].mxu0 %v1065
    %v1104 = vpop.f32.mrb[0].mxu0
    %v1105 = vadd.f32 0.0, %v1104
    %v1106 = vpop.f32.mrb[0].mxu0
    %v1107 = vpop.f32.mrb[0].mxu0
    %v1108 = vadd.f32 0.0, %v1107
    %v1109 = vpop.f32.mrb[0].mxu0
    %1110 = vdwg.mxu0
    %v1111 = vadd.f32 %v1006, %v1105
    %v1112 = vadd.f32 %v1009, %v1108
    %v1113 = vpack.c.bf16 %v814, %v813
    %v1114 = vpack.c.bf16 %v257, %v257
    %v1116 = vsel %vm726, %v1113, 0
    %v1119 = vsel %vm726, %v1114, 0
    %1121 = vmatprep.subr.bf16.mxu0 0
    %1122 = vmatpush1.bf16.xpose.msra.mxu0 %v1119
    %1123 = vmatprep.subr.bf16.mxu0 0
    %1124 = vmatpush1.bf16.xpose.msra.mxu0 0
    %1125 = vmatprep.subr.bf16.mxu0 0
    %1126 = vmatpush1.bf16.xpose.msra.mxu0 0
    %1127 = vmatprep.subr.bf16.mxu0 0
    %1128 = vmatpush1.bf16.xpose.msra.mxu0 0
    %1129 = vmatprep.subr.bf16.mxu0 0
    %1130 = vmatpush1.bf16.xpose.msra.mxu0 0
    %1131 = vmatprep.subr.bf16.mxu0 0
    %1132 = vmatpush1.bf16.xpose.msra.mxu0 0
    %1133 = vmatprep.subr.bf16.mxu0 0
    %1134 = vmatpush1.bf16.xpose.msra.mxu0 0
    %1135 = vmatprep.subr.bf16.mxu0 0
    %1136 = vmatpush1.bf16.xpose.msra.mxu0 0
    %1137 = vmatprep.subr.bf16.mxu0 0
    %1138 = vmatpush1.bf16.xpose.msra.mxu0 0
    %1139 = vmatprep.subr.bf16.mxu0 0
    %1140 = vmatpush1.bf16.xpose.msra.mxu0 0
    %1141 = vmatprep.subr.bf16.mxu0 0
    %1142 = vmatpush1.bf16.xpose.msra.mxu0 0
    %1143 = vmatprep.subr.bf16.mxu0 0
    %1144 = vmatpush1.bf16.xpose.msra.mxu0 0
    %1145 = vmatprep.subr.bf16.mxu0 0
    %1146 = vmatpush1.bf16.xpose.msra.mxu0 0
    %1147 = vmatprep.subr.bf16.mxu0 0
    %1148 = vmatpush1.bf16.xpose.msra.mxu0 0
    %1149 = vmatprep.subr.bf16.mxu0 0
    %1150 = vmatpush1.bf16.xpose.msra.mxu0 0
    %1151 = vmatprep.subr.bf16.mxu0 0
    %1152 = vmatpush1.bf16.xpose.msra.mxu0 0
    %1153 = vmatprep.mubr.bf16.mxu0 0
    %1154 = vmatmul.mubr.bf16.gmra.mrb[0].mxu0 %v1116
    %v1155 = vpop.f32.mrb[0].mxu0
    %v1156 = vadd.f32 0.0, %v1155
    %v1157 = vpop.f32.mrb[0].mxu0
    %v1158 = vpop.f32.mrb[0].mxu0
    %v1159 = vadd.f32 0.0, %v1158
    %v1160 = vpop.f32.mrb[0].mxu0
    %1161 = vdwg.mxu0
    %v1162 = vpack.c.bf16 %v1159, %v1156
    %s1163 = scalar_lea.vmem %s9, 12
    %v1164 = vld [vmem:[%s1163] sm:$0xf]
    %v1166 = vsel %vm332, %v1162, 0
    %v1169 = vsel %vm336, %v1164, 0
    %1171 = vmatprep.subr.bf16.mxu0 0
    %1172 = vmatpush1.bf16.msra.mxu0 %v1169
    %1173 = vmatprep.subr.bf16.mxu0 0
    %1174 = vmatpush1.bf16.msra.mxu0 0
    %1175 = vmatprep.subr.bf16.mxu0 0
    %1176 = vmatpush1.bf16.msra.mxu0 0
    %1177 = vmatprep.subr.bf16.mxu0 0
    %1178 = vmatpush1.bf16.msra.mxu0 0
    %1179 = vmatprep.subr.bf16.mxu0 0
    %1180 = vmatpush1.bf16.msra.mxu0 0
    %1181 = vmatprep.subr.bf16.mxu0 0
    %1182 = vmatpush1.bf16.msra.mxu0 0
    %1183 = vmatprep.subr.bf16.mxu0 0
    %1184 = vmatpush1.bf16.msra.mxu0 0
    %1185 = vmatprep.subr.bf16.mxu0 0
    %1186 = vmatpush1.bf16.msra.mxu0 0
    %1187 = vmatprep.subr.bf16.mxu0 0
    %1188 = vmatpush1.bf16.msra.mxu0 0
    %1189 = vmatprep.subr.bf16.mxu0 0
    %1190 = vmatpush1.bf16.msra.mxu0 0
    %1191 = vmatprep.subr.bf16.mxu0 0
    %1192 = vmatpush1.bf16.msra.mxu0 0
    %1193 = vmatprep.subr.bf16.mxu0 0
    %1194 = vmatpush1.bf16.msra.mxu0 0
    %1195 = vmatprep.subr.bf16.mxu0 0
    %1196 = vmatpush1.bf16.msra.mxu0 0
    %1197 = vmatprep.subr.bf16.mxu0 0
    %1198 = vmatpush1.bf16.msra.mxu0 0
    %1199 = vmatprep.subr.bf16.mxu0 0
    %1200 = vmatpush1.bf16.msra.mxu0 0
    %1201 = vmatprep.subr.bf16.mxu0 0
    %1202 = vmatpush1.bf16.msra.mxu0 0
    %1203 = vmatprep.mubr.bf16.mxu0 0
    %1204 = vmatmul.mubr.bf16.gmra.mrb[0].mxu0 %v1166
    %v1205 = vpop.f32.mrb[0].mxu0
    %v1206 = vadd.f32 0.0, %v1205
    %v1207 = vpop.f32.mrb[0].mxu0
    %v1208 = vpop.f32.mrb[0].mxu0
    %v1209 = vadd.f32 0.0, %v1208
    %v1210 = vpop.f32.mrb[0].mxu0
    %1211 = vdwg.mxu0
    %v1212 = vadd.f32 %v1111, %v1206
    %v1213 = vadd.f32 %v1112, %v1209
    %v1214 = vld [vmem:[%s10] sm:$0x1]
    %v1216 = vlaneseq
    %v1217 = vshrl.u32 %v1216, 7
    %v1218 = vsub.s32 0, %v1217
    %v1219 = vrot.slane %v1214, %v1218
    %v1221 = vadd.f32 %v1212, %v1219
    %v1222 = vadd.f32 %v1213, %v1219
    %v1223 = vadd.f32 %v1221, %v88
    %v1224 = vadd.f32 %v1222, %v89
    %v1225 = vld [vmem:[%s11] sm:$0x1]
    %v1226 = vld [vmem:[%s12] sm:$0x1]
    %v1227 = vsel %vm182, %v1223, 0.0
    %1228 = vadd.xlane.f32.xlu0 %v1227
    %v1229 = vpop.xlane.xlu0 %1228
    %v1230 = vsel %vm182, %v1224, 0.0
    %1231 = vadd.xlane.f32.xlu0 %v1230
    %v1232 = vpop.xlane.xlu0 %1231
    %v1233 = vrcp.pop 32.0
    %v1234 = vmul.f32 %v1229, %v1233
    %v1235 = vmul.f32 %v1232, %v1233
    %v1236 = vsub.f32 %v1223, %v1234
    %v1237 = vsub.f32 %v1224, %v1235
    %v1238 = vmul.f32 %v1236, %v1236
    %v1239 = vmul.f32 %v1237, %v1237
    %v1240 = vsel %vm182, %v1238, 0.0
    %1241 = vadd.xlane.f32.xlu0 %v1240
    %v1242 = vpop.xlane.xlu0 %1241
    %v1243 = vsel %vm182, %v1239, 0.0
    %1244 = vadd.xlane.f32.xlu0 %v1243
    %v1245 = vpop.xlane.xlu0 %1244
    %v1246 = vmul.f32 %v1242, %v1233
    %v1247 = vmul.f32 %v1245, %v1233
    %v1248 = vadd.f32 %v1246, 1e-05
    %v1249 = vadd.f32 %v1247, 1e-05
    %v1250 = vrsqrt.pop %v1248
    %v1251 = vrsqrt.pop %v1249
    %v1252 = vmul.f32 %v1236, %v1250
    %v1253 = vmul.f32 %v1237, %v1251
    %v1255 = vlaneseq
    %v1256 = vshrl.u32 %v1255, 7
    %v1257 = vsub.s32 0, %v1256
    %v1258 = vrot.slane %v1225, %v1257
    %v1260 = vmul.f32 %v1252, %v1258
    %v1261 = vmul.f32 %v1253, %v1258
    %v1263 = vlaneseq
    %v1264 = vshrl.u32 %v1263, 7
    %v1265 = vsub.s32 0, %v1264
    %v1266 = vrot.slane %v1226, %v1265
    %v1268 = vadd.f32 %v1260, %v1266
    %v1269 = vadd.f32 %v1261, %v1266
    %v1270 = vld [vmem:[%s15] sm:$0xf]
    %v1271 = vld [vmem:[%s15 + $0x4] sm:$0xf]
    %v1272 = vld [vmem:[%s15 + $0x8] sm:$0xf]
    %v1273 = vld [vmem:[%s15 + $0xc] sm:$0xf]
    %v1274 = vld [vmem:[%s15 + $0x10] sm:$0xf]
    %v1275 = vld [vmem:[%s15 + $0x14] sm:$0xf]
    %v1276 = vld [vmem:[%s15 + $0x18] sm:$0xf]
    %v1277 = vld [vmem:[%s15 + $0x1c] sm:$0xf]
    %v1278 = vld [vmem:[%s2] sm:$0xf]
    %v1279 = vld [vmem:[%s2 + $0x4] sm:$0xf]
    %v1280 = vld [vmem:[%s2 + $0x8] sm:$0xf]
    %v1281 = vld [vmem:[%s2 + $0xc] sm:$0xf]
    %v1282 = vld [vmem:[%s16] sm:$0xff]
    %v1283 = vld [vmem:[%s16 + $0x8] sm:$0xff]
    %v1284 = vld [vmem:[%s16 + $0x10] sm:$0xff]
    %v1285 = vld [vmem:[%s16 + $0x18] sm:$0xff]
    %v1286 = vld [vmem:[%s16 + $0x20] sm:$0xff]
    %v1287 = vld [vmem:[%s16 + $0x28] sm:$0xff]
    %v1288 = vld [vmem:[%s16 + $0x30] sm:$0xff]
    %v1289 = vld [vmem:[%s16 + $0x38] sm:$0xff]
    %1291 = vset.pattern.permute.xlu0 0
    %1292 = vperm.xlu0 %1291, %v1282
    %v1293 = vpop.permute.xlu0 %1292
    %1296 = vset.pattern.permute.xlu0 0
    %1297 = vperm.xlu0 %1296, %v1283
    %v1298 = vpop.permute.xlu0 %1297
    %1301 = vset.pattern.permute.xlu0 0
    %1302 = vperm.xlu0 %1301, %v1284
    %v1303 = vpop.permute.xlu0 %1302
    %1306 = vset.pattern.permute.xlu0 0
    %1307 = vperm.xlu0 %1306, %v1285
    %v1308 = vpop.permute.xlu0 %1307
    %1311 = vset.pattern.permute.xlu0 0
    %1312 = vperm.xlu0 %1311, %v1286
    %v1313 = vpop.permute.xlu0 %1312
    %1316 = vset.pattern.permute.xlu0 0
    %1317 = vperm.xlu0 %1316, %v1287
    %v1318 = vpop.permute.xlu0 %1317
    %1321 = vset.pattern.permute.xlu0 0
    %1322 = vperm.xlu0 %1321, %v1288
    %v1323 = vpop.permute.xlu0 %1322
    %1326 = vset.pattern.permute.xlu0 0
    %1327 = vperm.xlu0 %1326, %v1289
    %v1328 = vpop.permute.xlu0 %1327
    %v1338 = vunpack.c.l.b16 %v1270
    %v1339 = vunpack.c.l.b16 %v1271
    %v1340 = vunpack.c.l.b16 %v1272
    %v1341 = vunpack.c.l.b16 %v1273
    %v1342 = vunpack.c.l.b16 %v1274
    %v1343 = vunpack.c.l.b16 %v1275
    %v1344 = vunpack.c.l.b16 %v1276
    %v1345 = vunpack.c.l.b16 %v1277
    %v1346 = vpack.c.b16 %v1339, %v1338
    %v1347 = vpack.c.b16 %v1341, %v1340
    %v1348 = vpack.c.b16 %v1343, %v1342
    %v1349 = vpack.c.b16 %v1345, %v1344
    %v1354 = vunpack.c.l.b16 %v1278
    %v1355 = vunpack.c.l.b16 %v1279
    %v1356 = vunpack.c.l.b16 %v1280
    %v1357 = vunpack.c.l.b16 %v1281
    %v1358 = vpack.c.b16 %v1355, %v1354
    %v1359 = vpack.c.b16 %v1357, %v1356
    %v1363 = vsel %vm182, %v1346, 0
    %v1366 = vsel %vm182, %v1347, 0
    %v1369 = vsel %vm182, %v1348, 0
    %v1372 = vsel %vm182, %v1349, 0
    %1374 = vmatprep.subr.bf16.mxu0 0
    %1375 = vmatpush1.bf16.msra.mxu0 %v1358
    %1376 = vmatprep.subr.bf16.mxu0 0
    %1377 = vmatpush1.bf16.msra.mxu0 %v1359
    %1378 = vmatprep.subr.bf16.mxu0 0
    %1379 = vmatpush1.bf16.msra.mxu0 0
    %1380 = vmatprep.subr.bf16.mxu0 0
    %1381 = vmatpush1.bf16.msra.mxu0 0
    %1382 = vmatprep.subr.bf16.mxu0 0
    %1383 = vmatpush1.bf16.msra.mxu0 0
    %1384 = vmatprep.subr.bf16.mxu0 0
    %1385 = vmatpush1.bf16.msra.mxu0 0
    %1386 = vmatprep.subr.bf16.mxu0 0
    %1387 = vmatpush1.bf16.msra.mxu0 0
    %1388 = vmatprep.subr.bf16.mxu0 0
    %1389 = vmatpush1.bf16.msra.mxu0 0
    %1390 = vmatprep.subr.bf16.mxu0 0
    %1391 = vmatpush1.bf16.msra.mxu0 0
    %1392 = vmatprep.subr.bf16.mxu0 0
    %1393 = vmatpush1.bf16.msra.mxu0 0
    %1394 = vmatprep.subr.bf16.mxu0 0
    %1395 = vmatpush1.bf16.msra.mxu0 0
    %1396 = vmatprep.subr.bf16.mxu0 0
    %1397 = vmatpush1.bf16.msra.mxu0 0
    %1398 = vmatprep.subr.bf16.mxu0 0
    %1399 = vmatpush1.bf16.msra.mxu0 0
    %1400 = vmatprep.subr.bf16.mxu0 0
    %1401 = vmatpush1.bf16.msra.mxu0 0
    %1402 = vmatprep.subr.bf16.mxu0 0
    %1403 = vmatpush1.bf16.msra.mxu0 0
    %1404 = vmatprep.subr.bf16.mxu0 0
    %1405 = vmatpush1.bf16.msra.mxu0 0
    %1406 = vmatprep.mubr.bf16.mxu0 0
    %1407 = vmatmul.mubr.bf16.gmra.mrb[0].mxu0 %v1363
    %v1408 = vpop.f32.mrb[0].mxu0
    %v1409 = vadd.f32 %v1293, %v1408
    %v1410 = vpop.f32.mrb[0].mxu0
    %v1411 = vpop.f32.mrb[0].mxu0
    %v1412 = vadd.f32 %v1298, %v1411
    %v1413 = vpop.f32.mrb[0].mxu0
    %1414 = vmatprep.mubr.bf16.mxu0 0
    %1415 = vmatmul.mubr.bf16.gmra.mrb[0].mxu0 %v1366
    %v1416 = vpop.f32.mrb[0].mxu0
    %v1417 = vadd.f32 %v1303, %v1416
    %v1418 = vpop.f32.mrb[0].mxu0
    %v1419 = vpop.f32.mrb[0].mxu0
    %v1420 = vadd.f32 %v1308, %v1419
    %v1421 = vpop.f32.mrb[0].mxu0
    %1422 = vmatprep.mubr.bf16.mxu0 0
    %1423 = vmatmul.mubr.bf16.gmra.mrb[0].mxu0 %v1369
    %v1424 = vpop.f32.mrb[0].mxu0
    %v1425 = vadd.f32 %v1313, %v1424
    %v1426 = vpop.f32.mrb[0].mxu0
    %v1427 = vpop.f32.mrb[0].mxu0
    %v1428 = vadd.f32 %v1318, %v1427
    %v1429 = vpop.f32.mrb[0].mxu0
    %1430 = vmatprep.mubr.bf16.mxu0 0
    %1431 = vmatmul.mubr.bf16.gmra.mrb[0].mxu0 %v1372
    %v1432 = vpop.f32.mrb[0].mxu0
    %v1433 = vadd.f32 %v1323, %v1432
    %v1434 = vpop.f32.mrb[0].mxu0
    %v1435 = vpop.f32.mrb[0].mxu0
    %v1436 = vadd.f32 %v1328, %v1435
    %v1437 = vpop.f32.mrb[0].mxu0
    %1438 = vdwg.mxu0
    %v1439 = vpack.c.bf16 %v1269, %v1268
    %v1440 = vld [vmem:[%s4] sm:$0xff]
    %v1441 = vld [vmem:[%s4 + $0x8] sm:$0xff]
    %v1442 = vld [vmem:[%s13] sm:$0xf]
    %v1443 = vld [vmem:[%s13 + $0x4] sm:$0xf]
    %v1444 = vld [vmem:[%s13 + $0x8] sm:$0xf]
    %v1445 = vld [vmem:[%s13 + $0xc] sm:$0xf]
    %v1446 = vld [vmem:[%s14] sm:$0x1]
    %v1448 = vlaneseq
    %v1449 = vshrl.u32 %v1448, 7
    %v1450 = vsub.s32 0, %v1449
    %v1451 = vrot.slane %v1446, %v1450
    %v1457 = vunpack.c.l.b16 %v1442
    %v1458 = vunpack.c.l.b16 %v1443
    %v1459 = vunpack.c.l.b16 %v1444
    %v1460 = vunpack.c.l.b16 %v1445
    %v1461 = vpack.c.b16 %v1458, %v1457
    %v1462 = vpack.c.b16 %v1460, %v1459
    %v1466 = vsel %vm182, %v1439, 0
    %1468 = vmatprep.subr.bf16.mxu0 0
    %1469 = vmatpush1.bf16.msra.mxu0 %v1461
    %1470 = vmatprep.subr.bf16.mxu0 0
    %1471 = vmatpush1.bf16.msra.mxu0 %v1462
    %1472 = vmatprep.subr.bf16.mxu0 0
    %1473 = vmatpush1.bf16.msra.mxu0 0
    %1474 = vmatprep.subr.bf16.mxu0 0
    %1475 = vmatpush1.bf16.msra.mxu0 0
    %1476 = vmatprep.subr.bf16.mxu0 0
    %1477 = vmatpush1.bf16.msra.mxu0 0
    %1478 = vmatprep.subr.bf16.mxu0 0
    %1479 = vmatpush1.bf16.msra.mxu0 0
    %1480 = vmatprep.subr.bf16.mxu0 0
    %1481 = vmatpush1.bf16.msra.mxu0 0
    %1482 = vmatprep.subr.bf16.mxu0 0
    %1483 = vmatpush1.bf16.msra.mxu0 0
    %1484 = vmatprep.subr.bf16.mxu0 0
    %1485 = vmatpush1.bf16.msra.mxu0 0
    %1486 = vmatprep.subr.bf16.mxu0 0
    %1487 = vmatpush1.bf16.msra.mxu0 0
    %1488 = vmatprep.subr.bf16.mxu0 0
    %1489 = vmatpush1.bf16.msra.mxu0 0
    %1490 = vmatprep.subr.bf16.mxu0 0
    %1491 = vmatpush1.bf16.msra.mxu0 0
    %1492 = vmatprep.subr.bf16.mxu0 0
    %1493 = vmatpush1.bf16.msra.mxu0 0
    %1494 = vmatprep.subr.bf16.mxu0 0
    %1495 = vmatpush1.bf16.msra.mxu0 0
    %1496 = vmatprep.subr.bf16.mxu0 0
    %1497 = vmatpush1.bf16.msra.mxu0 0
    %1498 = vmatprep.subr.bf16.mxu0 0
    %1499 = vmatpush1.bf16.msra.mxu0 0
    %1500 = vmatprep.mubr.bf16.mxu0 0
    %1501 = vmatmul.mubr.bf16.gmra.mrb[0].mxu0 %v1466
    %v1502 = vpop.f32.mrb[0].mxu0
    %v1503 = vadd.f32 %v1451, %v1502
    %v1504 = vpop.f32.mrb[0].mxu0
    %v1505 = vpop.f32.mrb[0].mxu0
    %v1506 = vadd.f32 %v1451, %v1505
    %v1507 = vpop.f32.mrb[0].mxu0
    %1508 = vdwg.mxu0
    %v1509 = vpack.c.bf16 %v1506, %v1503
    %v1510 = vpack.c.bf16 %v1409, %v1409
    %v1512 = vsel %vm332, %v1509, 0
    %v1515 = vsel %vm336, %v1510, 0
    %1517 = vmatprep.subr.bf16.mxu0 0
    %1518 = vmatpush1.bf16.msra.mxu0 %v1515
    %1519 = vmatprep.subr.bf16.mxu0 0
    %1520 = vmatpush1.bf16.msra.mxu0 0
    %1521 = vmatprep.subr.bf16.mxu0 0
    %1522 = vmatpush1.bf16.msra.mxu0 0
    %1523 = vmatprep.subr.bf16.mxu0 0
    %1524 = vmatpush1.bf16.msra.mxu0 0
    %1525 = vmatprep.subr.bf16.mxu0 0
    %1526 = vmatpush1.bf16.msra.mxu0 0
    %1527 = vmatprep.subr.bf16.mxu0 0
    %1528 = vmatpush1.bf16.msra.mxu0 0
    %1529 = vmatprep.subr.bf16.mxu0 0
    %1530 = vmatpush1.bf16.msra.mxu0 0
    %1531 = vmatprep.subr.bf16.mxu0 0
    %1532 = vmatpush1.bf16.msra.mxu0 0
    %1533 = vmatprep.subr.bf16.mxu0 0
    %1534 = vmatpush1.bf16.msra.mxu0 0
    %1535 = vmatprep.subr.bf16.mxu0 0
    %1536 = vmatpush1.bf16.msra.mxu0 0
    %1537 = vmatprep.subr.bf16.mxu0 0
    %1538 = vmatpush1.bf16.msra.mxu0 0
    %1539 = vmatprep.subr.bf16.mxu0 0
    %1540 = vmatpush1.bf16.msra.mxu0 0
    %1541 = vmatprep.subr.bf16.mxu0 0
    %1542 = vmatpush1.bf16.msra.mxu0 0
    %1543 = vmatprep.subr.bf16.mxu0 0
    %1544 = vmatpush1.bf16.msra.mxu0 0
    %1545 = vmatprep.subr.bf16.mxu0 0
    %1546 = vmatpush1.bf16.msra.mxu0 0
    %1547 = vmatprep.subr.bf16.mxu0 0
    %1548 = vmatpush1.bf16.msra.mxu0 0
    %1549 = vmatprep.mubr.bf16.mxu0 0
    %1550 = vmatmul.mubr.bf16.gmra.mrb[0].mxu0 %v1512
    %v1551 = vpop.f32.mrb[0].mxu0
    %v1552 = vadd.f32 %v1440, %v1551
    %v1553 = vpop.f32.mrb[0].mxu0
    %v1554 = vpop.f32.mrb[0].mxu0
    %v1555 = vadd.f32 %v1441, %v1554
    %v1556 = vpop.f32.mrb[0].mxu0
    %1557 = vdwg.mxu0
    %s1558 = scalar_lea.vmem %s13, 16
    %v1559 = vld [vmem:[%s1558] sm:$0xf]
    %v1560 = vld [vmem:[%s1558 + $0x4] sm:$0xf]
    %v1561 = vld [vmem:[%s1558 + $0x8] sm:$0xf]
    %v1562 = vld [vmem:[%s1558 + $0xc] sm:$0xf]
    %s1563 = scalar_lea.vmem %s14, 1
    %v1564 = vld [vmem:[%s1563] sm:$0x1]
    %v1566 = vlaneseq
    %v1567 = vshrl.u32 %v1566, 7
    %v1568 = vsub.s32 0, %v1567
    %v1569 = vrot.slane %v1564, %v1568
    %v1575 = vunpack.c.l.b16 %v1559
    %v1576 = vunpack.c.l.b16 %v1560
    %v1577 = vunpack.c.l.b16 %v1561
    %v1578 = vunpack.c.l.b16 %v1562
    %v1579 = vpack.c.b16 %v1576, %v1575
    %v1580 = vpack.c.b16 %v1578, %v1577
    %1583 = vmatprep.subr.bf16.mxu0 0
    %1584 = vmatpush1.bf16.msra.mxu0 %v1579
    %1585 = vmatprep.subr.bf16.mxu0 0
    %1586 = vmatpush1.bf16.msra.mxu0 %v1580
    %1587 = vmatprep.subr.bf16.mxu0 0
    %1588 = vmatpush1.bf16.msra.mxu0 0
    %1589 = vmatprep.subr.bf16.mxu0 0
    %1590 = vmatpush1.bf16.msra.mxu0 0
    %1591 = vmatprep.subr.bf16.mxu0 0
    %1592 = vmatpush1.bf16.msra.mxu0 0
    %1593 = vmatprep.subr.bf16.mxu0 0
    %1594 = vmatpush1.bf16.msra.mxu0 0
    %1595 = vmatprep.subr.bf16.mxu0 0
    %1596 = vmatpush1.bf16.msra.mxu0 0
    %1597 = vmatprep.subr.bf16.mxu0 0
    %1598 = vmatpush1.bf16.msra.mxu0 0
    %1599 = vmatprep.subr.bf16.mxu0 0
    %1600 = vmatpush1.bf16.msra.mxu0 0
    %1601 = vmatprep.subr.bf16.mxu0 0
    %1602 = vmatpush1.bf16.msra.mxu0 0
    %1603 = vmatprep.subr.bf16.mxu0 0
    %1604 = vmatpush1.bf16.msra.mxu0 0
    %1605 = vmatprep.subr.bf16.mxu0 0
    %1606 = vmatpush1.bf16.msra.mxu0 0
    %1607 = vmatprep.subr.bf16.mxu0 0
    %1608 = vmatpush1.bf16.msra.mxu0 0
    %1609 = vmatprep.subr.bf16.mxu0 0
    %1610 = vmatpush1.bf16.msra.mxu0 0
    %1611 = vmatprep.subr.bf16.mxu0 0
    %1612 = vmatpush1.bf16.msra.mxu0 0
    %1613 = vmatprep.subr.bf16.mxu0 0
    %1614 = vmatpush1.bf16.msra.mxu0 0
    %1615 = vmatprep.mubr.bf16.mxu0 0
    %1616 = vmatmul.mubr.bf16.gmra.mrb[0].mxu0 %v1466
    %v1617 = vpop.f32.mrb[0].mxu0
    %v1618 = vadd.f32 %v1569, %v1617
    %v1619 = vpop.f32.mrb[0].mxu0
    %v1620 = vpop.f32.mrb[0].mxu0
    %v1621 = vadd.f32 %v1569, %v1620
    %v1622 = vpop.f32.mrb[0].mxu0
    %1623 = vdwg.mxu0
    %v1624 = vpack.c.bf16 %v1621, %v1618
    %v1625 = vpack.c.bf16 %v1412, %v1412
    %v1627 = vsel %vm332, %v1624, 0
    %v1630 = vsel %vm336, %v1625, 0
    %1632 = vmatprep.subr.bf16.mxu0 0
    %1633 = vmatpush1.bf16.msra.mxu0 %v1630
    %1634 = vmatprep.subr.bf16.mxu0 0
    %1635 = vmatpush1.bf16.msra.mxu0 0
    %1636 = vmatprep.subr.bf16.mxu0 0
    %1637 = vmatpush1.bf16.msra.mxu0 0
    %1638 = vmatprep.subr.bf16.mxu0 0
    %1639 = vmatpush1.bf16.msra.mxu0 0
    %1640 = vmatprep.subr.bf16.mxu0 0
    %1641 = vmatpush1.bf16.msra.mxu0 0
    %1642 = vmatprep.subr.bf16.mxu0 0
    %1643 = vmatpush1.bf16.msra.mxu0 0
    %1644 = vmatprep.subr.bf16.mxu0 0
    %1645 = vmatpush1.bf16.msra.mxu0 0
    %1646 = vmatprep.subr.bf16.mxu0 0
    %1647 = vmatpush1.bf16.msra.mxu0 0
    %1648 = vmatprep.subr.bf16.mxu0 0
    %1649 = vmatpush1.bf16.msra.mxu0 0
    %1650 = vmatprep.subr.bf16.mxu0 0
    %1651 = vmatpush1.bf16.msra.mxu0 0
    %1652 = vmatprep.subr.bf16.mxu0 0
    %1653 = vmatpush1.bf16.msra.mxu0 0
    %1654 = vmatprep.subr.bf16.mxu0 0
    %1655 = vmatpush1.bf16.msra.mxu0 0
    %1656 = vmatprep.subr.bf16.mxu0 0
    %1657 = vmatpush1.bf16.msra.mxu0 0
    %1658 = vmatprep.subr.bf16.mxu0 0
    %1659 = vmatpush1.bf16.msra.mxu0 0
    %1660 = vmatprep.subr.bf16.mxu0 0
    %1661 = vmatpush1.bf16.msra.mxu0 0
    %1662 = vmatprep.subr.bf16.mxu0 0
    %1663 = vmatpush1.bf16.msra.mxu0 0
    %1664 = vmatprep.mubr.bf16.mxu0 0
    %1665 = vmatmul.mubr.bf16.gmra.mrb[0].mxu0 %v1627
    %v1666 = vpop.f32.mrb[0].mxu0
    %v1667 = vadd.f32 %v1440, %v1666
    %v1668 = vpop.f32.mrb[0].mxu0
    %v1669 = vpop.f32.mrb[0].mxu0
    %v1670 = vadd.f32 %v1441, %v1669
    %v1671 = vpop.f32.mrb[0].mxu0
    %1672 = vdwg.mxu0
    %s1673 = scalar_lea.vmem %s13, 32
    %v1674 = vld [vmem:[%s1673] sm:$0xf]
    %v1675 = vld [vmem:[%s1673 + $0x4] sm:$0xf]
    %v1676 = vld [vmem:[%s1673 + $0x8] sm:$0xf]
    %v1677 = vld [vmem:[%s1673 + $0xc] sm:$0xf]
    %s1678 = scalar_lea.vmem %s14, 2
    %v1679 = vld [vmem:[%s1678] sm:$0x1]
    %v1681 = vlaneseq
    %v1682 = vshrl.u32 %v1681, 7
    %v1683 = vsub.s32 0, %v1682
    %v1684 = vrot.slane %v1679, %v1683
    %v1690 = vunpack.c.l.b16 %v1674
    %v1691 = vunpack.c.l.b16 %v1675
    %v1692 = vunpack.c.l.b16 %v1676
    %v1693 = vunpack.c.l.b16 %v1677
    %v1694 = vpack.c.b16 %v1691, %v1690
    %v1695 = vpack.c.b16 %v1693, %v1692
    %1698 = vmatprep.subr.bf16.mxu0 0
    %1699 = vmatpush1.bf16.msra.mxu0 %v1694
    %1700 = vmatprep.subr.bf16.mxu0 0
    %1701 = vmatpush1.bf16.msra.mxu0 %v1695
    %1702 = vmatprep.subr.bf16.mxu0 0
    %1703 = vmatpush1.bf16.msra.mxu0 0
    %1704 = vmatprep.subr.bf16.mxu0 0
    %1705 = vmatpush1.bf16.msra.mxu0 0
    %1706 = vmatprep.subr.bf16.mxu0 0
    %1707 = vmatpush1.bf16.msra.mxu0 0
    %1708 = vmatprep.subr.bf16.mxu0 0
    %1709 = vmatpush1.bf16.msra.mxu0 0
    %1710 = vmatprep.subr.bf16.mxu0 0
    %1711 = vmatpush1.bf16.msra.mxu0 0
    %1712 = vmatprep.subr.bf16.mxu0 0
    %1713 = vmatpush1.bf16.msra.mxu0 0
    %1714 = vmatprep.subr.bf16.mxu0 0
    %1715 = vmatpush1.bf16.msra.mxu0 0
    %1716 = vmatprep.subr.bf16.mxu0 0
    %1717 = vmatpush1.bf16.msra.mxu0 0
    %1718 = vmatprep.subr.bf16.mxu0 0
    %1719 = vmatpush1.bf16.msra.mxu0 0
    %1720 = vmatprep.subr.bf16.mxu0 0
    %1721 = vmatpush1.bf16.msra.mxu0 0
    %1722 = vmatprep.subr.bf16.mxu0 0
    %1723 = vmatpush1.bf16.msra.mxu0 0
    %1724 = vmatprep.subr.bf16.mxu0 0
    %1725 = vmatpush1.bf16.msra.mxu0 0
    %1726 = vmatprep.subr.bf16.mxu0 0
    %1727 = vmatpush1.bf16.msra.mxu0 0
    %1728 = vmatprep.subr.bf16.mxu0 0
    %1729 = vmatpush1.bf16.msra.mxu0 0
    %1730 = vmatprep.mubr.bf16.mxu0 0
    %1731 = vmatmul.mubr.bf16.gmra.mrb[0].mxu0 %v1466
    %v1732 = vpop.f32.mrb[0].mxu0
    %v1733 = vadd.f32 %v1684, %v1732
    %v1734 = vpop.f32.mrb[0].mxu0
    %v1735 = vpop.f32.mrb[0].mxu0
    %v1736 = vadd.f32 %v1684, %v1735
    %v1737 = vpop.f32.mrb[0].mxu0
    %1738 = vdwg.mxu0
    %v1739 = vpack.c.bf16 %v1736, %v1733
    %v1740 = vpack.c.bf16 %v1417, %v1417
    %v1742 = vsel %vm332, %v1739, 0
    %v1745 = vsel %vm336, %v1740, 0
    %1747 = vmatprep.subr.bf16.mxu0 0
    %1748 = vmatpush1.bf16.msra.mxu0 %v1745
    %1749 = vmatprep.subr.bf16.mxu0 0
    %1750 = vmatpush1.bf16.msra.mxu0 0
    %1751 = vmatprep.subr.bf16.mxu0 0
    %1752 = vmatpush1.bf16.msra.mxu0 0
    %1753 = vmatprep.subr.bf16.mxu0 0
    %1754 = vmatpush1.bf16.msra.mxu0 0
    %1755 = vmatprep.subr.bf16.mxu0 0
    %1756 = vmatpush1.bf16.msra.mxu0 0
    %1757 = vmatprep.subr.bf16.mxu0 0
    %1758 = vmatpush1.bf16.msra.mxu0 0
    %1759 = vmatprep.subr.bf16.mxu0 0
    %1760 = vmatpush1.bf16.msra.mxu0 0
    %1761 = vmatprep.subr.bf16.mxu0 0
    %1762 = vmatpush1.bf16.msra.mxu0 0
    %1763 = vmatprep.subr.bf16.mxu0 0
    %1764 = vmatpush1.bf16.msra.mxu0 0
    %1765 = vmatprep.subr.bf16.mxu0 0
    %1766 = vmatpush1.bf16.msra.mxu0 0
    %1767 = vmatprep.subr.bf16.mxu0 0
    %1768 = vmatpush1.bf16.msra.mxu0 0
    %1769 = vmatprep.subr.bf16.mxu0 0
    %1770 = vmatpush1.bf16.msra.mxu0 0
    %1771 = vmatprep.subr.bf16.mxu0 0
    %1772 = vmatpush1.bf16.msra.mxu0 0
    %1773 = vmatprep.subr.bf16.mxu0 0
    %1774 = vmatpush1.bf16.msra.mxu0 0
    %1775 = vmatprep.subr.bf16.mxu0 0
    %1776 = vmatpush1.bf16.msra.mxu0 0
    %1777 = vmatprep.subr.bf16.mxu0 0
    %1778 = vmatpush1.bf16.msra.mxu0 0
    %1779 = vmatprep.mubr.bf16.mxu0 0
    %1780 = vmatmul.mubr.bf16.gmra.mrb[0].mxu0 %v1742
    %v1781 = vpop.f32.mrb[0].mxu0
    %v1782 = vadd.f32 %v1440, %v1781
    %v1783 = vpop.f32.mrb[0].mxu0
    %v1784 = vpop.f32.mrb[0].mxu0
    %v1785 = vadd.f32 %v1441, %v1784
    %v1786 = vpop.f32.mrb[0].mxu0
    %1787 = vdwg.mxu0
    %s1788 = scalar_lea.vmem %s13, 48
    %v1789 = vld [vmem:[%s1788] sm:$0xf]
    %v1790 = vld [vmem:[%s1788 + $0x4] sm:$0xf]
    %v1791 = vld [vmem:[%s1788 + $0x8] sm:$0xf]
    %v1792 = vld [vmem:[%s1788 + $0xc] sm:$0xf]
    %s1793 = scalar_lea.vmem %s14, 3
    %v1794 = vld [vmem:[%s1793] sm:$0x1]
    %v1796 = vlaneseq
    %v1797 = vshrl.u32 %v1796, 7
    %v1798 = vsub.s32 0, %v1797
    %v1799 = vrot.slane %v1794, %v1798
    %v1805 = vunpack.c.l.b16 %v1789
    %v1806 = vunpack.c.l.b16 %v1790
    %v1807 = vunpack.c.l.b16 %v1791
    %v1808 = vunpack.c.l.b16 %v1792
    %v1809 = vpack.c.b16 %v1806, %v1805
    %v1810 = vpack.c.b16 %v1808, %v1807
    %1813 = vmatprep.subr.bf16.mxu0 0
    %1814 = vmatpush1.bf16.msra.mxu0 %v1809
    %1815 = vmatprep.subr.bf16.mxu0 0
    %1816 = vmatpush1.bf16.msra.mxu0 %v1810
    %1817 = vmatprep.subr.bf16.mxu0 0
    %1818 = vmatpush1.bf16.msra.mxu0 0
    %1819 = vmatprep.subr.bf16.mxu0 0
    %1820 = vmatpush1.bf16.msra.mxu0 0
    %1821 = vmatprep.subr.bf16.mxu0 0
    %1822 = vmatpush1.bf16.msra.mxu0 0
    %1823 = vmatprep.subr.bf16.mxu0 0
    %1824 = vmatpush1.bf16.msra.mxu0 0
    %1825 = vmatprep.subr.bf16.mxu0 0
    %1826 = vmatpush1.bf16.msra.mxu0 0
    %1827 = vmatprep.subr.bf16.mxu0 0
    %1828 = vmatpush1.bf16.msra.mxu0 0
    %1829 = vmatprep.subr.bf16.mxu0 0
    %1830 = vmatpush1.bf16.msra.mxu0 0
    %1831 = vmatprep.subr.bf16.mxu0 0
    %1832 = vmatpush1.bf16.msra.mxu0 0
    %1833 = vmatprep.subr.bf16.mxu0 0
    %1834 = vmatpush1.bf16.msra.mxu0 0
    %1835 = vmatprep.subr.bf16.mxu0 0
    %1836 = vmatpush1.bf16.msra.mxu0 0
    %1837 = vmatprep.subr.bf16.mxu0 0
    %1838 = vmatpush1.bf16.msra.mxu0 0
    %1839 = vmatprep.subr.bf16.mxu0 0
    %1840 = vmatpush1.bf16.msra.mxu0 0
    %1841 = vmatprep.subr.bf16.mxu0 0
    %1842 = vmatpush1.bf16.msra.mxu0 0
    %1843 = vmatprep.subr.bf16.mxu0 0
    %1844 = vmatpush1.bf16.msra.mxu0 0
    %1845 = vmatprep.mubr.bf16.mxu0 0
    %1846 = vmatmul.mubr.bf16.gmra.mrb[0].mxu0 %v1466
    %v1847 = vpop.f32.mrb[0].mxu0
    %v1848 = vadd.f32 %v1799, %v1847
    %v1849 = vpop.f32.mrb[0].mxu0
    %v1850 = vpop.f32.mrb[0].mxu0
    %v1851 = vadd.f32 %v1799, %v1850
    %v1852 = vpop.f32.mrb[0].mxu0
    %1853 = vdwg.mxu0
    %v1854 = vpack.c.bf16 %v1851, %v1848
    %v1855 = vpack.c.bf16 %v1420, %v1420
    %v1857 = vsel %vm332, %v1854, 0
    %v1860 = vsel %vm336, %v1855, 0
    %1862 = vmatprep.subr.bf16.mxu0 0
    %1863 = vmatpush1.bf16.msra.mxu0 %v1860
    %1864 = vmatprep.subr.bf16.mxu0 0
    %1865 = vmatpush1.bf16.msra.mxu0 0
    %1866 = vmatprep.subr.bf16.mxu0 0
    %1867 = vmatpush1.bf16.msra.mxu0 0
    %1868 = vmatprep.subr.bf16.mxu0 0
    %1869 = vmatpush1.bf16.msra.mxu0 0
    %1870 = vmatprep.subr.bf16.mxu0 0
    %1871 = vmatpush1.bf16.msra.mxu0 0
    %1872 = vmatprep.subr.bf16.mxu0 0
    %1873 = vmatpush1.bf16.msra.mxu0 0
    %1874 = vmatprep.subr.bf16.mxu0 0
    %1875 = vmatpush1.bf16.msra.mxu0 0
    %1876 = vmatprep.subr.bf16.mxu0 0
    %1877 = vmatpush1.bf16.msra.mxu0 0
    %1878 = vmatprep.subr.bf16.mxu0 0
    %1879 = vmatpush1.bf16.msra.mxu0 0
    %1880 = vmatprep.subr.bf16.mxu0 0
    %1881 = vmatpush1.bf16.msra.mxu0 0
    %1882 = vmatprep.subr.bf16.mxu0 0
    %1883 = vmatpush1.bf16.msra.mxu0 0
    %1884 = vmatprep.subr.bf16.mxu0 0
    %1885 = vmatpush1.bf16.msra.mxu0 0
    %1886 = vmatprep.subr.bf16.mxu0 0
    %1887 = vmatpush1.bf16.msra.mxu0 0
    %1888 = vmatprep.subr.bf16.mxu0 0
    %1889 = vmatpush1.bf16.msra.mxu0 0
    %1890 = vmatprep.subr.bf16.mxu0 0
    %1891 = vmatpush1.bf16.msra.mxu0 0
    %1892 = vmatprep.subr.bf16.mxu0 0
    %1893 = vmatpush1.bf16.msra.mxu0 0
    %1894 = vmatprep.mubr.bf16.mxu0 0
    %1895 = vmatmul.mubr.bf16.gmra.mrb[0].mxu0 %v1857
    %v1896 = vpop.f32.mrb[0].mxu0
    %v1897 = vadd.f32 %v1440, %v1896
    %v1898 = vpop.f32.mrb[0].mxu0
    %v1899 = vpop.f32.mrb[0].mxu0
    %v1900 = vadd.f32 %v1441, %v1899
    %v1901 = vpop.f32.mrb[0].mxu0
    %1902 = vdwg.mxu0
    %v1903 = vsel %vm726, %v1552, -inf
    %1904 = vmax.xlane.f32.xlu0 %v1903
    %v1905 = vpop.xlane.xlu0 %1904
    %v1906 = vsel %vm726, %v1555, -inf
    %1907 = vmax.xlane.f32.xlu0 %v1906
    %v1908 = vpop.xlane.xlu0 %1907
    %v1909 = vsub.f32 %v1552, %v1905
    %v1910 = vsub.f32 %v1555, %v1908
    %v1911 = vmul.f32 %v1909, 1.442695
    %v1912 = vpow.pop %v1911
    %v1913 = vmul.f32 %v1910, 1.442695
    %v1914 = vpow.pop %v1913
    %v1915 = vsel %vm726, %v1912, 0.0
    %1916 = vadd.xlane.f32.xlu0 %v1915
    %v1917 = vpop.xlane.xlu0 %1916
    %v1918 = vsel %vm726, %v1914, 0.0
    %1919 = vadd.xlane.f32.xlu0 %v1918
    %v1920 = vpop.xlane.xlu0 %1919
    %v1921 = vrcp.pop %v1917
    %v1922 = vrcp.pop %v1920
    %v1923 = vmul.f32 %v1912, %v1921
    %v1924 = vmul.f32 %v1914, %v1922
    %v1925 = vsel %vm726, %v1667, -inf
    %1926 = vmax.xlane.f32.xlu0 %v1925
    %v1927 = vpop.xlane.xlu0 %1926
    %v1928 = vsel %vm726, %v1670, -inf
    %1929 = vmax.xlane.f32.xlu0 %v1928
    %v1930 = vpop.xlane.xlu0 %1929
    %v1931 = vsub.f32 %v1667, %v1927
    %v1932 = vsub.f32 %v1670, %v1930
    %v1933 = vmul.f32 %v1931, 1.442695
    %v1934 = vpow.pop %v1933
    %v1935 = vmul.f32 %v1932, 1.442695
    %v1936 = vpow.pop %v1935
    %v1937 = vsel %vm726, %v1934, 0.0
    %1938 = vadd.xlane.f32.xlu0 %v1937
    %v1939 = vpop.xlane.xlu0 %1938
    %v1940 = vsel %vm726, %v1936, 0.0
    %1941 = vadd.xlane.f32.xlu0 %v1940
    %v1942 = vpop.xlane.xlu0 %1941
    %v1943 = vrcp.pop %v1939
    %v1944 = vrcp.pop %v1942
    %v1945 = vmul.f32 %v1934, %v1943
    %v1946 = vmul.f32 %v1936, %v1944
    %v1947 = vsel %vm726, %v1782, -inf
    %1948 = vmax.xlane.f32.xlu0 %v1947
    %v1949 = vpop.xlane.xlu0 %1948
    %v1950 = vsel %vm726, %v1785, -inf
    %1951 = vmax.xlane.f32.xlu0 %v1950
    %v1952 = vpop.xlane.xlu0 %1951
    %v1953 = vsub.f32 %v1782, %v1949
    %v1954 = vsub.f32 %v1785, %v1952
    %v1955 = vmul.f32 %v1953, 1.442695
    %v1956 = vpow.pop %v1955
    %v1957 = vmul.f32 %v1954, 1.442695
    %v1958 = vpow.pop %v1957
    %v1959 = vsel %vm726, %v1956, 0.0
    %1960 = vadd.xlane.f32.xlu0 %v1959
    %v1961 = vpop.xlane.xlu0 %1960
    %v1962 = vsel %vm726, %v1958, 0.0
    %1963 = vadd.xlane.f32.xlu0 %v1962
    %v1964 = vpop.xlane.xlu0 %1963
    %v1965 = vrcp.pop %v1961
    %v1966 = vrcp.pop %v1964
    %v1967 = vmul.f32 %v1956, %v1965
    %v1968 = vmul.f32 %v1958, %v1966
    %v1969 = vsel %vm726, %v1897, -inf
    %1970 = vmax.xlane.f32.xlu0 %v1969
    %v1971 = vpop.xlane.xlu0 %1970
    %v1972 = vsel %vm726, %v1900, -inf
    %1973 = vmax.xlane.f32.xlu0 %v1972
    %v1974 = vpop.xlane.xlu0 %1973
    %v1975 = vsub.f32 %v1897, %v1971
    %v1976 = vsub.f32 %v1900, %v1974
    %v1977 = vmul.f32 %v1975, 1.442695
    %v1978 = vpow.pop %v1977
    %v1979 = vmul.f32 %v1976, 1.442695
    %v1980 = vpow.pop %v1979
    %v1981 = vsel %vm726, %v1978, 0.0
    %1982 = vadd.xlane.f32.xlu0 %v1981
    %v1983 = vpop.xlane.xlu0 %1982
    %v1984 = vsel %vm726, %v1980, 0.0
    %1985 = vadd.xlane.f32.xlu0 %v1984
    %v1986 = vpop.xlane.xlu0 %1985
    %v1987 = vrcp.pop %v1983
    %v1988 = vrcp.pop %v1986
    %v1989 = vmul.f32 %v1978, %v1987
    %v1990 = vmul.f32 %v1980, %v1988
    %v1991 = vpack.c.bf16 %v1924, %v1923
    %v1992 = vpack.c.bf16 %v1425, %v1425
    %v1994 = vsel %vm726, %v1991, 0
    %v1997 = vsel %vm726, %v1992, 0
    %1999 = vmatprep.subr.bf16.mxu0 0
    %2000 = vmatpush1.bf16.xpose.msra.mxu0 %v1997
    %2001 = vmatprep.subr.bf16.mxu0 0
    %2002 = vmatpush1.bf16.xpose.msra.mxu0 0
    %2003 = vmatprep.subr.bf16.mxu0 0
    %2004 = vmatpush1.bf16.xpose.msra.mxu0 0
    %2005 = vmatprep.subr.bf16.mxu0 0
    %2006 = vmatpush1.bf16.xpose.msra.mxu0 0
    %2007 = vmatprep.subr.bf16.mxu0 0
    %2008 = vmatpush1.bf16.xpose.msra.mxu0 0
    %2009 = vmatprep.subr.bf16.mxu0 0
    %2010 = vmatpush1.bf16.xpose.msra.mxu0 0
    %2011 = vmatprep.subr.bf16.mxu0 0
    %2012 = vmatpush1.bf16.xpose.msra.mxu0 0
    %2013 = vmatprep.subr.bf16.mxu0 0
    %2014 = vmatpush1.bf16.xpose.msra.mxu0 0
    %2015 = vmatprep.subr.bf16.mxu0 0
    %2016 = vmatpush1.bf16.xpose.msra.mxu0 0
    %2017 = vmatprep.subr.bf16.mxu0 0
    %2018 = vmatpush1.bf16.xpose.msra.mxu0 0
    %2019 = vmatprep.subr.bf16.mxu0 0
    %2020 = vmatpush1.bf16.xpose.msra.mxu0 0
    %2021 = vmatprep.subr.bf16.mxu0 0
    %2022 = vmatpush1.bf16.xpose.msra.mxu0 0
    %2023 = vmatprep.subr.bf16.mxu0 0
    %2024 = vmatpush1.bf16.xpose.msra.mxu0 0
    %2025 = vmatprep.subr.bf16.mxu0 0
    %2026 = vmatpush1.bf16.xpose.msra.mxu0 0
    %2027 = vmatprep.subr.bf16.mxu0 0
    %2028 = vmatpush1.bf16.xpose.msra.mxu0 0
    %2029 = vmatprep.subr.bf16.mxu0 0
    %2030 = vmatpush1.bf16.xpose.msra.mxu0 0
    %2031 = vmatprep.mubr.bf16.mxu0 0
    %2032 = vmatmul.mubr.bf16.gmra.mrb[0].mxu0 %v1994
    %v2033 = vpop.f32.mrb[0].mxu0
    %v2034 = vadd.f32 0.0, %v2033
    %v2035 = vpop.f32.mrb[0].mxu0
    %v2036 = vpop.f32.mrb[0].mxu0
    %v2037 = vadd.f32 0.0, %v2036
    %v2038 = vpop.f32.mrb[0].mxu0
    %2039 = vdwg.mxu0
    %v2040 = vpack.c.bf16 %v2037, %v2034
    %v2041 = vld [vmem:[%s17] sm:$0xf]
    %v2042 = vpack.c.bf16 %v1946, %v1945
    %v2043 = vpack.c.bf16 %v1428, %v1428
    %v2045 = vsel %vm726, %v2042, 0
    %v2048 = vsel %vm726, %v2043, 0
    %2050 = vmatprep.subr.bf16.mxu0 0
    %2051 = vmatpush1.bf16.xpose.msra.mxu0 %v2048
    %2052 = vmatprep.subr.bf16.mxu0 0
    %2053 = vmatpush1.bf16.xpose.msra.mxu0 0
    %2054 = vmatprep.subr.bf16.mxu0 0
    %2055 = vmatpush1.bf16.xpose.msra.mxu0 0
    %2056 = vmatprep.subr.bf16.mxu0 0
    %2057 = vmatpush1.bf16.xpose.msra.mxu0 0
    %2058 = vmatprep.subr.bf16.mxu0 0
    %2059 = vmatpush1.bf16.xpose.msra.mxu0 0
    %2060 = vmatprep.subr.bf16.mxu0 0
    %2061 = vmatpush1.bf16.xpose.msra.mxu0 0
    %2062 = vmatprep.subr.bf16.mxu0 0
    %2063 = vmatpush1.bf16.xpose.msra.mxu0 0
    %2064 = vmatprep.subr.bf16.mxu0 0
    %2065 = vmatpush1.bf16.xpose.msra.mxu0 0
    %2066 = vmatprep.subr.bf16.mxu0 0
    %2067 = vmatpush1.bf16.xpose.msra.mxu0 0
    %2068 = vmatprep.subr.bf16.mxu0 0
    %2069 = vmatpush1.bf16.xpose.msra.mxu0 0
    %2070 = vmatprep.subr.bf16.mxu0 0
    %2071 = vmatpush1.bf16.xpose.msra.mxu0 0
    %2072 = vmatprep.subr.bf16.mxu0 0
    %2073 = vmatpush1.bf16.xpose.msra.mxu0 0
    %2074 = vmatprep.subr.bf16.mxu0 0
    %2075 = vmatpush1.bf16.xpose.msra.mxu0 0
    %2076 = vmatprep.subr.bf16.mxu0 0
    %2077 = vmatpush1.bf16.xpose.msra.mxu0 0
    %2078 = vmatprep.subr.bf16.mxu0 0
    %2079 = vmatpush1.bf16.xpose.msra.mxu0 0
    %2080 = vmatprep.subr.bf16.mxu0 0
    %2081 = vmatpush1.bf16.xpose.msra.mxu0 0
    %2082 = vmatprep.mubr.bf16.mxu0 0
    %2083 = vmatmul.mubr.bf16.gmra.mrb[0].mxu0 %v2045
    %v2084 = vpop.f32.mrb[0].mxu0
    %v2085 = vadd.f32 0.0, %v2084
    %v2086 = vpop.f32.mrb[0].mxu0
    %v2087 = vpop.f32.mrb[0].mxu0
    %v2088 = vadd.f32 0.0, %v2087
    %v2089 = vpop.f32.mrb[0].mxu0
    %2090 = vdwg.mxu0
    %v2091 = vpack.c.bf16 %v2088, %v2085
    %s2092 = scalar_lea.vmem %s17, 4
    %v2093 = vld [vmem:[%s2092] sm:$0xf]
    %v2095 = vsel %vm332, %v2091, 0
    %v2098 = vsel %vm336, %v2093, 0
    %2100 = vmatprep.subr.bf16.mxu0 0
    %2101 = vmatpush1.bf16.msra.mxu0 %v2098
    %2102 = vmatprep.subr.bf16.mxu0 0
    %2103 = vmatpush1.bf16.msra.mxu0 0
    %2104 = vmatprep.subr.bf16.mxu0 0
    %2105 = vmatpush1.bf16.msra.mxu0 0
    %2106 = vmatprep.subr.bf16.mxu0 0
    %2107 = vmatpush1.bf16.msra.mxu0 0
    %2108 = vmatprep.subr.bf16.mxu0 0
    %2109 = vmatpush1.bf16.msra.mxu0 0
    %2110 = vmatprep.subr.bf16.mxu0 0
    %2111 = vmatpush1.bf16.msra.mxu0 0
    %2112 = vmatprep.subr.bf16.mxu0 0
    %2113 = vmatpush1.bf16.msra.mxu0 0
    %2114 = vmatprep.subr.bf16.mxu0 0
    %2115 = vmatpush1.bf16.msra.mxu0 0
    %2116 = vmatprep.subr.bf16.mxu0 0
    %2117 = vmatpush1.bf16.msra.mxu0 0
    %2118 = vmatprep.subr.bf16.mxu0 0
    %2119 = vmatpush1.bf16.msra.mxu0 0
    %2120 = vmatprep.subr.bf16.mxu0 0
    %2121 = vmatpush1.bf16.msra.mxu0 0
    %2122 = vmatprep.subr.bf16.mxu0 0
    %2123 = vmatpush1.bf16.msra.mxu0 0
    %2124 = vmatprep.subr.bf16.mxu0 0
    %2125 = vmatpush1.bf16.msra.mxu0 0
    %2126 = vmatprep.subr.bf16.mxu0 0
    %2127 = vmatpush1.bf16.msra.mxu0 0
    %2128 = vmatprep.subr.bf16.mxu0 0
    %2129 = vmatpush1.bf16.msra.mxu0 0
    %2130 = vmatprep.subr.bf16.mxu0 0
    %2131 = vmatpush1.bf16.msra.mxu0 0
    %2132 = vmatprep.mubr.bf16.mxu0 0
    %2133 = vmatmul.mubr.bf16.gmra.mrb[0].mxu0 %v2095
    %v2134 = vpop.f32.mrb[0].mxu0
    %v2135 = vadd.f32 0.0, %v2134
    %v2136 = vpop.f32.mrb[0].mxu0
    %v2137 = vpop.f32.mrb[0].mxu0
    %v2138 = vadd.f32 0.0, %v2137
    %v2139 = vpop.f32.mrb[0].mxu0
    %2140 = vdwg.mxu0
    %v2142 = vsel %vm332, %v2040, 0
    %v2145 = vsel %vm336, %v2041, 0
    %2147 = vmatprep.subr.bf16.mxu0 0
    %2148 = vmatpush1.bf16.msra.mxu0 %v2145
    %2149 = vmatprep.subr.bf16.mxu0 0
    %2150 = vmatpush1.bf16.msra.mxu0 0
    %2151 = vmatprep.subr.bf16.mxu0 0
    %2152 = vmatpush1.bf16.msra.mxu0 0
    %2153 = vmatprep.subr.bf16.mxu0 0
    %2154 = vmatpush1.bf16.msra.mxu0 0
    %2155 = vmatprep.subr.bf16.mxu0 0
    %2156 = vmatpush1.bf16.msra.mxu0 0
    %2157 = vmatprep.subr.bf16.mxu0 0
    %2158 = vmatpush1.bf16.msra.mxu0 0
    %2159 = vmatprep.subr.bf16.mxu0 0
    %2160 = vmatpush1.bf16.msra.mxu0 0
    %2161 = vmatprep.subr.bf16.mxu0 0
    %2162 = vmatpush1.bf16.msra.mxu0 0
    %2163 = vmatprep.subr.bf16.mxu0 0
    %2164 = vmatpush1.bf16.msra.mxu0 0
    %2165 = vmatprep.subr.bf16.mxu0 0
    %2166 = vmatpush1.bf16.msra.mxu0 0
    %2167 = vmatprep.subr.bf16.mxu0 0
    %2168 = vmatpush1.bf16.msra.mxu0 0
    %2169 = vmatprep.subr.bf16.mxu0 0
    %2170 = vmatpush1.bf16.msra.mxu0 0
    %2171 = vmatprep.subr.bf16.mxu0 0
    %2172 = vmatpush1.bf16.msra.mxu0 0
    %2173 = vmatprep.subr.bf16.mxu0 0
    %2174 = vmatpush1.bf16.msra.mxu0 0
    %2175 = vmatprep.subr.bf16.mxu0 0
    %2176 = vmatpush1.bf16.msra.mxu0 0
    %2177 = vmatprep.subr.bf16.mxu0 0
    %2178 = vmatpush1.bf16.msra.mxu0 0
    %2179 = vmatprep.mubr.bf16.mxu0 0
    %2180 = vmatmul.mubr.bf16.gmra.mrb[0].mxu0 %v2142
    %v2181 = vpop.f32.mrb[0].mxu0
    %v2182 = vadd.f32 %v2135, %v2181
    %v2183 = vpop.f32.mrb[0].mxu0
    %v2184 = vpop.f32.mrb[0].mxu0
    %v2185 = vadd.f32 %v2138, %v2184
    %v2186 = vpop.f32.mrb[0].mxu0
    %2187 = vdwg.mxu0
    %v2188 = vpack.c.bf16 %v1968, %v1967
    %v2189 = vpack.c.bf16 %v1433, %v1433
    %v2191 = vsel %vm726, %v2188, 0
    %v2194 = vsel %vm726, %v2189, 0
    %2196 = vmatprep.subr.bf16.mxu0 0
    %2197 = vmatpush1.bf16.xpose.msra.mxu0 %v2194
    %2198 = vmatprep.subr.bf16.mxu0 0
    %2199 = vmatpush1.bf16.xpose.msra.mxu0 0
    %2200 = vmatprep.subr.bf16.mxu0 0
    %2201 = vmatpush1.bf16.xpose.msra.mxu0 0
    %2202 = vmatprep.subr.bf16.mxu0 0
    %2203 = vmatpush1.bf16.xpose.msra.mxu0 0
    %2204 = vmatprep.subr.bf16.mxu0 0
    %2205 = vmatpush1.bf16.xpose.msra.mxu0 0
    %2206 = vmatprep.subr.bf16.mxu0 0
    %2207 = vmatpush1.bf16.xpose.msra.mxu0 0
    %2208 = vmatprep.subr.bf16.mxu0 0
    %2209 = vmatpush1.bf16.xpose.msra.mxu0 0
    %2210 = vmatprep.subr.bf16.mxu0 0
    %2211 = vmatpush1.bf16.xpose.msra.mxu0 0
    %2212 = vmatprep.subr.bf16.mxu0 0
    %2213 = vmatpush1.bf16.xpose.msra.mxu0 0
    %2214 = vmatprep.subr.bf16.mxu0 0
    %2215 = vmatpush1.bf16.xpose.msra.mxu0 0
    %2216 = vmatprep.subr.bf16.mxu0 0
    %2217 = vmatpush1.bf16.xpose.msra.mxu0 0
    %2218 = vmatprep.subr.bf16.mxu0 0
    %2219 = vmatpush1.bf16.xpose.msra.mxu0 0
    %2220 = vmatprep.subr.bf16.mxu0 0
    %2221 = vmatpush1.bf16.xpose.msra.mxu0 0
    %2222 = vmatprep.subr.bf16.mxu0 0
    %2223 = vmatpush1.bf16.xpose.msra.mxu0 0
    %2224 = vmatprep.subr.bf16.mxu0 0
    %2225 = vmatpush1.bf16.xpose.msra.mxu0 0
    %2226 = vmatprep.subr.bf16.mxu0 0
    %2227 = vmatpush1.bf16.xpose.msra.mxu0 0
    %2228 = vmatprep.mubr.bf16.mxu0 0
    %2229 = vmatmul.mubr.bf16.gmra.mrb[0].mxu0 %v2191
    %v2230 = vpop.f32.mrb[0].mxu0
    %v2231 = vadd.f32 0.0, %v2230
    %v2232 = vpop.f32.mrb[0].mxu0
    %v2233 = vpop.f32.mrb[0].mxu0
    %v2234 = vadd.f32 0.0, %v2233
    %v2235 = vpop.f32.mrb[0].mxu0
    %2236 = vdwg.mxu0
    %v2237 = vpack.c.bf16 %v2234, %v2231
    %s2238 = scalar_lea.vmem %s17, 8
    %v2239 = vld [vmem:[%s2238] sm:$0xf]
    %v2241 = vsel %vm332, %v2237, 0
    %v2244 = vsel %vm336, %v2239, 0
    %2246 = vmatprep.subr.bf16.mxu0 0
    %2247 = vmatpush1.bf16.msra.mxu0 %v2244
    %2248 = vmatprep.subr.bf16.mxu0 0
    %2249 = vmatpush1.bf16.msra.mxu0 0
    %2250 = vmatprep.subr.bf16.mxu0 0
    %2251 = vmatpush1.bf16.msra.mxu0 0
    %2252 = vmatprep.subr.bf16.mxu0 0
    %2253 = vmatpush1.bf16.msra.mxu0 0
    %2254 = vmatprep.subr.bf16.mxu0 0
    %2255 = vmatpush1.bf16.msra.mxu0 0
    %2256 = vmatprep.subr.bf16.mxu0 0
    %2257 = vmatpush1.bf16.msra.mxu0 0
    %2258 = vmatprep.subr.bf16.mxu0 0
    %2259 = vmatpush1.bf16.msra.mxu0 0
    %2260 = vmatprep.subr.bf16.mxu0 0
    %2261 = vmatpush1.bf16.msra.mxu0 0
    %2262 = vmatprep.subr.bf16.mxu0 0
    %2263 = vmatpush1.bf16.msra.mxu0 0
    %2264 = vmatprep.subr.bf16.mxu0 0
    %2265 = vmatpush1.bf16.msra.mxu0 0
    %2266 = vmatprep.subr.bf16.mxu0 0
    %2267 = vmatpush1.bf16.msra.mxu0 0
    %2268 = vmatprep.subr.bf16.mxu0 0
    %2269 = vmatpush1.bf16.msra.mxu0 0
    %2270 = vmatprep.subr.bf16.mxu0 0
    %2271 = vmatpush1.bf16.msra.mxu0 0
    %2272 = vmatprep.subr.bf16.mxu0 0
    %2273 = vmatpush1.bf16.msra.mxu0 0
    %2274 = vmatprep.subr.bf16.mxu0 0
    %2275 = vmatpush1.bf16.msra.mxu0 0
    %2276 = vmatprep.subr.bf16.mxu0 0
    %2277 = vmatpush1.bf16.msra.mxu0 0
    %2278 = vmatprep.mubr.bf16.mxu0 0
    %2279 = vmatmul.mubr.bf16.gmra.mrb[0].mxu0 %v2241
    %v2280 = vpop.f32.mrb[0].mxu0
    %v2281 = vadd.f32 0.0, %v2280
    %v2282 = vpop.f32.mrb[0].mxu0
    %v2283 = vpop.f32.mrb[0].mxu0
    %v2284 = vadd.f32 0.0, %v2283
    %v2285 = vpop.f32.mrb[0].mxu0
    %2286 = vdwg.mxu0
    %v2287 = vadd.f32 %v2182, %v2281
    %v2288 = vadd.f32 %v2185, %v2284
    %v2289 = vpack.c.bf16 %v1990, %v1989
    %v2290 = vpack.c.bf16 %v1436, %v1436
    %v2292 = vsel %vm726, %v2289, 0
    %v2295 = vsel %vm726, %v2290, 0
    %2297 = vmatprep.subr.bf16.mxu0 0
    %2298 = vmatpush1.bf16.xpose.msra.mxu0 %v2295
    %2299 = vmatprep.subr.bf16.mxu0 0
    %2300 = vmatpush1.bf16.xpose.msra.mxu0 0
    %2301 = vmatprep.subr.bf16.mxu0 0
    %2302 = vmatpush1.bf16.xpose.msra.mxu0 0
    %2303 = vmatprep.subr.bf16.mxu0 0
    %2304 = vmatpush1.bf16.xpose.msra.mxu0 0
    %2305 = vmatprep.subr.bf16.mxu0 0
    %2306 = vmatpush1.bf16.xpose.msra.mxu0 0
    %2307 = vmatprep.subr.bf16.mxu0 0
    %2308 = vmatpush1.bf16.xpose.msra.mxu0 0
    %2309 = vmatprep.subr.bf16.mxu0 0
    %2310 = vmatpush1.bf16.xpose.msra.mxu0 0
    %2311 = vmatprep.subr.bf16.mxu0 0
    %2312 = vmatpush1.bf16.xpose.msra.mxu0 0
    %2313 = vmatprep.subr.bf16.mxu0 0
    %2314 = vmatpush1.bf16.xpose.msra.mxu0 0
    %2315 = vmatprep.subr.bf16.mxu0 0
    %2316 = vmatpush1.bf16.xpose.msra.mxu0 0
    %2317 = vmatprep.subr.bf16.mxu0 0
    %2318 = vmatpush1.bf16.xpose.msra.mxu0 0
    %2319 = vmatprep.subr.bf16.mxu0 0
    %2320 = vmatpush1.bf16.xpose.msra.mxu0 0
    %2321 = vmatprep.subr.bf16.mxu0 0
    %2322 = vmatpush1.bf16.xpose.msra.mxu0 0
    %2323 = vmatprep.subr.bf16.mxu0 0
    %2324 = vmatpush1.bf16.xpose.msra.mxu0 0
    %2325 = vmatprep.subr.bf16.mxu0 0
    %2326 = vmatpush1.bf16.xpose.msra.mxu0 0
    %2327 = vmatprep.subr.bf16.mxu0 0
    %2328 = vmatpush1.bf16.xpose.msra.mxu0 0
    %2329 = vmatprep.mubr.bf16.mxu0 0
    %2330 = vmatmul.mubr.bf16.gmra.mrb[0].mxu0 %v2292
    %v2331 = vpop.f32.mrb[0].mxu0
    %v2332 = vadd.f32 0.0, %v2331
    %v2333 = vpop.f32.mrb[0].mxu0
    %v2334 = vpop.f32.mrb[0].mxu0
    %v2335 = vadd.f32 0.0, %v2334
    %v2336 = vpop.f32.mrb[0].mxu0
    %2337 = vdwg.mxu0
    %v2338 = vpack.c.bf16 %v2335, %v2332
    %s2339 = scalar_lea.vmem %s17, 12
    %v2340 = vld [vmem:[%s2339] sm:$0xf]
    %v2342 = vsel %vm332, %v2338, 0
    %v2345 = vsel %vm336, %v2340, 0
    %2347 = vmatprep.subr.bf16.mxu0 0
    %2348 = vmatpush1.bf16.msra.mxu0 %v2345
    %2349 = vmatprep.subr.bf16.mxu0 0
    %2350 = vmatpush1.bf16.msra.mxu0 0
    %2351 = vmatprep.subr.bf16.mxu0 0
    %2352 = vmatpush1.bf16.msra.mxu0 0
    %2353 = vmatprep.subr.bf16.mxu0 0
    %2354 = vmatpush1.bf16.msra.mxu0 0
    %2355 = vmatprep.subr.bf16.mxu0 0
    %2356 = vmatpush1.bf16.msra.mxu0 0
    %2357 = vmatprep.subr.bf16.mxu0 0
    %2358 = vmatpush1.bf16.msra.mxu0 0
    %2359 = vmatprep.subr.bf16.mxu0 0
    %2360 = vmatpush1.bf16.msra.mxu0 0
    %2361 = vmatprep.subr.bf16.mxu0 0
    %2362 = vmatpush1.bf16.msra.mxu0 0
    %2363 = vmatprep.subr.bf16.mxu0 0
    %2364 = vmatpush1.bf16.msra.mxu0 0
    %2365 = vmatprep.subr.bf16.mxu0 0
    %2366 = vmatpush1.bf16.msra.mxu0 0
    %2367 = vmatprep.subr.bf16.mxu0 0
    %2368 = vmatpush1.bf16.msra.mxu0 0
    %2369 = vmatprep.subr.bf16.mxu0 0
    %2370 = vmatpush1.bf16.msra.mxu0 0
    %2371 = vmatprep.subr.bf16.mxu0 0
    %2372 = vmatpush1.bf16.msra.mxu0 0
    %2373 = vmatprep.subr.bf16.mxu0 0
    %2374 = vmatpush1.bf16.msra.mxu0 0
    %2375 = vmatprep.subr.bf16.mxu0 0
    %2376 = vmatpush1.bf16.msra.mxu0 0
    %2377 = vmatprep.subr.bf16.mxu0 0
    %2378 = vmatpush1.bf16.msra.mxu0 0
    %2379 = vmatprep.mubr.bf16.mxu0 0
    %2380 = vmatmul.mubr.bf16.gmra.mrb[0].mxu0 %v2342
    %v2381 = vpop.f32.mrb[0].mxu0
    %v2382 = vadd.f32 0.0, %v2381
    %v2383 = vpop.f32.mrb[0].mxu0
    %v2384 = vpop.f32.mrb[0].mxu0
    %v2385 = vadd.f32 0.0, %v2384
    %v2386 = vpop.f32.mrb[0].mxu0
    %2387 = vdwg.mxu0
    %v2388 = vadd.f32 %v2287, %v2382
    %v2389 = vadd.f32 %v2288, %v2385
    %v2390 = vld [vmem:[%s18] sm:$0x1]
    %v2392 = vlaneseq
    %v2393 = vshrl.u32 %v2392, 7
    %v2394 = vsub.s32 0, %v2393
    %v2395 = vrot.slane %v2390, %v2394
    %v2397 = vadd.f32 %v2388, %v2395
    %v2398 = vadd.f32 %v2389, %v2395
    %v2399 = vadd.f32 %v2397, %v1268
    %v2400 = vadd.f32 %v2398, %v1269
    %v2401 = vld [vmem:[%s19] sm:$0x1]
    %v2402 = vld [vmem:[%s20] sm:$0x1]
    %v2403 = vsel %vm182, %v2399, 0.0
    %2404 = vadd.xlane.f32.xlu0 %v2403
    %v2405 = vpop.xlane.xlu0 %2404
    %v2406 = vsel %vm182, %v2400, 0.0
    %2407 = vadd.xlane.f32.xlu0 %v2406
    %v2408 = vpop.xlane.xlu0 %2407
    %v2409 = vmul.f32 %v2405, %v1233
    %v2410 = vmul.f32 %v2408, %v1233
    %v2411 = vsub.f32 %v2399, %v2409
    %v2412 = vsub.f32 %v2400, %v2410
    %v2413 = vmul.f32 %v2411, %v2411
    %v2414 = vmul.f32 %v2412, %v2412
    %v2415 = vsel %vm182, %v2413, 0.0
    %2416 = vadd.xlane.f32.xlu0 %v2415
    %v2417 = vpop.xlane.xlu0 %2416
    %v2418 = vsel %vm182, %v2414, 0.0
    %2419 = vadd.xlane.f32.xlu0 %v2418
    %v2420 = vpop.xlane.xlu0 %2419
    %v2421 = vmul.f32 %v2417, %v1233
    %v2422 = vmul.f32 %v2420, %v1233
    %v2423 = vadd.f32 %v2421, 1e-05
    %v2424 = vadd.f32 %v2422, 1e-05
    %v2425 = vrsqrt.pop %v2423
    %v2426 = vrsqrt.pop %v2424
    %v2427 = vmul.f32 %v2411, %v2425
    %v2428 = vmul.f32 %v2412, %v2426
    %v2430 = vlaneseq
    %v2431 = vshrl.u32 %v2430, 7
    %v2432 = vsub.s32 0, %v2431
    %v2433 = vrot.slane %v2401, %v2432
    %v2435 = vmul.f32 %v2427, %v2433
    %v2436 = vmul.f32 %v2428, %v2433
    %v2438 = vlaneseq
    %v2439 = vshrl.u32 %v2438, 7
    %v2440 = vsub.s32 0, %v2439
    %v2441 = vrot.slane %v2402, %v2440
    %v2443 = vadd.f32 %v2435, %v2441
    %v2444 = vadd.f32 %v2436, %v2441
    %v2445 = vpack.c.bf16 %v2444, %v2443
    %v2446 = vld [vmem:[%s21] sm:$0xf]
    %v2447 = vld [vmem:[%s21 + $0x4] sm:$0xf]
    %v2448 = vld [vmem:[%s21 + $0x8] sm:$0xf]
    %v2449 = vld [vmem:[%s21 + $0xc] sm:$0xf]
    %v2450 = vld [vmem:[%s22] sm:$0x1]
    %v2452 = vlaneseq
    %v2453 = vshrl.u32 %v2452, 7
    %v2454 = vsub.s32 0, %v2453
    %v2455 = vrot.slane %v2450, %v2454
    %v2461 = vunpack.c.l.b16 %v2446
    %v2462 = vunpack.c.l.b16 %v2447
    %v2463 = vunpack.c.l.b16 %v2448
    %v2464 = vunpack.c.l.b16 %v2449
    %v2465 = vpack.c.b16 %v2462, %v2461
    %v2466 = vpack.c.b16 %v2464, %v2463
    %v2470 = vsel %vm182, %v2445, 0
    %2472 = vmatprep.subr.bf16.mxu0 0
    %2473 = vmatpush1.bf16.msra.mxu0 %v2465
    %2474 = vmatprep.subr.bf16.mxu0 0
    %2475 = vmatpush1.bf16.msra.mxu0 %v2466
    %2476 = vmatprep.subr.bf16.mxu0 0
    %2477 = vmatpush1.bf16.msra.mxu0 0
    %2478 = vmatprep.subr.bf16.mxu0 0
    %2479 = vmatpush1.bf16.msra.mxu0 0
    %2480 = vmatprep.subr.bf16.mxu0 0
    %2481 = vmatpush1.bf16.msra.mxu0 0
    %2482 = vmatprep.subr.bf16.mxu0 0
    %2483 = vmatpush1.bf16.msra.mxu0 0
    %2484 = vmatprep.subr.bf16.mxu0 0
    %2485 = vmatpush1.bf16.msra.mxu0 0
    %2486 = vmatprep.subr.bf16.mxu0 0
    %2487 = vmatpush1.bf16.msra.mxu0 0
    %2488 = vmatprep.subr.bf16.mxu0 0
    %2489 = vmatpush1.bf16.msra.mxu0 0
    %2490 = vmatprep.subr.bf16.mxu0 0
    %2491 = vmatpush1.bf16.msra.mxu0 0
    %2492 = vmatprep.subr.bf16.mxu0 0
    %2493 = vmatpush1.bf16.msra.mxu0 0
    %2494 = vmatprep.subr.bf16.mxu0 0
    %2495 = vmatpush1.bf16.msra.mxu0 0
    %2496 = vmatprep.subr.bf16.mxu0 0
    %2497 = vmatpush1.bf16.msra.mxu0 0
    %2498 = vmatprep.subr.bf16.mxu0 0
    %2499 = vmatpush1.bf16.msra.mxu0 0
    %2500 = vmatprep.subr.bf16.mxu0 0
    %2501 = vmatpush1.bf16.msra.mxu0 0
    %2502 = vmatprep.subr.bf16.mxu0 0
    %2503 = vmatpush1.bf16.msra.mxu0 0
    %2504 = vmatprep.mubr.bf16.mxu0 0
    %2505 = vmatmul.mubr.bf16.gmra.mrb[0].mxu0 %v2470
    %v2506 = vpop.f32.mrb[0].mxu0
    %v2507 = vadd.f32 %v2455, %v2506
    %v2508 = vpop.f32.mrb[0].mxu0
    %v2509 = vpop.f32.mrb[0].mxu0
    %v2510 = vadd.f32 %v2455, %v2509
    %v2511 = vpop.f32.mrb[0].mxu0
    %2512 = vdwg.mxu0
    %v2513 = vmax.f32 %v2507, 0.0
    %v2514 = vmax.f32 %v2510, 0.0
    %v2515 = vpack.c.bf16 %v2514, %v2513
    %v2516 = vld [vmem:[%s23] sm:$0xf]
    %v2517 = vld [vmem:[%s23 + $0x4] sm:$0xf]
    %v2518 = vld [vmem:[%s23 + $0x8] sm:$0xf]
    %v2519 = vld [vmem:[%s23 + $0xc] sm:$0xf]
    %v2520 = vld [vmem:[%s23 + $0x10] sm:$0xf]
    %v2521 = vld [vmem:[%s23 + $0x14] sm:$0xf]
    %v2522 = vld [vmem:[%s23 + $0x18] sm:$0xf]
    %v2523 = vld [vmem:[%s23 + $0x1c] sm:$0xf]
    %v2524 = vld [vmem:[%s24] sm:$0x1]
    %v2526 = vlaneseq
    %v2527 = vshrl.u32 %v2526, 7
    %v2528 = vsub.s32 0, %v2527
    %v2529 = vrot.slane %v2524, %v2528
    %v2539 = vunpack.c.l.b16 %v2516
    %v2540 = vunpack.c.l.b16 %v2517
    %v2541 = vunpack.c.l.b16 %v2518
    %v2542 = vunpack.c.l.b16 %v2519
    %v2543 = vunpack.c.l.b16 %v2520
    %v2544 = vunpack.c.l.b16 %v2521
    %v2545 = vunpack.c.l.b16 %v2522
    %v2546 = vunpack.c.l.b16 %v2523
    %v2547 = vpack.c.b16 %v2540, %v2539
    %v2548 = vpack.c.b16 %v2542, %v2541
    %v2549 = vpack.c.b16 %v2544, %v2543
    %v2550 = vpack.c.b16 %v2546, %v2545
    %vm2555 = vcmask 523264
    %v2557 = vsel %vm2555, %v2515, 0
    %2559 = vmatprep.subr.bf16.mxu0 0
    %2560 = vmatpush1.bf16.msra.mxu0 %v2547
    %2561 = vmatprep.subr.bf16.mxu0 0
    %2562 = vmatpush1.bf16.msra.mxu0 %v2548
    %2563 = vmatprep.subr.bf16.mxu0 0
    %2564 = vmatpush1.bf16.msra.mxu0 %v2549
    %2565 = vmatprep.subr.bf16.mxu0 0
    %2566 = vmatpush1.bf16.msra.mxu0 %v2550
    %2567 = vmatprep.subr.bf16.mxu0 0
    %2568 = vmatpush1.bf16.msra.mxu0 0
    %2569 = vmatprep.subr.bf16.mxu0 0
    %2570 = vmatpush1.bf16.msra.mxu0 0
    %2571 = vmatprep.subr.bf16.mxu0 0
    %2572 = vmatpush1.bf16.msra.mxu0 0
    %2573 = vmatprep.subr.bf16.mxu0 0
    %2574 = vmatpush1.bf16.msra.mxu0 0
    %2575 = vmatprep.subr.bf16.mxu0 0
    %2576 = vmatpush1.bf16.msra.mxu0 0
    %2577 = vmatprep.subr.bf16.mxu0 0
    %2578 = vmatpush1.bf16.msra.mxu0 0
    %2579 = vmatprep.subr.bf16.mxu0 0
    %2580 = vmatpush1.bf16.msra.mxu0 0
    %2581 = vmatprep.subr.bf16.mxu0 0
    %2582 = vmatpush1.bf16.msra.mxu0 0
    %2583 = vmatprep.subr.bf16.mxu0 0
    %2584 = vmatpush1.bf16.msra.mxu0 0
    %2585 = vmatprep.subr.bf16.mxu0 0
    %2586 = vmatpush1.bf16.msra.mxu0 0
    %2587 = vmatprep.subr.bf16.mxu0 0
    %2588 = vmatpush1.bf16.msra.mxu0 0
    %2589 = vmatprep.subr.bf16.mxu0 0
    %2590 = vmatpush1.bf16.msra.mxu0 0
    %2591 = vmatprep.mubr.bf16.mxu0 0
    %2592 = vmatmul.mubr.bf16.gmra.mrb[0].mxu0 %v2557
    %v2593 = vpop.f32.mrb[0].mxu0
    %v2594 = vadd.f32 %v2529, %v2593
    %v2595 = vpop.f32.mrb[0].mxu0
    %v2596 = vpop.f32.mrb[0].mxu0
    %v2597 = vadd.f32 %v2529, %v2596
    %v2598 = vpop.f32.mrb[0].mxu0
    %2599 = vdwg.mxu0
    %v2600 = vadd.f32 %v2594, %v2443
    %v2601 = vadd.f32 %v2597, %v2444
    %v2602 = vld [vmem:[%s25] sm:$0x1]
    %v2603 = vld [vmem:[%s26] sm:$0x1]
    %v2604 = vsel %vm182, %v2600, 0.0
    %2605 = vadd.xlane.f32.xlu0 %v2604
    %v2606 = vpop.xlane.xlu0 %2605
    %v2607 = vsel %vm182, %v2601, 0.0
    %2608 = vadd.xlane.f32.xlu0 %v2607
    %v2609 = vpop.xlane.xlu0 %2608
    %v2610 = vmul.f32 %v2606, %v1233
    %v2611 = vmul.f32 %v2609, %v1233
    %v2612 = vsub.f32 %v2600, %v2610
    %v2613 = vsub.f32 %v2601, %v2611
    %v2614 = vmul.f32 %v2612, %v2612
    %v2615 = vmul.f32 %v2613, %v2613
    %v2616 = vsel %vm182, %v2614, 0.0
    %2617 = vadd.xlane.f32.xlu0 %v2616
    %v2618 = vpop.xlane.xlu0 %2617
    %v2619 = vsel %vm182, %v2615, 0.0
    %2620 = vadd.xlane.f32.xlu0 %v2619
    %v2621 = vpop.xlane.xlu0 %2620
    %v2622 = vmul.f32 %v2618, %v1233
    %v2623 = vmul.f32 %v2621, %v1233
    %v2624 = vadd.f32 %v2622, 1e-05
    %v2625 = vadd.f32 %v2623, 1e-05
    %v2626 = vrsqrt.pop %v2624
    %v2627 = vrsqrt.pop %v2625
    %v2628 = vmul.f32 %v2612, %v2626
    %v2629 = vmul.f32 %v2613, %v2627
    %v2631 = vlaneseq
    %v2632 = vshrl.u32 %v2631, 7
    %v2633 = vsub.s32 0, %v2632
    %v2634 = vrot.slane %v2602, %v2633
    %v2636 = vmul.f32 %v2628, %v2634
    %v2637 = vmul.f32 %v2629, %v2634
    %v2639 = vlaneseq
    %v2640 = vshrl.u32 %v2639, 7
    %v2641 = vsub.s32 0, %v2640
    %v2642 = vrot.slane %v2603, %v2641
    %v2644 = vadd.f32 %v2636, %v2642
    %v2645 = vadd.f32 %v2637, %v2642
    %2646 = vst.msk [vmem:[#allocation2] sm:$0xff] %vm182, %v2644
    %2647 = vst.msk [vmem:[#allocation2 + $0x8] sm:$0xff] %vm182, %v2645
    // Predicated region
    $region110: #{tpu_custom_call.1} parent=1 // pred_check
      _
    $region111: #{tpu_custom_call.1} parent=1 // pred_check_branch
      %2649 = sbr.rel (0) target = $region113
    $region112: #{tpu_custom_call.1} parent=1 // pred_region
      %s2651 = ssub.s32 256, 256
      %2652 = vsyncadd [#allocation3], %s2651
      %s2653 = sshll.u32 [#allocation2], 4
      %s2654 = int_to_ptr.vmem [resolvable:$true] %s2653
      %2659 = dma.vmem_to_hbm [thread:$0]  %s2654, 256, %s27, [#allocation3], 128, 128, 8
    $region113: #{tpu_custom_call.1} parent=1 // pred_fallthru
      _
    // Predicated region
    $region114: #{tpu_custom_call.1} parent=1 // pred_check
      _
    $region115: #{tpu_custom_call.1} parent=1 // pred_check_branch
      %2661 = sbr.rel (0) target = $region117
    $region116: #{tpu_custom_call.1} parent=1 // pred_region
      %2662 = dma.done [#allocation3], 256
    $region117: #{tpu_custom_call.1} parent=1 // pred_fallthru
      _
    %2663 = vsyncpa [#allocation3], 1

</llo_original>
